<compile_context>
chip_gen: v6e
topology: v6e:2x2x1
jax: 0.10.0
libtpu: 0.0.40
codegen_flags: <defaults>
</compile_context>

<pallas_src>
import functools
import math

import jax
import jax.numpy as jnp
from jax import lax
from jax.experimental import pallas as pl
from jax.experimental.pallas import tpu as pltpu

LN_EPS = 1e-5                      # RoBERTa LayerNorm eps
GELU_C = 0.7978845608028654        # sqrt(2/pi)
NEG_INF = -1e9
VMEM_LIMIT = 64 * 1024 * 1024


def _pick_tile(dim, target):
    """Use `target` if it evenly tiles `dim`, otherwise fall back to the full dim."""
    return target if (dim % target == 0) else dim


# ----------------------------- Pallas kernels ------------------------------

def _dense_kernel(x_ref, w_ref, b_ref, o_ref, acc_ref, *, activation):
    @pl.when(pl.program_id(2) == 0)
    def _():
        acc_ref[...] = jnp.zeros_like(acc_ref)

    acc_ref[...] += jnp.dot(x_ref[...], w_ref[...],
                            preferred_element_type=jnp.float32)

    @pl.when(pl.program_id(2) == pl.num_programs(2) - 1)
    def _():
        y = acc_ref[...] + b_ref[...]
        if activation == "relu":
            y = jnp.maximum(y, 0.0)
        elif activation == "gelu":
            # TODO(synk): HF RoBERTa uses exact erf-GELU; tanh approximation used here.
            y = 0.5 * y * (1.0 + jnp.tanh(GELU_C * (y + 0.044715 * y * y * y)))
        o_ref[...] = y.astype(o_ref.dtype)


def dense(x, w, b, activation=None, out_dtype=jnp.bfloat16,
          tm=256, tn=256, tk=512):
    """y = act(x @ w + b). x:(M,K) bf16, w:(K,N) bf16, b:(N,) f32."""
    M, K = x.shape
    N = w.shape[1]
    tm, tn, tk = _pick_tile(M, tm), _pick_tile(N, tn), _pick_tile(K, tk)
    kern = functools.partial(_dense_kernel, activation=activation)
    return pl.pallas_call(
        kern,
        out_shape=jax.ShapeDtypeStruct((M, N), out_dtype),
        grid=(M // tm, N // tn, K // tk),
        in_specs=[pl.BlockSpec((tm, tk), lambda i, j, k: (i, k)),
                  pl.BlockSpec((tk, tn), lambda i, j, k: (k, j)),
                  pl.BlockSpec((1, tn), lambda i, j, k: (0, j))],
        out_specs=pl.BlockSpec((tm, tn), lambda i, j, k: (i, j)),
        scratch_shapes=[pltpu.VMEM((tm, tn), jnp.float32)],
        compiler_params=pltpu.CompilerParams(
            dimension_semantics=("parallel", "parallel", "arbitrary"),
            vmem_limit_bytes=VMEM_LIMIT),
    )(x, w, b.reshape(1, N).astype(jnp.float32))


def _dense_nt_kernel(x_ref, w_ref, b_ref, o_ref, acc_ref):
    @pl.when(pl.program_id(2) == 0)
    def _():
        acc_ref[...] = jnp.zeros_like(acc_ref)

    # contract over the last dim of both operands (x @ w.T) -- no transpose in HBM
    acc_ref[...] += lax.dot_general(
        x_ref[...], w_ref[...],
        dimension_numbers=(((1,), (1,)), ((), ())),
        preferred_element_type=jnp.float32)

    @pl.when(pl.program_id(2) == pl.num_programs(2) - 1)
    def _():
        o_ref[...] = (acc_ref[...] + b_ref[...]).astype(o_ref.dtype)


def dense_nt(x, w, b, out_dtype=jnp.float32, tm=256, tn=256, tk=512):
    """y = x @ w.T + b with w kept in (N, K) layout (tied LM decoder)."""
    M, K = x.shape
    N = w.shape[0]
    tm, tn, tk = _pick_tile(M, tm), _pick_tile(N, tn), _pick_tile(K, tk)
    return pl.pallas_call(
        _dense_nt_kernel,
        out_shape=jax.ShapeDtypeStruct((M, N), out_dtype),
        grid=(M // tm, N // tn, K // tk),
        in_specs=[pl.BlockSpec((tm, tk), lambda i, j, k: (i, k)),
                  pl.BlockSpec((tn, tk), lambda i, j, k: (j, k)),
                  pl.BlockSpec((1, tn), lambda i, j, k: (0, j))],
        out_specs=pl.BlockSpec((tm, tn), lambda i, j, k: (i, j)),
        scratch_shapes=[pltpu.VMEM((tm, tn), jnp.float32)],
        compiler_params=pltpu.CompilerParams(
            dimension_semantics=("parallel", "parallel", "arbitrary"),
            vmem_limit_bytes=VMEM_LIMIT),
    )(x, w, b.reshape(1, N).astype(jnp.float32))


def _attn_kernel(q_ref, k_ref, v_ref, bias_ref, o_ref, *, scale, grp, dh):
    """Per grid step: one batch element, `grp` heads kept in (S, grp*dh) layout."""
    bias = bias_ref[0]                 # (1, S) f32 additive mask
    q_all = q_ref[0]                   # (S, grp*dh) bf16
    k_all = k_ref[0]
    v_all = v_ref[0]
    for g in range(grp):               # unrolled; grp is small (≤ 128/dh or nH)
        sl = slice(g * dh, (g + 1) * dh)
        qg, kg, vg = q_all[:, sl], k_all[:, sl], v_all[:, sl]
        # NT contraction over head_dim; f32 accumulation on the MXU
        s = lax.dot_general(qg, kg,
                            dimension_numbers=(((1,), (1,)), ((), ())),
                            preferred_element_type=jnp.float32)
        s = s * scale + bias
        m = jnp.max(s, axis=-1, keepdims=True)
        p = jnp.exp(s - m)
        denom = jnp.sum(p, axis=-1, keepdims=True)
        p = p * pl.reciprocal(denom, approx=True)
        o = jnp.dot(p.astype(vg.dtype), vg,
                    preferred_element_type=jnp.float32)
        o_ref[0, :, sl] = o.astype(o_ref.dtype)


def attention(q, k, v, attn_bias, n_heads, head_dim):
    """q/k/v: (B, S, H) bf16 (heads packed along the last dim, no transpose);
    attn_bias: (B, 1, S) f32 additive mask.  Returns merged (B, S, H) bf16."""
    B, S, H = q.shape
    # pick a head-group so the block's lane dim is a multiple of 128 (or full H)
    if head_dim % 128 == 0:
        grp = 1
    elif (128 % head_dim == 0) and (n_heads % (128 // head_dim) == 0):
        grp = 128 // head_dim
    else:
        grp = n_heads
    gd = grp * head_dim
    kern = functools.partial(_attn_kernel, scale=1.0 / math.sqrt(head_dim),
                             grp=grp, dh=head_dim)
    spec = pl.BlockSpec((1, S, gd), lambda b, h: (b, 0, h))
    return pl.pallas_call(
        kern,
        out_shape=jax.ShapeDtypeStruct((B, S, H), jnp.bfloat16),
        grid=(B, n_heads // grp),
        in_specs=[spec, spec, spec,
                  pl.BlockSpec((1, 1, S), lambda b, h: (b, 0, 0))],
        out_specs=spec,
        compiler_params=pltpu.CompilerParams(
            dimension_semantics=("parallel", "parallel")),
    )(q, k, v, attn_bias)


def _ln_kernel(x_ref, g_ref, b_ref, o_ref):
    x = x_ref[...].astype(jnp.float32)
    mean = jnp.mean(x, axis=-1, keepdims=True)
    var = jnp.mean((x - mean) * (x - mean), axis=-1, keepdims=True)
    o_ref[...] = ((x - mean) * lax.rsqrt(var + LN_EPS)
                  * g_ref[...] + b_ref[...]).astype(o_ref.dtype)


def layernorm(x, gamma, beta, out_dtype=jnp.bfloat16, tm=256):
    M, H = x.shape
    tm = _pick_tile(M, tm)
    return pl.pallas_call(
        _ln_kernel,
        out_shape=jax.ShapeDtypeStruct((M, H), out_dtype),
        grid=(M // tm,),
        in_specs=[pl.BlockSpec((tm, H), lambda i: (i, 0)),
                  pl.BlockSpec((1, H), lambda i: (0, 0)),
                  pl.BlockSpec((1, H), lambda i: (0, 0))],
        out_specs=pl.BlockSpec((tm, H), lambda i: (i, 0)),
        compiler_params=pltpu.CompilerParams(
            dimension_semantics=("parallel",)),
    )(x, gamma.reshape(1, H), beta.reshape(1, H))


def _proj_adapter_ln_kernel(x_ref, res_ref, wp_ref, bp_ref,
                            wd_ref, bd_ref, wu_ref, bu_ref,
                            g_ref, beta_ref, o_ref):
    # output projection (attention wo / FFN wo2), f32 accumulation
    h = jnp.dot(x_ref[...], wp_ref[...],
                preferred_element_type=jnp.float32) + bp_ref[...]
    # bottleneck adapter: h + up(relu(down(h)))   (non_linearity='relu')
    d = jnp.dot(h.astype(jnp.bfloat16), wd_ref[...],
                preferred_element_type=jnp.float32) + bd_ref[...]
    d = jnp.maximum(d, 0.0)
    u = jnp.dot(d.astype(jnp.bfloat16), wu_ref[...],
                preferred_element_type=jnp.float32) + bu_ref[...]
    # transformer residual + LayerNorm in f32
    y = h + u + res_ref[...].astype(jnp.float32)
    mean = jnp.mean(y, axis=-1, keepdims=True)
    var = jnp.mean((y - mean) * (y - mean), axis=-1, keepdims=True)
    o_ref[...] = ((y - mean) * lax.rsqrt(var + LN_EPS)
                  * g_ref[...] + beta_ref[...]).astype(o_ref.dtype)


def proj_adapter_add_ln(x, residual, wp, bp, wd, bd, wu, bu, gamma, beta,
                        tm=256):
    """Fused: y = LN(proj(x) + adapter(proj(x)) + residual)."""
    M, K = x.shape
    H = wp.shape[1]
    R = wd.shape[1]
    tm = _pick_tile(M, tm)
    return pl.pallas_call(
        _proj_adapter_ln_kernel,
        out_shape=jax.ShapeDtypeStruct((M, H), jnp.bfloat16),
        grid=(M // tm,),
        in_specs=[pl.BlockSpec((tm, K), lambda i: (i, 0)),
                  pl.BlockSpec((tm, H), lambda i: (i, 0)),
                  pl.BlockSpec((K, H), lambda i: (0, 0)),
                  pl.BlockSpec((1, H), lambda i: (0, 0)),
                  pl.BlockSpec((H, R), lambda i: (0, 0)),
                  pl.BlockSpec((1, R), lambda i: (0, 0)),
                  pl.BlockSpec((R, H), lambda i: (0, 0)),
                  pl.BlockSpec((1, H), lambda i: (0, 0)),
                  pl.BlockSpec((1, H), lambda i: (0, 0)),
                  pl.BlockSpec((1, H), lambda i: (0, 0))],
        out_specs=pl.BlockSpec((tm, H), lambda i: (i, 0)),
        compiler_params=pltpu.CompilerParams(
            dimension_semantics=("parallel",),
            vmem_limit_bytes=VMEM_LIMIT),
    )(x, residual,
      wp, bp.reshape(1, H).astype(jnp.float32),
      wd, bd.reshape(1, R).astype(jnp.float32),
      wu, bu.reshape(1, H).astype(jnp.float32),
      gamma.reshape(1, H), beta.reshape(1, H))


# ------------------------------- parameters --------------------------------

def init_params(key, cfg):
    H, I, V = cfg["hidden"], cfg["intermediate"], cfg["vocab"]
    R = max(1, H // cfg["reduction_factor"])        # adapter bottleneck
    n_keys = 10 + cfg["layers"] * 16
    ks = jax.random.split(key, n_keys)
    idx = iter(range(n_keys))

    def nrm(shape, scale=0.02):
        # matmul weights stored in bf16; f32 accumulation happens in-kernel
        return (scale * jax.random.normal(ks[next(idx)], shape)).astype(jnp.bfloat16)

    zeros = lambda s: jnp.zeros(s, jnp.float32)
    ones = lambda s: jnp.ones(s, jnp.float32)

    params = {
        "word_emb": nrm((V, H)),                    # also the tied LM decoder
        "pos_emb": nrm((cfg["max_pos"], H)),
        "type_emb": nrm((1, H)),
        "emb_ln_g": ones((H,)), "emb_ln_b": zeros((H,)),
        "lm_w": nrm((H, H)), "lm_b": zeros((H,)),
        "lm_ln_g": ones((H,)), "lm_ln_b": zeros((H,)),
        "lm_dec_b": zeros((V,)),
        "layers": [],
    }
    for _ in range(cfg["layers"]):
        lyr = {
            "wqkv": nrm((H, 3 * H)), "bqkv": zeros((3 * H,)),   # fused Q|K|V
            "wo": nrm((H, H)), "bo": zeros((H,)),
            "a_attn_wd": nrm((H, R)), "a_attn_bd": zeros((R,)),
            "a_attn_wu": nrm((R, H)), "a_attn_bu": zeros((H,)),
            "attn_ln_g": ones((H,)), "attn_ln_b": zeros((H,)),
            "wi": nrm((H, I)), "bi": zeros((I,)),
            "wo2": nrm((I, H)), "bo2": zeros((H,)),
            "a_out_wd": nrm((H, R)), "a_out_bd": zeros((R,)),
            "a_out_wu": nrm((R, H)), "a_out_bu": zeros((H,)),
            "out_ln_g": ones((H,)), "out_ln_b": zeros((H,)),
        }
        params["layers"].append(lyr)
    return params


# -------------------------------- forward ----------------------------------

def roberta_adapter_forward(params, input_ids, attention_mask, cfg):
    B, S = input_ids.shape
    H, nH, Dh = cfg["hidden"], cfg["heads"], cfg["head_dim"]
    pad = cfg["pad_token_id"]

    # RoBERTa position ids: start at padding_idx+1, pads stay at padding_idx
    pos_mask = (input_ids != pad).astype(jnp.int32)
    position_ids = jnp.cumsum(pos_mask, axis=1) * pos_mask + pad

    # embeddings (gathers are JAX glue), embedding LayerNorm in Pallas
    x = (params["word_emb"][input_ids].astype(jnp.float32)
         + params["pos_emb"][position_ids].astype(jnp.float32)
         + params["type_emb"][0].astype(jnp.float32))
    x = layernorm(x.reshape(B * S, H), params["emb_ln_g"], params["emb_ln_b"])

    # additive attention bias from the mask, (B, 1, S)
    attn_bias = ((1.0 - attention_mask.astype(jnp.float32)) * NEG_INF
                 ).reshape(B, 1, S)

    for lyr in params["layers"]:
        # fused Q|K|V projection: one GEMM with N = 3H
        qkv = dense(x, lyr["wqkv"], lyr["bqkv"])
        # heads stay packed along the feature dim -> no split/merge transposes
        q, k, v = jnp.split(qkv.reshape(B, S, 3 * H), 3, axis=2)
        ctx = attention(q, k, v, attn_bias, nH, Dh).reshape(B * S, H)
        # fused: attention output proj -> mh_adapter -> residual -> attention LN
        x = proj_adapter_add_ln(ctx, x, lyr["wo"], lyr["bo"],
                                lyr["a_attn_wd"], lyr["a_attn_bd"],
                                lyr["a_attn_wu"], lyr["a_attn_bu"],
                                lyr["attn_ln_g"], lyr["attn_ln_b"])
        # feed-forward intermediate (GELU inside the tiled GEMM)
        inter = dense(x, lyr["wi"], lyr["bi"], activation="gelu")
        # fused: FFN output proj -> output_adapter -> residual -> output LN
        x = proj_adapter_add_ln(inter, x, lyr["wo2"], lyr["bo2"],
                                lyr["a_out_wd"], lyr["a_out_bd"],
                                lyr["a_out_wu"], lyr["a_out_bu"],
                                lyr["out_ln_g"], lyr["out_ln_b"])

    # masked-LM head: dense+gelu, LN, tied decoder (contract over H, no .T copy)
    h = dense(x, params["lm_w"], params["lm_b"], activation="gelu")
    h = layernorm(h, params["lm_ln_g"], params["lm_ln_b"])
    logits = dense_nt(h, params["word_emb"], params["lm_dec_b"],
                      out_dtype=jnp.float32)
    return logits.reshape(B, S, cfg["vocab"])


# --------------------------------- main -------------------------------------

if __name__ == "__main__":
    cfg = dict(vocab=64, hidden=32, heads=2, head_dim=16, intermediate=128,
               layers=2, max_pos=16, reduction_factor=16, pad_token_id=1)
    key = jax.random.PRNGKey(0)
    pkey, ikey = jax.random.split(key)
    params = init_params(pkey, cfg)

    input_ids = jax.random.randint(ikey, (2, 8), 0, cfg["vocab"])   # (B=2, S=8)
    attention_mask = jnp.ones((2, 8), jnp.int32)

    fwd = jax.jit(lambda p, ids, m: roberta_adapter_forward(p, ids, m, cfg))
    logits = fwd(params, input_ids, attention_mask)
    jax.block_until_ready(logits)
    assert logits.shape == (2, 8, cfg["vocab"])
    assert bool(jnp.all(jnp.isfinite(logits)))
    print("KERNEL_OK")
</pallas_src>

<mosaic_0001>
module attributes {stable_mosaic.version = 11 : i64} {
  func.func @_dense_kernel(%arg0: i32, %arg1: i32, %arg2: i32, %arg3: memref<16x32xbf16, #tpu.memory_space<vmem>>, %arg4: memref<32x96xbf16, #tpu.memory_space<vmem>>, %arg5: memref<1x96xf32, #tpu.memory_space<vmem>>, %arg6: memref<16x96xbf16, #tpu.memory_space<vmem>>, %arg7: memref<16x96xf32, #tpu.memory_space<vmem>>) attributes {dimension_semantics = [#tpu.dimension_semantics<parallel>, #tpu.dimension_semantics<parallel>, #tpu.dimension_semantics<arbitrary>], iteration_bounds = array<i64: 1, 1, 1>, scalar_prefetch = 0 : i64, scratch_operands = 1 : i64, tpu.core_type = #tpu.core_type<tc>, window_params = [{transform_indices = @transform_0, window_bounds = array<i64: 16, 32>}, {transform_indices = @transform_1, window_bounds = array<i64: 32, 96>}, {transform_indices = @transform_2, window_bounds = array<i64: 1, 96>}, {transform_indices = @transform_3, window_bounds = array<i64: 16, 96>}]} {
    %c0_i32 = arith.constant 0 : i32
    %0 = arith.cmpi eq, %arg2, %c0_i32 : i32
    %1 = arith.extui %0 : i1 to i32
    %c0_i32_0 = arith.constant 0 : i32
    %2 = arith.cmpi ne, %1, %c0_i32_0 : i32
    scf.if %2 {
      %cst_10 = arith.constant 0.000000e+00 : f32
      %12 = vector.broadcast %cst_10 : f32 to vector<16x96xf32>
      %c0_11 = arith.constant 0 : index
      %c0_12 = arith.constant 0 : index
      %13 = vector.load %arg7[%c0_11, %c0_12] : memref<16x96xf32, #tpu.memory_space<vmem>>, vector<16x96xf32>
      tpu.vector_store %arg7[%c0_11, %c0_12], %12 {strides = array<i32>} : memref<16x96xf32, #tpu.memory_space<vmem>>, vector<16x96xf32>,
    } else {
    }
    %c0 = arith.constant 0 : index
    %c0_1 = arith.constant 0 : index
    %3 = vector.load %arg7[%c0, %c0_1] : memref<16x96xf32, #tpu.memory_space<vmem>>, vector<16x96xf32>
    %c0_2 = arith.constant 0 : index
    %c0_3 = arith.constant 0 : index
    %4 = vector.load %arg3[%c0_2, %c0_3] : memref<16x32xbf16, #tpu.memory_space<vmem>>, vector<16x32xbf16>
    %c0_4 = arith.constant 0 : index
    %c0_5 = arith.constant 0 : index
    %5 = vector.load %arg4[%c0_4, %c0_5] : memref<32x96xbf16, #tpu.memory_space<vmem>>, vector<32x96xbf16>
    %cst = arith.constant dense<0.000000e+00> : vector<16x96xf32>
    %6 = tpu.matmul %4, %5, %cst {dimension_numbers = #tpu.dot_dimension_numbers<[1], [0], [0], [1], [0, 0, 1, 1], [], []>} : vector<16x32xbf16>, vector<32x96xbf16>, vector<16x96xf32> -> vector<16x96xf32>
    %7 = arith.addf %3, %6 : vector<16x96xf32>
    %c0_6 = arith.constant 0 : index
    %c0_7 = arith.constant 0 : index
    %8 = vector.load %arg7[%c0_6, %c0_7] : memref<16x96xf32, #tpu.memory_space<vmem>>, vector<16x96xf32>
    tpu.vector_store %arg7[%c0_6, %c0_7], %7 {strides = array<i32>} : memref<16x96xf32, #tpu.memory_space<vmem>>, vector<16x96xf32>,
    %c0_i32_8 = arith.constant 0 : i32
    %9 = arith.cmpi eq, %arg2, %c0_i32_8 : i32
    %10 = arith.extui %9 : i1 to i32
    %c0_i32_9 = arith.constant 0 : i32
    %11 = arith.cmpi ne, %10, %c0_i32_9 : i32
    scf.if %11 {
      %c0_10 = arith.constant 0 : index
      %c0_11 = arith.constant 0 : index
      %12 = vector.load %arg7[%c0_10, %c0_11] : memref<16x96xf32, #tpu.memory_space<vmem>>, vector<16x96xf32>
      %c0_12 = arith.constant 0 : index
      %c0_13 = arith.constant 0 : index
      %13 = vector.load %arg5[%c0_12, %c0_13] : memref<1x96xf32, #tpu.memory_space<vmem>>, vector<1x96xf32>
      %14 = vector.broadcast %13 : vector<1x96xf32> to vector<16x96xf32>
      %15 = arith.addf %12, %14 : vector<16x96xf32>
      %16 = arith.truncf %15 : vector<16x96xf32> to vector<16x96xbf16>
      %c0_14 = arith.constant 0 : index
      %c0_15 = arith.constant 0 : index
      %17 = vector.load %arg6[%c0_14, %c0_15] : memref<16x96xbf16, #tpu.memory_space<vmem>>, vector<16x96xbf16>
      tpu.vector_store %arg6[%c0_14, %c0_15], %16 {strides = array<i32>} : memref<16x96xbf16, #tpu.memory_space<vmem>>, vector<16x96xbf16>,
    } else {
    }
    return
  }
  func.func @transform_0(%arg0: i32, %arg1: i32, %arg2: i32) -> (i32, i32) {
    %c0_i32 = arith.constant 0 : i32
    return %arg0, %arg2 : i32, i32
  }
  func.func @transform_1(%arg0: i32, %arg1: i32, %arg2: i32) -> (i32, i32) {
    %c0_i32 = arith.constant 0 : i32
    return %arg2, %arg1 : i32, i32
  }
  func.func @transform_2(%arg0: i32, %arg1: i32, %arg2: i32) -> (i32, i32) {
    %c0_i32 = arith.constant 0 : i32
    %c0_i32_0 = arith.constant 0 : i32
    return %c0_i32, %arg1 : i32, i32
  }
  func.func @transform_3(%arg0: i32, %arg1: i32, %arg2: i32) -> (i32, i32) {
    %c0_i32 = arith.constant 0 : i32
    return %arg0, %arg1 : i32, i32
  }
}

module attributes {stable_mosaic.version = 11 : i64} {
  func.func @_ln_kernel(%arg0: i32, %arg1: memref<16x32xf32, #tpu.memory_space<vmem>>, %arg2: memref<1x32xf32, #tpu.memory_space<vmem>>, %arg3: memref<1x32xf32, #tpu.memory_space<vmem>>, %arg4: memref<16x32xbf16, #tpu.memory_space<vmem>>) attributes {dimension_semantics = [#tpu.dimension_semantics<parallel>], iteration_bounds = array<i64: 1>, scalar_prefetch = 0 : i64, scratch_operands = 0 : i64, tpu.core_type = #tpu.core_type<tc>, window_params = [{transform_indices = @transform_0, window_bounds = array<i64: 16, 32>}, {pipeline_mode = #tpu.pipeline_mode<synchronous>, transform_indices = @transform_1, window_bounds = array<i64: 1, 32>}, {pipeline_mode = #tpu.pipeline_mode<synchronous>, transform_indices = @transform_2, window_bounds = array<i64: 1, 32>}, {transform_indices = @transform_3, window_bounds = array<i64: 16, 32>}]} {
    %c0 = arith.constant 0 : index
    %c0_0 = arith.constant 0 : index
    %0 = vector.load %arg1[%c0, %c0_0] : memref<16x32xf32, #tpu.memory_space<vmem>>, vector<16x32xf32>
    %cst = arith.constant dense<0.000000e+00> : vector<16xf32>
    %1 = vector.multi_reduction <add>, %0, %cst [1] : vector<16x32xf32> to vector<16xf32>
    %2 = vector.shape_cast %1 : vector<16xf32> to vector<16x1xf32>
    %cst_1 = arith.constant 3.200000e+01 : f32
    %3 = vector.broadcast %cst_1 : f32 to vector<16x1xf32>
    %4 = arith.divf %2, %3 : vector<16x1xf32>
    %5 = vector.broadcast %4 : vector<16x1xf32> to vector<16x32xf32>
    %6 = arith.subf %0, %5 : vector<16x32xf32>
    %7 = vector.broadcast %4 : vector<16x1xf32> to vector<16x32xf32>
    %8 = arith.subf %0, %7 : vector<16x32xf32>
    %9 = arith.mulf %6, %8 : vector<16x32xf32>
    %cst_2 = arith.constant dense<0.000000e+00> : vector<16xf32>
    %10 = vector.multi_reduction <add>, %9, %cst_2 [1] : vector<16x32xf32> to vector<16xf32>
    %11 = vector.shape_cast %10 : vector<16xf32> to vector<16x1xf32>
    %cst_3 = arith.constant 3.200000e+01 : f32
    %12 = vector.broadcast %cst_3 : f32 to vector<16x1xf32>
    %13 = arith.divf %11, %12 : vector<16x1xf32>
    %14 = vector.broadcast %4 : vector<16x1xf32> to vector<16x32xf32>
    %15 = arith.subf %0, %14 : vector<16x32xf32>
    %cst_4 = arith.constant 9.99999974E-6 : f32
    %16 = vector.broadcast %cst_4 : f32 to vector<16x1xf32>
    %17 = arith.addf %13, %16 : vector<16x1xf32>
    %18 = math.rsqrt %17 : vector<16x1xf32>
    %19 = vector.broadcast %18 : vector<16x1xf32> to vector<16x32xf32>
    %20 = arith.mulf %15, %19 : vector<16x32xf32>
    %c0_5 = arith.constant 0 : index
    %c0_6 = arith.constant 0 : index
    %21 = vector.load %arg2[%c0_5, %c0_6] : memref<1x32xf32, #tpu.memory_space<vmem>>, vector<1x32xf32>
    %22 = vector.broadcast %21 : vector<1x32xf32> to vector<16x32xf32>
    %23 = arith.mulf %20, %22 : vector<16x32xf32>
    %c0_7 = arith.constant 0 : index
    %c0_8 = arith.constant 0 : index
    %24 = vector.load %arg3[%c0_7, %c0_8] : memref<1x32xf32, #tpu.memory_space<vmem>>, vector<1x32xf32>
    %25 = vector.broadcast %24 : vector<1x32xf32> to vector<16x32xf32>
    %26 = arith.addf %23, %25 : vector<16x32xf32>
    %27 = arith.truncf %26 : vector<16x32xf32> to vector<16x32xbf16>
    %c0_9 = arith.constant 0 : index
    %c0_10 = arith.constant 0 : index
    %28 = vector.load %arg4[%c0_9, %c0_10] : memref<16x32xbf16, #tpu.memory_space<vmem>>, vector<16x32xbf16>
    tpu.vector_store %arg4[%c0_9, %c0_10], %27 {strides = array<i32>} : memref<16x32xbf16, #tpu.memory_space<vmem>>, vector<16x32xbf16>,
    return
  }
  func.func @transform_0(%arg0: i32) -> (i32, i32) {
    %c0_i32 = arith.constant 0 : i32
    %c0_i32_0 = arith.constant 0 : i32
    return %arg0, %c0_i32 : i32, i32
  }
  func.func @transform_1(%arg0: i32) -> (i32, i32) {
    %c0_i32 = arith.constant 0 : i32
    %c0_i32_0 = arith.constant 0 : i32
    %c0_i32_1 = arith.constant 0 : i32
    return %c0_i32, %c0_i32_0 : i32, i32
  }
  func.func @transform_2(%arg0: i32) -> (i32, i32) {
    %c0_i32 = arith.constant 0 : i32
    %c0_i32_0 = arith.constant 0 : i32
    %c0_i32_1 = arith.constant 0 : i32
    return %c0_i32, %c0_i32_0 : i32, i32
  }
  func.func @transform_3(%arg0: i32) -> (i32, i32) {
    %c0_i32 = arith.constant 0 : i32
    %c0_i32_0 = arith.constant 0 : i32
    return %arg0, %c0_i32 : i32, i32
  }
}

module attributes {stable_mosaic.version = 11 : i64} {
  func.func @_attn_kernel(%arg0: i32, %arg1: i32, %arg2: memref<1x8x32xbf16, #tpu.memory_space<vmem>>, %arg3: memref<1x8x32xbf16, #tpu.memory_space<vmem>>, %arg4: memref<1x8x32xbf16, #tpu.memory_space<vmem>>, %arg5: memref<1x1x8xf32, #tpu.memory_space<vmem>>, %arg6: memref<1x8x32xbf16, #tpu.memory_space<vmem>>) attributes {dimension_semantics = [#tpu.dimension_semantics<parallel>, #tpu.dimension_semantics<parallel>], iteration_bounds = array<i64: 2, 1>, scalar_prefetch = 0 : i64, scratch_operands = 0 : i64, tpu.core_type = #tpu.core_type<tc>, window_params = [{transform_indices = @transform_0, window_bounds = array<i64: 1, 8, 32>}, {transform_indices = @transform_1, window_bounds = array<i64: 1, 8, 32>}, {transform_indices = @transform_2, window_bounds = array<i64: 1, 8, 32>}, {transform_indices = @transform_3, window_bounds = array<i64: 1, 1, 8>}, {transform_indices = @transform_4, window_bounds = array<i64: 1, 8, 32>}]} {
    %c0 = arith.constant 0 : index
    %c0_0 = arith.constant 0 : index
    %c0_1 = arith.constant 0 : index
    %0 = vector.load %arg5[%c0, %c0_0, %c0_1] : memref<1x1x8xf32, #tpu.memory_space<vmem>>, vector<1x1x8xf32>
    %1 = vector.shape_cast %0 : vector<1x1x8xf32> to vector<1x8xf32>
    %c0_2 = arith.constant 0 : index
    %c0_3 = arith.constant 0 : index
    %c0_4 = arith.constant 0 : index
    %2 = vector.load %arg2[%c0_2, %c0_3, %c0_4] : memref<1x8x32xbf16, #tpu.memory_space<vmem>>, vector<1x8x32xbf16>
    %3 = vector.shape_cast %2 : vector<1x8x32xbf16> to vector<8x32xbf16>
    %c0_5 = arith.constant 0 : index
    %c0_6 = arith.constant 0 : index
    %c0_7 = arith.constant 0 : index
    %4 = vector.load %arg3[%c0_5, %c0_6, %c0_7] : memref<1x8x32xbf16, #tpu.memory_space<vmem>>, vector<1x8x32xbf16>
    %5 = vector.shape_cast %4 : vector<1x8x32xbf16> to vector<8x32xbf16>
    %c0_8 = arith.constant 0 : index
    %c0_9 = arith.constant 0 : index
    %c0_10 = arith.constant 0 : index
    %6 = vector.load %arg4[%c0_8, %c0_9, %c0_10] : memref<1x8x32xbf16, #tpu.memory_space<vmem>>, vector<1x8x32xbf16>
    %7 = vector.shape_cast %6 : vector<1x8x32xbf16> to vector<8x32xbf16>
    %8 = vector.extract_strided_slice %3 {offsets = [0, 0], sizes = [8, 16], strides = [1, 1]} : vector<8x32xbf16> to vector<8x16xbf16>
    %9 = vector.extract_strided_slice %5 {offsets = [0, 0], sizes = [8, 16], strides = [1, 1]} : vector<8x32xbf16> to vector<8x16xbf16>
    %10 = vector.extract_strided_slice %7 {offsets = [0, 0], sizes = [8, 16], strides = [1, 1]} : vector<8x32xbf16> to vector<8x16xbf16>
    %cst = arith.constant dense<0.000000e+00> : vector<8x8xf32>
    %11 = tpu.matmul %8, %9, %cst {dimension_numbers = #tpu.dot_dimension_numbers<[1], [1], [0], [0], [0, 0, 1, 0], [], []>} : vector<8x16xbf16>, vector<8x16xbf16>, vector<8x8xf32> -> vector<8x8xf32>
    %cst_11 = arith.constant 2.500000e-01 : f32
    %12 = vector.broadcast %cst_11 : f32 to vector<8x8xf32>
    %13 = arith.mulf %11, %12 : vector<8x8xf32>
    %14 = vector.broadcast %1 : vector<1x8xf32> to vector<8x8xf32>
    %15 = arith.addf %13, %14 : vector<8x8xf32>
    %cst_12 = arith.constant dense<0xFF800000> : vector<8xf32>
    %16 = vector.multi_reduction <maximumf>, %15, %cst_12 [1] : vector<8x8xf32> to vector<8xf32>
    %17 = vector.shape_cast %16 : vector<8xf32> to vector<8x1xf32>
    %18 = vector.broadcast %17 : vector<8x1xf32> to vector<8x8xf32>
    %19 = arith.subf %15, %18 : vector<8x8xf32>
    %20 = math.exp %19 : vector<8x8xf32>
    %cst_13 = arith.constant dense<0.000000e+00> : vector<8xf32>
    %21 = vector.multi_reduction <add>, %20, %cst_13 [1] : vector<8x8xf32> to vector<8xf32>
    %22 = vector.shape_cast %21 : vector<8xf32> to vector<8x1xf32>
    %23 = tpu.reciprocal %22 {approx = true} : vector<8x1xf32> -> vector<8x1xf32>
    %24 = vector.broadcast %23 : vector<8x1xf32> to vector<8x8xf32>
    %25 = arith.mulf %20, %24 : vector<8x8xf32>
    %26 = arith.truncf %25 : vector<8x8xf32> to vector<8x8xbf16>
    %cst_14 = arith.constant dense<0.000000e+00> : vector<8x16xf32>
    %27 = tpu.matmul %26, %10, %cst_14 {dimension_numbers = #tpu.dot_dimension_numbers<[1], [0], [0], [1], [0, 0, 1, 1], [], []>} : vector<8x8xbf16>, vector<8x16xbf16>, vector<8x16xf32> -> vector<8x16xf32>
    %28 = arith.truncf %27 : vector<8x16xf32> to vector<8x16xbf16>
    %c0_15 = arith.constant 0 : index
    %c0_16 = arith.constant 0 : index
    %c0_17 = arith.constant 0 : index
    %29 = vector.load %arg6[%c0_15, %c0_16, %c0_17] : memref<1x8x32xbf16, #tpu.memory_space<vmem>>, vector<1x8x16xbf16>
    %30 = vector.shape_cast %29 : vector<1x8x16xbf16> to vector<8x16xbf16>
    %31 = vector.shape_cast %28 : vector<8x16xbf16> to vector<1x8x16xbf16>
    tpu.vector_store %arg6[%c0_15, %c0_16, %c0_17], %31 {strides = array<i32>} : memref<1x8x32xbf16, #tpu.memory_space<vmem>>, vector<1x8x16xbf16>,
    %32 = vector.extract_strided_slice %3 {offsets = [0, 16], sizes = [8, 16], strides = [1, 1]} : vector<8x32xbf16> to vector<8x16xbf16>
    %33 = vector.extract_strided_slice %5 {offsets = [0, 16], sizes = [8, 16], strides = [1, 1]} : vector<8x32xbf16> to vector<8x16xbf16>
    %34 = vector.extract_strided_slice %7 {offsets = [0, 16], sizes = [8, 16], strides = [1, 1]} : vector<8x32xbf16> to vector<8x16xbf16>
    %cst_18 = arith.constant dense<0.000000e+00> : vector<8x8xf32>
    %35 = tpu.matmul %32, %33, %cst_18 {dimension_numbers = #tpu.dot_dimension_numbers<[1], [1], [0], [0], [0, 0, 1, 0], [], []>} : vector<8x16xbf16>, vector<8x16xbf16>, vector<8x8xf32> -> vector<8x8xf32>
    %cst_19 = arith.constant 2.500000e-01 : f32
    %36 = vector.broadcast %cst_19 : f32 to vector<8x8xf32>
    %37 = arith.mulf %35, %36 : vector<8x8xf32>
    %38 = vector.broadcast %1 : vector<1x8xf32> to vector<8x8xf32>
    %39 = arith.addf %37, %38 : vector<8x8xf32>
    %cst_20 = arith.constant dense<0xFF800000> : vector<8xf32>
    %40 = vector.multi_reduction <maximumf>, %39, %cst_20 [1] : vector<8x8xf32> to vector<8xf32>
    %41 = vector.shape_cast %40 : vector<8xf32> to vector<8x1xf32>
    %42 = vector.broadcast %41 : vector<8x1xf32> to vector<8x8xf32>
    %43 = arith.subf %39, %42 : vector<8x8xf32>
    %44 = math.exp %43 : vector<8x8xf32>
    %cst_21 = arith.constant dense<0.000000e+00> : vector<8xf32>
    %45 = vector.multi_reduction <add>, %44, %cst_21 [1] : vector<8x8xf32> to vector<8xf32>
    %46 = vector.shape_cast %45 : vector<8xf32> to vector<8x1xf32>
    %47 = tpu.reciprocal %46 {approx = true} : vector<8x1xf32> -> vector<8x1xf32>
    %48 = vector.broadcast %47 : vector<8x1xf32> to vector<8x8xf32>
    %49 = arith.mulf %44, %48 : vector<8x8xf32>
    %50 = arith.truncf %49 : vector<8x8xf32> to vector<8x8xbf16>
    %cst_22 = arith.constant dense<0.000000e+00> : vector<8x16xf32>
    %51 = tpu.matmul %50, %34, %cst_22 {dimension_numbers = #tpu.dot_dimension_numbers<[1], [0], [0], [1], [0, 0, 1, 1], [], []>} : vector<8x8xbf16>, vector<8x16xbf16>, vector<8x16xf32> -> vector<8x16xf32>
    %52 = arith.truncf %51 : vector<8x16xf32> to vector<8x16xbf16>
    %c0_23 = arith.constant 0 : index
    %c0_24 = arith.constant 0 : index
    %c16 = arith.constant 16 : index
    %53 = vector.load %arg6[%c0_23, %c0_24, %c16] : memref<1x8x32xbf16, #tpu.memory_space<vmem>>, vector<1x8x16xbf16>
    %54 = vector.shape_cast %53 : vector<1x8x16xbf16> to vector<8x16xbf16>
    %55 = vector.shape_cast %52 : vector<8x16xbf16> to vector<1x8x16xbf16>
    tpu.vector_store %arg6[%c0_23, %c0_24, %c16], %55 {strides = array<i32>} : memref<1x8x32xbf16, #tpu.memory_space<vmem>>, vector<1x8x16xbf16>,
    return
  }
  func.func @transform_0(%arg0: i32, %arg1: i32) -> (i32, i32, i32) {
    %c0_i32 = arith.constant 0 : i32
    %c0_i32_0 = arith.constant 0 : i32
    return %arg0, %c0_i32, %arg1 : i32, i32, i32
  }
  func.func @transform_1(%arg0: i32, %arg1: i32) -> (i32, i32, i32) {
    %c0_i32 = arith.constant 0 : i32
    %c0_i32_0 = arith.constant 0 : i32
    return %arg0, %c0_i32, %arg1 : i32, i32, i32
  }
  func.func @transform_2(%arg0: i32, %arg1: i32) -> (i32, i32, i32) {
    %c0_i32 = arith.constant 0 : i32
    %c0_i32_0 = arith.constant 0 : i32
    return %arg0, %c0_i32, %arg1 : i32, i32, i32
  }
  func.func @transform_3(%arg0: i32, %arg1: i32) -> (i32, i32, i32) {
    %c0_i32 = arith.constant 0 : i32
    %c0_i32_0 = arith.constant 0 : i32
    %c0_i32_1 = arith.constant 0 : i32
    return %arg0, %c0_i32, %c0_i32_0 : i32, i32, i32
  }
  func.func @transform_4(%arg0: i32, %arg1: i32) -> (i32, i32, i32) {
    %c0_i32 = arith.constant 0 : i32
    %c0_i32_0 = arith.constant 0 : i32
    return %arg0, %c0_i32, %arg1 : i32, i32, i32
  }
}

module attributes {stable_mosaic.version = 11 : i64} {
  func.func @_proj_adapter_ln_kernel(%arg0: i32, %arg1: memref<16x32xbf16, #tpu.memory_space<vmem>>, %arg2: memref<16x32xbf16, #tpu.memory_space<vmem>>, %arg3: memref<32x32xbf16, #tpu.memory_space<vmem>>, %arg4: memref<1x32xf32, #tpu.memory_space<vmem>>, %arg5: memref<32x2xbf16, #tpu.memory_space<vmem>>, %arg6: memref<1x2xf32, #tpu.memory_space<vmem>>, %arg7: memref<2x32xbf16, #tpu.memory_space<vmem>>, %arg8: memref<1x32xf32, #tpu.memory_space<vmem>>, %arg9: memref<1x32xf32, #tpu.memory_space<vmem>>, %arg10: memref<1x32xf32, #tpu.memory_space<vmem>>, %arg11: memref<16x32xbf16, #tpu.memory_space<vmem>>) attributes {dimension_semantics = [#tpu.dimension_semantics<parallel>], iteration_bounds = array<i64: 1>, scalar_prefetch = 0 : i64, scratch_operands = 0 : i64, tpu.core_type = #tpu.core_type<tc>, window_params = [{transform_indices = @transform_0, window_bounds = array<i64: 16, 32>}, {transform_indices = @transform_1, window_bounds = array<i64: 16, 32>}, {pipeline_mode = #tpu.pipeline_mode<synchronous>, transform_indices = @transform_2, window_bounds = array<i64: 32, 32>}, {pipeline_mode = #tpu.pipeline_mode<synchronous>, transform_indices = @transform_3, window_bounds = array<i64: 1, 32>}, {pipeline_mode = #tpu.pipeline_mode<synchronous>, transform_indices = @transform_4, window_bounds = array<i64: 32, 2>}, {pipeline_mode = #tpu.pipeline_mode<synchronous>, transform_indices = @transform_5, window_bounds = array<i64: 1, 2>}, {pipeline_mode = #tpu.pipeline_mode<synchronous>, transform_indices = @transform_6, window_bounds = array<i64: 2, 32>}, {pipeline_mode = #tpu.pipeline_mode<synchronous>, transform_indices = @transform_7, window_bounds = array<i64: 1, 32>}, {pipeline_mode = #tpu.pipeline_mode<synchronous>, transform_indices = @transform_8, window_bounds = array<i64: 1, 32>}, {pipeline_mode = #tpu.pipeline_mode<synchronous>, transform_indices = @transform_9, window_bounds = array<i64: 1, 32>}, {transform_indices = @transform_10, window_bounds = array<i64: 16, 32>}]} {
    %c0 = arith.constant 0 : index
    %c0_0 = arith.constant 0 : index
    %0 = vector.load %arg1[%c0, %c0_0] : memref<16x32xbf16, #tpu.memory_space<vmem>>, vector<16x32xbf16>
    %c0_1 = arith.constant 0 : index
    %c0_2 = arith.constant 0 : index
    %1 = vector.load %arg3[%c0_1, %c0_2] : memref<32x32xbf16, #tpu.memory_space<vmem>>, vector<32x32xbf16>
    %cst = arith.constant dense<0.000000e+00> : vector<16x32xf32>
    %2 = tpu.matmul %0, %1, %cst {dimension_numbers = #tpu.dot_dimension_numbers<[1], [0], [0], [1], [0, 0, 1, 1], [], []>} : vector<16x32xbf16>, vector<32x32xbf16>, vector<16x32xf32> -> vector<16x32xf32>
    %c0_3 = arith.constant 0 : index
    %c0_4 = arith.constant 0 : index
    %3 = vector.load %arg4[%c0_3, %c0_4] : memref<1x32xf32, #tpu.memory_space<vmem>>, vector<1x32xf32>
    %4 = vector.broadcast %3 : vector<1x32xf32> to vector<16x32xf32>
    %5 = arith.addf %2, %4 : vector<16x32xf32>
    %6 = arith.truncf %5 : vector<16x32xf32> to vector<16x32xbf16>
    %c0_5 = arith.constant 0 : index
    %c0_6 = arith.constant 0 : index
    %7 = vector.load %arg5[%c0_5, %c0_6] : memref<32x2xbf16, #tpu.memory_space<vmem>>, vector<32x2xbf16>
    %cst_7 = arith.constant dense<0.000000e+00> : vector<16x2xf32>
    %8 = tpu.matmul %6, %7, %cst_7 {dimension_numbers = #tpu.dot_dimension_numbers<[1], [0], [0], [1], [0, 0, 1, 1], [], []>} : vector<16x32xbf16>, vector<32x2xbf16>, vector<16x2xf32> -> vector<16x2xf32>
    %c0_8 = arith.constant 0 : index
    %c0_9 = arith.constant 0 : index
    %9 = vector.load %arg6[%c0_8, %c0_9] : memref<1x2xf32, #tpu.memory_space<vmem>>, vector<1x2xf32>
    %10 = vector.broadcast %9 : vector<1x2xf32> to vector<16x2xf32>
    %11 = arith.addf %8, %10 : vector<16x2xf32>
    %cst_10 = arith.constant 0.000000e+00 : f32
    %12 = vector.broadcast %cst_10 : f32 to vector<16x2xf32>
    %13 = arith.maximumf %11, %12 : vector<16x2xf32>
    %14 = arith.truncf %13 : vector<16x2xf32> to vector<16x2xbf16>
    %c0_11 = arith.constant 0 : index
    %c0_12 = arith.constant 0 : index
    %15 = vector.load %arg7[%c0_11, %c0_12] : memref<2x32xbf16, #tpu.memory_space<vmem>>, vector<2x32xbf16>
    %cst_13 = arith.constant dense<0.000000e+00> : vector<16x32xf32>
    %16 = tpu.matmul %14, %15, %cst_13 {dimension_numbers = #tpu.dot_dimension_numbers<[1], [0], [0], [1], [0, 0, 1, 1], [], []>} : vector<16x2xbf16>, vector<2x32xbf16>, vector<16x32xf32> -> vector<16x32xf32>
    %c0_14 = arith.constant 0 : index
    %c0_15 = arith.constant 0 : index
    %17 = vector.load %arg8[%c0_14, %c0_15] : memref<1x32xf32, #tpu.memory_space<vmem>>, vector<1x32xf32>
    %18 = vector.broadcast %17 : vector<1x32xf32> to vector<16x32xf32>
    %19 = arith.addf %16, %18 : vector<16x32xf32>
    %20 = arith.addf %5, %19 : vector<16x32xf32>
    %c0_16 = arith.constant 0 : index
    %c0_17 = arith.constant 0 : index
    %21 = vector.load %arg2[%c0_16, %c0_17] : memref<16x32xbf16, #tpu.memory_space<vmem>>, vector<16x32xbf16>
    %22 = arith.extf %21 : vector<16x32xbf16> to vector<16x32xf32>
    %23 = arith.addf %20, %22 : vector<16x32xf32>
    %cst_18 = arith.constant dense<0.000000e+00> : vector<16xf32>
    %24 = vector.multi_reduction <add>, %23, %cst_18 [1] : vector<16x32xf32> to vector<16xf32>
    %25 = vector.shape_cast %24 : vector<16xf32> to vector<16x1xf32>
    %cst_19 = arith.constant 3.200000e+01 : f32
    %26 = vector.broadcast %cst_19 : f32 to vector<16x1xf32>
    %27 = arith.divf %25, %26 : vector<16x1xf32>
    %28 = vector.broadcast %27 : vector<16x1xf32> to vector<16x32xf32>
    %29 = arith.subf %23, %28 : vector<16x32xf32>
    %30 = vector.broadcast %27 : vector<16x1xf32> to vector<16x32xf32>
    %31 = arith.subf %23, %30 : vector<16x32xf32>
    %32 = arith.mulf %29, %31 : vector<16x32xf32>
    %cst_20 = arith.constant dense<0.000000e+00> : vector<16xf32>
    %33 = vector.multi_reduction <add>, %32, %cst_20 [1] : vector<16x32xf32> to vector<16xf32>
    %34 = vector.shape_cast %33 : vector<16xf32> to vector<16x1xf32>
    %cst_21 = arith.constant 3.200000e+01 : f32
    %35 = vector.broadcast %cst_21 : f32 to vector<16x1xf32>
    %36 = arith.divf %34, %35 : vector<16x1xf32>
    %37 = vector.broadcast %27 : vector<16x1xf32> to vector<16x32xf32>
    %38 = arith.subf %23, %37 : vector<16x32xf32>
    %cst_22 = arith.constant 9.99999974E-6 : f32
    %39 = vector.broadcast %cst_22 : f32 to vector<16x1xf32>
    %40 = arith.addf %36, %39 : vector<16x1xf32>
    %41 = math.rsqrt %40 : vector<16x1xf32>
    %42 = vector.broadcast %41 : vector<16x1xf32> to vector<16x32xf32>
    %43 = arith.mulf %38, %42 : vector<16x32xf32>
    %c0_23 = arith.constant 0 : index
    %c0_24 = arith.constant 0 : index
    %44 = vector.load %arg9[%c0_23, %c0_24] : memref<1x32xf32, #tpu.memory_space<vmem>>, vector<1x32xf32>
    %45 = vector.broadcast %44 : vector<1x32xf32> to vector<16x32xf32>
    %46 = arith.mulf %43, %45 : vector<16x32xf32>
    %c0_25 = arith.constant 0 : index
    %c0_26 = arith.constant 0 : index
    %47 = vector.load %arg10[%c0_25, %c0_26] : memref<1x32xf32, #tpu.memory_space<vmem>>, vector<1x32xf32>
    %48 = vector.broadcast %47 : vector<1x32xf32> to vector<16x32xf32>
    %49 = arith.addf %46, %48 : vector<16x32xf32>
    %50 = arith.truncf %49 : vector<16x32xf32> to vector<16x32xbf16>
    %c0_27 = arith.constant 0 : index
    %c0_28 = arith.constant 0 : index
    %51 = vector.load %arg11[%c0_27, %c0_28] : memref<16x32xbf16, #tpu.memory_space<vmem>>, vector<16x32xbf16>
    tpu.vector_store %arg11[%c0_27, %c0_28], %50 {strides = array<i32>} : memref<16x32xbf16, #tpu.memory_space<vmem>>, vector<16x32xbf16>,
    return
  }
  func.func @transform_0(%arg0: i32) -> (i32, i32) {
    %c0_i32 = arith.constant 0 : i32
    %c0_i32_0 = arith.constant 0 : i32
    return %arg0, %c0_i32 : i32, i32
  }
  func.func @transform_1(%arg0: i32) -> (i32, i32) {
    %c0_i32 = arith.constant 0 : i32
    %c0_i32_0 = arith.constant 0 : i32
    return %arg0, %c0_i32 : i32, i32
  }
  func.func @transform_2(%arg0: i32) -> (i32, i32) {
    %c0_i32 = arith.constant 0 : i32
    %c0_i32_0 = arith.constant 0 : i32
    %c0_i32_1 = arith.constant 0 : i32
    return %c0_i32, %c0_i32_0 : i32, i32
  }
  func.func @transform_3(%arg0: i32) -> (i32, i32) {
    %c0_i32 = arith.constant 0 : i32
    %c0_i32_0 = arith.constant 0 : i32
    %c0_i32_1 = arith.constant 0 : i32
    return %c0_i32, %c0_i32_0 : i32, i32
  }
  func.func @transform_4(%arg0: i32) -> (i32, i32) {
    %c0_i32 = arith.constant 0 : i32
    %c0_i32_0 = arith.constant 0 : i32
    %c0_i32_1 = arith.constant 0 : i32
    return %c0_i32, %c0_i32_0 : i32, i32
  }
  func.func @transform_5(%arg0: i32) -> (i32, i32) {
    %c0_i32 = arith.constant 0 : i32
    %c0_i32_0 = arith.constant 0 : i32
    %c0_i32_1 = arith.constant 0 : i32
    return %c0_i32, %c0_i32_0 : i32, i32
  }
  func.func @transform_6(%arg0: i32) -> (i32, i32) {
    %c0_i32 = arith.constant 0 : i32
    %c0_i32_0 = arith.constant 0 : i32
    %c0_i32_1 = arith.constant 0 : i32
    return %c0_i32, %c0_i32_0 : i32, i32
  }
  func.func @transform_7(%arg0: i32) -> (i32, i32) {
    %c0_i32 = arith.constant 0 : i32
    %c0_i32_0 = arith.constant 0 : i32
    %c0_i32_1 = arith.constant 0 : i32
    return %c0_i32, %c0_i32_0 : i32, i32
  }
  func.func @transform_8(%arg0: i32) -> (i32, i32) {
    %c0_i32 = arith.constant 0 : i32
    %c0_i32_0 = arith.constant 0 : i32
    %c0_i32_1 = arith.constant 0 : i32
    return %c0_i32, %c0_i32_0 : i32, i32
  }
  func.func @transform_9(%arg0: i32) -> (i32, i32) {
    %c0_i32 = arith.constant 0 : i32
    %c0_i32_0 = arith.constant 0 : i32
    %c0_i32_1 = arith.constant 0 : i32
    return %c0_i32, %c0_i32_0 : i32, i32
  }
  func.func @transform_10(%arg0: i32) -> (i32, i32) {
    %c0_i32 = arith.constant 0 : i32
    %c0_i32_0 = arith.constant 0 : i32
    return %arg0, %c0_i32 : i32, i32
  }
}

module attributes {stable_mosaic.version = 11 : i64} {
  func.func @_proj_adapter_ln_kernel(%arg0: i32, %arg1: memref<16x128xbf16, #tpu.memory_space<vmem>>, %arg2: memref<16x32xbf16, #tpu.memory_space<vmem>>, %arg3: memref<128x32xbf16, #tpu.memory_space<vmem>>, %arg4: memref<1x32xf32, #tpu.memory_space<vmem>>, %arg5: memref<32x2xbf16, #tpu.memory_space<vmem>>, %arg6: memref<1x2xf32, #tpu.memory_space<vmem>>, %arg7: memref<2x32xbf16, #tpu.memory_space<vmem>>, %arg8: memref<1x32xf32, #tpu.memory_space<vmem>>, %arg9: memref<1x32xf32, #tpu.memory_space<vmem>>, %arg10: memref<1x32xf32, #tpu.memory_space<vmem>>, %arg11: memref<16x32xbf16, #tpu.memory_space<vmem>>) attributes {dimension_semantics = [#tpu.dimension_semantics<parallel>], iteration_bounds = array<i64: 1>, scalar_prefetch = 0 : i64, scratch_operands = 0 : i64, tpu.core_type = #tpu.core_type<tc>, window_params = [{transform_indices = @transform_0, window_bounds = array<i64: 16, 128>}, {transform_indices = @transform_1, window_bounds = array<i64: 16, 32>}, {pipeline_mode = #tpu.pipeline_mode<synchronous>, transform_indices = @transform_2, window_bounds = array<i64: 128, 32>}, {pipeline_mode = #tpu.pipeline_mode<synchronous>, transform_indices = @transform_3, window_bounds = array<i64: 1, 32>}, {pipeline_mode = #tpu.pipeline_mode<synchronous>, transform_indices = @transform_4, window_bounds = array<i64: 32, 2>}, {pipeline_mode = #tpu.pipeline_mode<synchronous>, transform_indices = @transform_5, window_bounds = array<i64: 1, 2>}, {pipeline_mode = #tpu.pipeline_mode<synchronous>, transform_indices = @transform_6, window_bounds = array<i64: 2, 32>}, {pipeline_mode = #tpu.pipeline_mode<synchronous>, transform_indices = @transform_7, window_bounds = array<i64: 1, 32>}, {pipeline_mode = #tpu.pipeline_mode<synchronous>, transform_indices = @transform_8, window_bounds = array<i64: 1, 32>}, {pipeline_mode = #tpu.pipeline_mode<synchronous>, transform_indices = @transform_9, window_bounds = array<i64: 1, 32>}, {transform_indices = @transform_10, window_bounds = array<i64: 16, 32>}]} {
    %c0 = arith.constant 0 : index
    %c0_0 = arith.constant 0 : index
    %0 = vector.load %arg1[%c0, %c0_0] : memref<16x128xbf16, #tpu.memory_space<vmem>>, vector<16x128xbf16>
    %c0_1 = arith.constant 0 : index
    %c0_2 = arith.constant 0 : index
    %1 = vector.load %arg3[%c0_1, %c0_2] : memref<128x32xbf16, #tpu.memory_space<vmem>>, vector<128x32xbf16>
    %cst = arith.constant dense<0.000000e+00> : vector<16x32xf32>
    %2 = tpu.matmul %0, %1, %cst {dimension_numbers = #tpu.dot_dimension_numbers<[1], [0], [0], [1], [0, 0, 1, 1], [], []>} : vector<16x128xbf16>, vector<128x32xbf16>, vector<16x32xf32> -> vector<16x32xf32>
    %c0_3 = arith.constant 0 : index
    %c0_4 = arith.constant 0 : index
    %3 = vector.load %arg4[%c0_3, %c0_4] : memref<1x32xf32, #tpu.memory_space<vmem>>, vector<1x32xf32>
    %4 = vector.broadcast %3 : vector<1x32xf32> to vector<16x32xf32>
    %5 = arith.addf %2, %4 : vector<16x32xf32>
    %6 = arith.truncf %5 : vector<16x32xf32> to vector<16x32xbf16>
    %c0_5 = arith.constant 0 : index
    %c0_6 = arith.constant 0 : index
    %7 = vector.load %arg5[%c0_5, %c0_6] : memref<32x2xbf16, #tpu.memory_space<vmem>>, vector<32x2xbf16>
    %cst_7 = arith.constant dense<0.000000e+00> : vector<16x2xf32>
    %8 = tpu.matmul %6, %7, %cst_7 {dimension_numbers = #tpu.dot_dimension_numbers<[1], [0], [0], [1], [0, 0, 1, 1], [], []>} : vector<16x32xbf16>, vector<32x2xbf16>, vector<16x2xf32> -> vector<16x2xf32>
    %c0_8 = arith.constant 0 : index
    %c0_9 = arith.constant 0 : index
    %9 = vector.load %arg6[%c0_8, %c0_9] : memref<1x2xf32, #tpu.memory_space<vmem>>, vector<1x2xf32>
    %10 = vector.broadcast %9 : vector<1x2xf32> to vector<16x2xf32>
    %11 = arith.addf %8, %10 : vector<16x2xf32>
    %cst_10 = arith.constant 0.000000e+00 : f32
    %12 = vector.broadcast %cst_10 : f32 to vector<16x2xf32>
    %13 = arith.maximumf %11, %12 : vector<16x2xf32>
    %14 = arith.truncf %13 : vector<16x2xf32> to vector<16x2xbf16>
    %c0_11 = arith.constant 0 : index
    %c0_12 = arith.constant 0 : index
    %15 = vector.load %arg7[%c0_11, %c0_12] : memref<2x32xbf16, #tpu.memory_space<vmem>>, vector<2x32xbf16>
    %cst_13 = arith.constant dense<0.000000e+00> : vector<16x32xf32>
    %16 = tpu.matmul %14, %15, %cst_13 {dimension_numbers = #tpu.dot_dimension_numbers<[1], [0], [0], [1], [0, 0, 1, 1], [], []>} : vector<16x2xbf16>, vector<2x32xbf16>, vector<16x32xf32> -> vector<16x32xf32>
    %c0_14 = arith.constant 0 : index
    %c0_15 = arith.constant 0 : index
    %17 = vector.load %arg8[%c0_14, %c0_15] : memref<1x32xf32, #tpu.memory_space<vmem>>, vector<1x32xf32>
    %18 = vector.broadcast %17 : vector<1x32xf32> to vector<16x32xf32>
    %19 = arith.addf %16, %18 : vector<16x32xf32>
    %20 = arith.addf %5, %19 : vector<16x32xf32>
    %c0_16 = arith.constant 0 : index
    %c0_17 = arith.constant 0 : index
    %21 = vector.load %arg2[%c0_16, %c0_17] : memref<16x32xbf16, #tpu.memory_space<vmem>>, vector<16x32xbf16>
    %22 = arith.extf %21 : vector<16x32xbf16> to vector<16x32xf32>
    %23 = arith.addf %20, %22 : vector<16x32xf32>
    %cst_18 = arith.constant dense<0.000000e+00> : vector<16xf32>
    %24 = vector.multi_reduction <add>, %23, %cst_18 [1] : vector<16x32xf32> to vector<16xf32>
    %25 = vector.shape_cast %24 : vector<16xf32> to vector<16x1xf32>
    %cst_19 = arith.constant 3.200000e+01 : f32
    %26 = vector.broadcast %cst_19 : f32 to vector<16x1xf32>
    %27 = arith.divf %25, %26 : vector<16x1xf32>
    %28 = vector.broadcast %27 : vector<16x1xf32> to vector<16x32xf32>
    %29 = arith.subf %23, %28 : vector<16x32xf32>
    %30 = vector.broadcast %27 : vector<16x1xf32> to vector<16x32xf32>
    %31 = arith.subf %23, %30 : vector<16x32xf32>
    %32 = arith.mulf %29, %31 : vector<16x32xf32>
    %cst_20 = arith.constant dense<0.000000e+00> : vector<16xf32>
    %33 = vector.multi_reduction <add>, %32, %cst_20 [1] : vector<16x32xf32> to vector<16xf32>
    %34 = vector.shape_cast %33 : vector<16xf32> to vector<16x1xf32>
    %cst_21 = arith.constant 3.200000e+01 : f32
    %35 = vector.broadcast %cst_21 : f32 to vector<16x1xf32>
    %36 = arith.divf %34, %35 : vector<16x1xf32>
    %37 = vector.broadcast %27 : vector<16x1xf32> to vector<16x32xf32>
    %38 = arith.subf %23, %37 : vector<16x32xf32>
    %cst_22 = arith.constant 9.99999974E-6 : f32
    %39 = vector.broadcast %cst_22 : f32 to vector<16x1xf32>
    %40 = arith.addf %36, %39 : vector<16x1xf32>
    %41 = math.rsqrt %40 : vector<16x1xf32>
    %42 = vector.broadcast %41 : vector<16x1xf32> to vector<16x32xf32>
    %43 = arith.mulf %38, %42 : vector<16x32xf32>
    %c0_23 = arith.constant 0 : index
    %c0_24 = arith.constant 0 : index
    %44 = vector.load %arg9[%c0_23, %c0_24] : memref<1x32xf32, #tpu.memory_space<vmem>>, vector<1x32xf32>
    %45 = vector.broadcast %44 : vector<1x32xf32> to vector<16x32xf32>
    %46 = arith.mulf %43, %45 : vector<16x32xf32>
    %c0_25 = arith.constant 0 : index
    %c0_26 = arith.constant 0 : index
    %47 = vector.load %arg10[%c0_25, %c0_26] : memref<1x32xf32, #tpu.memory_space<vmem>>, vector<1x32xf32>
    %48 = vector.broadcast %47 : vector<1x32xf32> to vector<16x32xf32>
    %49 = arith.addf %46, %48 : vector<16x32xf32>
    %50 = arith.truncf %49 : vector<16x32xf32> to vector<16x32xbf16>
    %c0_27 = arith.constant 0 : index
    %c0_28 = arith.constant 0 : index
    %51 = vector.load %arg11[%c0_27, %c0_28] : memref<16x32xbf16, #tpu.memory_space<vmem>>, vector<16x32xbf16>
    tpu.vector_store %arg11[%c0_27, %c0_28], %50 {strides = array<i32>} : memref<16x32xbf16, #tpu.memory_space<vmem>>, vector<16x32xbf16>,
    return
  }
  func.func @transform_0(%arg0: i32) -> (i32, i32) {
    %c0_i32 = arith.constant 0 : i32
    %c0_i32_0 = arith.constant 0 : i32
    return %arg0, %c0_i32 : i32, i32
  }
  func.func @transform_1(%arg0: i32) -> (i32, i32) {
    %c0_i32 = arith.constant 0 : i32
    %c0_i32_0 = arith.constant 0 : i32
    return %arg0, %c0_i32 : i32, i32
  }
  func.func @transform_2(%arg0: i32) -> (i32, i32) {
    %c0_i32 = arith.constant 0 : i32
    %c0_i32_0 = arith.constant 0 : i32
    %c0_i32_1 = arith.constant 0 : i32
    return %c0_i32, %c0_i32_0 : i32, i32
  }
  func.func @transform_3(%arg0: i32) -> (i32, i32) {
    %c0_i32 = arith.constant 0 : i32
    %c0_i32_0 = arith.constant 0 : i32
    %c0_i32_1 = arith.constant 0 : i32
    return %c0_i32, %c0_i32_0 : i32, i32
  }
  func.func @transform_4(%arg0: i32) -> (i32, i32) {
    %c0_i32 = arith.constant 0 : i32
    %c0_i32_0 = arith.constant 0 : i32
    %c0_i32_1 = arith.constant 0 : i32
    return %c0_i32, %c0_i32_0 : i32, i32
  }
  func.func @transform_5(%arg0: i32) -> (i32, i32) {
    %c0_i32 = arith.constant 0 : i32
    %c0_i32_0 = arith.constant 0 : i32
    %c0_i32_1 = arith.constant 0 : i32
    return %c0_i32, %c0_i32_0 : i32, i32
  }
  func.func @transform_6(%arg0: i32) -> (i32, i32) {
    %c0_i32 = arith.constant 0 : i32
    %c0_i32_0 = arith.constant 0 : i32
    %c0_i32_1 = arith.constant 0 : i32
    return %c0_i32, %c0_i32_0 : i32, i32
  }
  func.func @transform_7(%arg0: i32) -> (i32, i32) {
    %c0_i32 = arith.constant 0 : i32
    %c0_i32_0 = arith.constant 0 : i32
    %c0_i32_1 = arith.constant 0 : i32
    return %c0_i32, %c0_i32_0 : i32, i32
  }
  func.func @transform_8(%arg0: i32) -> (i32, i32) {
    %c0_i32 = arith.constant 0 : i32
    %c0_i32_0 = arith.constant 0 : i32
    %c0_i32_1 = arith.constant 0 : i32
    return %c0_i32, %c0_i32_0 : i32, i32
  }
  func.func @transform_9(%arg0: i32) -> (i32, i32) {
    %c0_i32 = arith.constant 0 : i32
    %c0_i32_0 = arith.constant 0 : i32
    %c0_i32_1 = arith.constant 0 : i32
    return %c0_i32, %c0_i32_0 : i32, i32
  }
  func.func @transform_10(%arg0: i32) -> (i32, i32) {
    %c0_i32 = arith.constant 0 : i32
    %c0_i32_0 = arith.constant 0 : i32
    return %arg0, %c0_i32 : i32, i32
  }
}

module attributes {stable_mosaic.version = 11 : i64} {
  func.func @_dense_kernel(%arg0: i32, %arg1: i32, %arg2: i32, %arg3: memref<16x32xbf16, #tpu.memory_space<vmem>>, %arg4: memref<32x32xbf16, #tpu.memory_space<vmem>>, %arg5: memref<1x32xf32, #tpu.memory_space<vmem>>, %arg6: memref<16x32xbf16, #tpu.memory_space<vmem>>, %arg7: memref<16x32xf32, #tpu.memory_space<vmem>>) attributes {dimension_semantics = [#tpu.dimension_semantics<parallel>, #tpu.dimension_semantics<parallel>, #tpu.dimension_semantics<arbitrary>], iteration_bounds = array<i64: 1, 1, 1>, scalar_prefetch = 0 : i64, scratch_operands = 1 : i64, tpu.core_type = #tpu.core_type<tc>, window_params = [{transform_indices = @transform_0, window_bounds = array<i64: 16, 32>}, {transform_indices = @transform_1, window_bounds = array<i64: 32, 32>}, {transform_indices = @transform_2, window_bounds = array<i64: 1, 32>}, {transform_indices = @transform_3, window_bounds = array<i64: 16, 32>}]} {
    %c0_i32 = arith.constant 0 : i32
    %0 = arith.cmpi eq, %arg2, %c0_i32 : i32
    %1 = arith.extui %0 : i1 to i32
    %c0_i32_0 = arith.constant 0 : i32
    %2 = arith.cmpi ne, %1, %c0_i32_0 : i32
    scf.if %2 {
      %cst_10 = arith.constant 0.000000e+00 : f32
      %12 = vector.broadcast %cst_10 : f32 to vector<16x32xf32>
      %c0_11 = arith.constant 0 : index
      %c0_12 = arith.constant 0 : index
      %13 = vector.load %arg7[%c0_11, %c0_12] : memref<16x32xf32, #tpu.memory_space<vmem>>, vector<16x32xf32>
      tpu.vector_store %arg7[%c0_11, %c0_12], %12 {strides = array<i32>} : memref<16x32xf32, #tpu.memory_space<vmem>>, vector<16x32xf32>,
    } else {
    }
    %c0 = arith.constant 0 : index
    %c0_1 = arith.constant 0 : index
    %3 = vector.load %arg7[%c0, %c0_1] : memref<16x32xf32, #tpu.memory_space<vmem>>, vector<16x32xf32>
    %c0_2 = arith.constant 0 : index
    %c0_3 = arith.constant 0 : index
    %4 = vector.load %arg3[%c0_2, %c0_3] : memref<16x32xbf16, #tpu.memory_space<vmem>>, vector<16x32xbf16>
    %c0_4 = arith.constant 0 : index
    %c0_5 = arith.constant 0 : index
    %5 = vector.load %arg4[%c0_4, %c0_5] : memref<32x32xbf16, #tpu.memory_space<vmem>>, vector<32x32xbf16>
    %cst = arith.constant dense<0.000000e+00> : vector<16x32xf32>
    %6 = tpu.matmul %4, %5, %cst {dimension_numbers = #tpu.dot_dimension_numbers<[1], [0], [0], [1], [0, 0, 1, 1], [], []>} : vector<16x32xbf16>, vector<32x32xbf16>, vector<16x32xf32> -> vector<16x32xf32>
    %7 = arith.addf %3, %6 : vector<16x32xf32>
    %c0_6 = arith.constant 0 : index
    %c0_7 = arith.constant 0 : index
    %8 = vector.load %arg7[%c0_6, %c0_7] : memref<16x32xf32, #tpu.memory_space<vmem>>, vector<16x32xf32>
    tpu.vector_store %arg7[%c0_6, %c0_7], %7 {strides = array<i32>} : memref<16x32xf32, #tpu.memory_space<vmem>>, vector<16x32xf32>,
    %c0_i32_8 = arith.constant 0 : i32
    %9 = arith.cmpi eq, %arg2, %c0_i32_8 : i32
    %10 = arith.extui %9 : i1 to i32
    %c0_i32_9 = arith.constant 0 : i32
    %11 = arith.cmpi ne, %10, %c0_i32_9 : i32
    scf.if %11 {
      %c0_10 = arith.constant 0 : index
      %c0_11 = arith.constant 0 : index
      %12 = vector.load %arg7[%c0_10, %c0_11] : memref<16x32xf32, #tpu.memory_space<vmem>>, vector<16x32xf32>
      %c0_12 = arith.constant 0 : index
      %c0_13 = arith.constant 0 : index
      %13 = vector.load %arg5[%c0_12, %c0_13] : memref<1x32xf32, #tpu.memory_space<vmem>>, vector<1x32xf32>
      %14 = vector.broadcast %13 : vector<1x32xf32> to vector<16x32xf32>
      %15 = arith.addf %12, %14 : vector<16x32xf32>
      %cst_14 = arith.constant 5.000000e-01 : f32
      %16 = vector.broadcast %cst_14 : f32 to vector<16x32xf32>
      %17 = arith.mulf %16, %15 : vector<16x32xf32>
      %cst_15 = arith.constant 4.471500e-02 : f32
      %18 = vector.broadcast %cst_15 : f32 to vector<16x32xf32>
      %19 = arith.mulf %18, %15 : vector<16x32xf32>
      %20 = arith.mulf %19, %15 : vector<16x32xf32>
      %21 = arith.mulf %20, %15 : vector<16x32xf32>
      %22 = arith.addf %15, %21 : vector<16x32xf32>
      %cst_16 = arith.constant 0.797884583 : f32
      %23 = vector.broadcast %cst_16 : f32 to vector<16x32xf32>
      %24 = arith.mulf %23, %22 : vector<16x32xf32>
      %25 = math.tanh %24 : vector<16x32xf32>
      %cst_17 = arith.constant 1.000000e+00 : f32
      %26 = vector.broadcast %cst_17 : f32 to vector<16x32xf32>
      %27 = arith.addf %26, %25 : vector<16x32xf32>
      %28 = arith.mulf %17, %27 : vector<16x32xf32>
      %29 = arith.truncf %28 : vector<16x32xf32> to vector<16x32xbf16>
      %c0_18 = arith.constant 0 : index
      %c0_19 = arith.constant 0 : index
      %30 = vector.load %arg6[%c0_18, %c0_19] : memref<16x32xbf16, #tpu.memory_space<vmem>>, vector<16x32xbf16>
      tpu.vector_store %arg6[%c0_18, %c0_19], %29 {strides = array<i32>} : memref<16x32xbf16, #tpu.memory_space<vmem>>, vector<16x32xbf16>,
    } else {
    }
    return
  }
  func.func @transform_0(%arg0: i32, %arg1: i32, %arg2: i32) -> (i32, i32) {
    %c0_i32 = arith.constant 0 : i32
    return %arg0, %arg2 : i32, i32
  }
  func.func @transform_1(%arg0: i32, %arg1: i32, %arg2: i32) -> (i32, i32) {
    %c0_i32 = arith.constant 0 : i32
    return %arg2, %arg1 : i32, i32
  }
  func.func @transform_2(%arg0: i32, %arg1: i32, %arg2: i32) -> (i32, i32) {
    %c0_i32 = arith.constant 0 : i32
    %c0_i32_0 = arith.constant 0 : i32
    return %c0_i32, %arg1 : i32, i32
  }
  func.func @transform_3(%arg0: i32, %arg1: i32, %arg2: i32) -> (i32, i32) {
    %c0_i32 = arith.constant 0 : i32
    return %arg0, %arg1 : i32, i32
  }
}

module attributes {stable_mosaic.version = 11 : i64} {
  func.func @_dense_kernel(%arg0: i32, %arg1: i32, %arg2: i32, %arg3: memref<16x32xbf16, #tpu.memory_space<vmem>>, %arg4: memref<32x128xbf16, #tpu.memory_space<vmem>>, %arg5: memref<1x128xf32, #tpu.memory_space<vmem>>, %arg6: memref<16x128xbf16, #tpu.memory_space<vmem>>, %arg7: memref<16x128xf32, #tpu.memory_space<vmem>>) attributes {dimension_semantics = [#tpu.dimension_semantics<parallel>, #tpu.dimension_semantics<parallel>, #tpu.dimension_semantics<arbitrary>], iteration_bounds = array<i64: 1, 1, 1>, scalar_prefetch = 0 : i64, scratch_operands = 1 : i64, tpu.core_type = #tpu.core_type<tc>, window_params = [{transform_indices = @transform_0, window_bounds = array<i64: 16, 32>}, {transform_indices = @transform_1, window_bounds = array<i64: 32, 128>}, {transform_indices = @transform_2, window_bounds = array<i64: 1, 128>}, {transform_indices = @transform_3, window_bounds = array<i64: 16, 128>}]} {
    %c0_i32 = arith.constant 0 : i32
    %0 = arith.cmpi eq, %arg2, %c0_i32 : i32
    %1 = arith.extui %0 : i1 to i32
    %c0_i32_0 = arith.constant 0 : i32
    %2 = arith.cmpi ne, %1, %c0_i32_0 : i32
    scf.if %2 {
      %cst_10 = arith.constant 0.000000e+00 : f32
      %12 = vector.broadcast %cst_10 : f32 to vector<16x128xf32>
      %c0_11 = arith.constant 0 : index
      %c0_12 = arith.constant 0 : index
      %13 = vector.load %arg7[%c0_11, %c0_12] : memref<16x128xf32, #tpu.memory_space<vmem>>, vector<16x128xf32>
      tpu.vector_store %arg7[%c0_11, %c0_12], %12 {strides = array<i32>} : memref<16x128xf32, #tpu.memory_space<vmem>>, vector<16x128xf32>,
    } else {
    }
    %c0 = arith.constant 0 : index
    %c0_1 = arith.constant 0 : index
    %3 = vector.load %arg7[%c0, %c0_1] : memref<16x128xf32, #tpu.memory_space<vmem>>, vector<16x128xf32>
    %c0_2 = arith.constant 0 : index
    %c0_3 = arith.constant 0 : index
    %4 = vector.load %arg3[%c0_2, %c0_3] : memref<16x32xbf16, #tpu.memory_space<vmem>>, vector<16x32xbf16>
    %c0_4 = arith.constant 0 : index
    %c0_5 = arith.constant 0 : index
    %5 = vector.load %arg4[%c0_4, %c0_5] : memref<32x128xbf16, #tpu.memory_space<vmem>>, vector<32x128xbf16>
    %cst = arith.constant dense<0.000000e+00> : vector<16x128xf32>
    %6 = tpu.matmul %4, %5, %cst {dimension_numbers = #tpu.dot_dimension_numbers<[1], [0], [0], [1], [0, 0, 1, 1], [], []>} : vector<16x32xbf16>, vector<32x128xbf16>, vector<16x128xf32> -> vector<16x128xf32>
    %7 = arith.addf %3, %6 : vector<16x128xf32>
    %c0_6 = arith.constant 0 : index
    %c0_7 = arith.constant 0 : index
    %8 = vector.load %arg7[%c0_6, %c0_7] : memref<16x128xf32, #tpu.memory_space<vmem>>, vector<16x128xf32>
    tpu.vector_store %arg7[%c0_6, %c0_7], %7 {strides = array<i32>} : memref<16x128xf32, #tpu.memory_space<vmem>>, vector<16x128xf32>,
    %c0_i32_8 = arith.constant 0 : i32
    %9 = arith.cmpi eq, %arg2, %c0_i32_8 : i32
    %10 = arith.extui %9 : i1 to i32
    %c0_i32_9 = arith.constant 0 : i32
    %11 = arith.cmpi ne, %10, %c0_i32_9 : i32
    scf.if %11 {
      %c0_10 = arith.constant 0 : index
      %c0_11 = arith.constant 0 : index
      %12 = vector.load %arg7[%c0_10, %c0_11] : memref<16x128xf32, #tpu.memory_space<vmem>>, vector<16x128xf32>
      %c0_12 = arith.constant 0 : index
      %c0_13 = arith.constant 0 : index
      %13 = vector.load %arg5[%c0_12, %c0_13] : memref<1x128xf32, #tpu.memory_space<vmem>>, vector<1x128xf32>
      %14 = vector.broadcast %13 : vector<1x128xf32> to vector<16x128xf32>
      %15 = arith.addf %12, %14 : vector<16x128xf32>
      %cst_14 = arith.constant 5.000000e-01 : f32
      %16 = vector.broadcast %cst_14 : f32 to vector<16x128xf32>
      %17 = arith.mulf %16, %15 : vector<16x128xf32>
      %cst_15 = arith.constant 4.471500e-02 : f32
      %18 = vector.broadcast %cst_15 : f32 to vector<16x128xf32>
      %19 = arith.mulf %18, %15 : vector<16x128xf32>
      %20 = arith.mulf %19, %15 : vector<16x128xf32>
      %21 = arith.mulf %20, %15 : vector<16x128xf32>
      %22 = arith.addf %15, %21 : vector<16x128xf32>
      %cst_16 = arith.constant 0.797884583 : f32
      %23 = vector.broadcast %cst_16 : f32 to vector<16x128xf32>
      %24 = arith.mulf %23, %22 : vector<16x128xf32>
      %25 = math.tanh %24 : vector<16x128xf32>
      %cst_17 = arith.constant 1.000000e+00 : f32
      %26 = vector.broadcast %cst_17 : f32 to vector<16x128xf32>
      %27 = arith.addf %26, %25 : vector<16x128xf32>
      %28 = arith.mulf %17, %27 : vector<16x128xf32>
      %29 = arith.truncf %28 : vector<16x128xf32> to vector<16x128xbf16>
      %c0_18 = arith.constant 0 : index
      %c0_19 = arith.constant 0 : index
      %30 = vector.load %arg6[%c0_18, %c0_19] : memref<16x128xbf16, #tpu.memory_space<vmem>>, vector<16x128xbf16>
      tpu.vector_store %arg6[%c0_18, %c0_19], %29 {strides = array<i32>} : memref<16x128xbf16, #tpu.memory_space<vmem>>, vector<16x128xbf16>,
    } else {
    }
    return
  }
  func.func @transform_0(%arg0: i32, %arg1: i32, %arg2: i32) -> (i32, i32) {
    %c0_i32 = arith.constant 0 : i32
    return %arg0, %arg2 : i32, i32
  }
  func.func @transform_1(%arg0: i32, %arg1: i32, %arg2: i32) -> (i32, i32) {
    %c0_i32 = arith.constant 0 : i32
    return %arg2, %arg1 : i32, i32
  }
  func.func @transform_2(%arg0: i32, %arg1: i32, %arg2: i32) -> (i32, i32) {
    %c0_i32 = arith.constant 0 : i32
    %c0_i32_0 = arith.constant 0 : i32
    return %c0_i32, %arg1 : i32, i32
  }
  func.func @transform_3(%arg0: i32, %arg1: i32, %arg2: i32) -> (i32, i32) {
    %c0_i32 = arith.constant 0 : i32
    return %arg0, %arg1 : i32, i32
  }
}

module attributes {stable_mosaic.version = 11 : i64} {
  func.func @_ln_kernel(%arg0: i32, %arg1: memref<16x32xbf16, #tpu.memory_space<vmem>>, %arg2: memref<1x32xf32, #tpu.memory_space<vmem>>, %arg3: memref<1x32xf32, #tpu.memory_space<vmem>>, %arg4: memref<16x32xbf16, #tpu.memory_space<vmem>>) attributes {dimension_semantics = [#tpu.dimension_semantics<parallel>], iteration_bounds = array<i64: 1>, scalar_prefetch = 0 : i64, scratch_operands = 0 : i64, tpu.core_type = #tpu.core_type<tc>, window_params = [{transform_indices = @transform_0, window_bounds = array<i64: 16, 32>}, {pipeline_mode = #tpu.pipeline_mode<synchronous>, transform_indices = @transform_1, window_bounds = array<i64: 1, 32>}, {pipeline_mode = #tpu.pipeline_mode<synchronous>, transform_indices = @transform_2, window_bounds = array<i64: 1, 32>}, {transform_indices = @transform_3, window_bounds = array<i64: 16, 32>}]} {
    %c0 = arith.constant 0 : index
    %c0_0 = arith.constant 0 : index
    %0 = vector.load %arg1[%c0, %c0_0] : memref<16x32xbf16, #tpu.memory_space<vmem>>, vector<16x32xbf16>
    %1 = arith.extf %0 : vector<16x32xbf16> to vector<16x32xf32>
    %cst = arith.constant dense<0.000000e+00> : vector<16xf32>
    %2 = vector.multi_reduction <add>, %1, %cst [1] : vector<16x32xf32> to vector<16xf32>
    %3 = vector.shape_cast %2 : vector<16xf32> to vector<16x1xf32>
    %cst_1 = arith.constant 3.200000e+01 : f32
    %4 = vector.broadcast %cst_1 : f32 to vector<16x1xf32>
    %5 = arith.divf %3, %4 : vector<16x1xf32>
    %6 = vector.broadcast %5 : vector<16x1xf32> to vector<16x32xf32>
    %7 = arith.subf %1, %6 : vector<16x32xf32>
    %8 = vector.broadcast %5 : vector<16x1xf32> to vector<16x32xf32>
    %9 = arith.subf %1, %8 : vector<16x32xf32>
    %10 = arith.mulf %7, %9 : vector<16x32xf32>
    %cst_2 = arith.constant dense<0.000000e+00> : vector<16xf32>
    %11 = vector.multi_reduction <add>, %10, %cst_2 [1] : vector<16x32xf32> to vector<16xf32>
    %12 = vector.shape_cast %11 : vector<16xf32> to vector<16x1xf32>
    %cst_3 = arith.constant 3.200000e+01 : f32
    %13 = vector.broadcast %cst_3 : f32 to vector<16x1xf32>
    %14 = arith.divf %12, %13 : vector<16x1xf32>
    %15 = vector.broadcast %5 : vector<16x1xf32> to vector<16x32xf32>
    %16 = arith.subf %1, %15 : vector<16x32xf32>
    %cst_4 = arith.constant 9.99999974E-6 : f32
    %17 = vector.broadcast %cst_4 : f32 to vector<16x1xf32>
    %18 = arith.addf %14, %17 : vector<16x1xf32>
    %19 = math.rsqrt %18 : vector<16x1xf32>
    %20 = vector.broadcast %19 : vector<16x1xf32> to vector<16x32xf32>
    %21 = arith.mulf %16, %20 : vector<16x32xf32>
    %c0_5 = arith.constant 0 : index
    %c0_6 = arith.constant 0 : index
    %22 = vector.load %arg2[%c0_5, %c0_6] : memref<1x32xf32, #tpu.memory_space<vmem>>, vector<1x32xf32>
    %23 = vector.broadcast %22 : vector<1x32xf32> to vector<16x32xf32>
    %24 = arith.mulf %21, %23 : vector<16x32xf32>
    %c0_7 = arith.constant 0 : index
    %c0_8 = arith.constant 0 : index
    %25 = vector.load %arg3[%c0_7, %c0_8] : memref<1x32xf32, #tpu.memory_space<vmem>>, vector<1x32xf32>
    %26 = vector.broadcast %25 : vector<1x32xf32> to vector<16x32xf32>
    %27 = arith.addf %24, %26 : vector<16x32xf32>
    %28 = arith.truncf %27 : vector<16x32xf32> to vector<16x32xbf16>
    %c0_9 = arith.constant 0 : index
    %c0_10 = arith.constant 0 : index
    %29 = vector.load %arg4[%c0_9, %c0_10] : memref<16x32xbf16, #tpu.memory_space<vmem>>, vector<16x32xbf16>
    tpu.vector_store %arg4[%c0_9, %c0_10], %28 {strides = array<i32>} : memref<16x32xbf16, #tpu.memory_space<vmem>>, vector<16x32xbf16>,
    return
  }
  func.func @transform_0(%arg0: i32) -> (i32, i32) {
    %c0_i32 = arith.constant 0 : i32
    %c0_i32_0 = arith.constant 0 : i32
    return %arg0, %c0_i32 : i32, i32
  }
  func.func @transform_1(%arg0: i32) -> (i32, i32) {
    %c0_i32 = arith.constant 0 : i32
    %c0_i32_0 = arith.constant 0 : i32
    %c0_i32_1 = arith.constant 0 : i32
    return %c0_i32, %c0_i32_0 : i32, i32
  }
  func.func @transform_2(%arg0: i32) -> (i32, i32) {
    %c0_i32 = arith.constant 0 : i32
    %c0_i32_0 = arith.constant 0 : i32
    %c0_i32_1 = arith.constant 0 : i32
    return %c0_i32, %c0_i32_0 : i32, i32
  }
  func.func @transform_3(%arg0: i32) -> (i32, i32) {
    %c0_i32 = arith.constant 0 : i32
    %c0_i32_0 = arith.constant 0 : i32
    return %arg0, %c0_i32 : i32, i32
  }
}

module attributes {stable_mosaic.version = 11 : i64} {
  func.func @_dense_nt_kernel(%arg0: i32, %arg1: i32, %arg2: i32, %arg3: memref<16x32xbf16, #tpu.memory_space<vmem>>, %arg4: memref<64x32xbf16, #tpu.memory_space<vmem>>, %arg5: memref<1x64xf32, #tpu.memory_space<vmem>>, %arg6: memref<16x64xf32, #tpu.memory_space<vmem>>, %arg7: memref<16x64xf32, #tpu.memory_space<vmem>>) attributes {dimension_semantics = [#tpu.dimension_semantics<parallel>, #tpu.dimension_semantics<parallel>, #tpu.dimension_semantics<arbitrary>], iteration_bounds = array<i64: 1, 1, 1>, scalar_prefetch = 0 : i64, scratch_operands = 1 : i64, tpu.core_type = #tpu.core_type<tc>, window_params = [{transform_indices = @transform_0, window_bounds = array<i64: 16, 32>}, {transform_indices = @transform_1, window_bounds = array<i64: 64, 32>}, {transform_indices = @transform_2, window_bounds = array<i64: 1, 64>}, {transform_indices = @transform_3, window_bounds = array<i64: 16, 64>}]} {
    %c0_i32 = arith.constant 0 : i32
    %0 = arith.cmpi eq, %arg2, %c0_i32 : i32
    %1 = arith.extui %0 : i1 to i32
    %c0_i32_0 = arith.constant 0 : i32
    %2 = arith.cmpi ne, %1, %c0_i32_0 : i32
    scf.if %2 {
      %cst_10 = arith.constant 0.000000e+00 : f32
      %12 = vector.broadcast %cst_10 : f32 to vector<16x64xf32>
      %c0_11 = arith.constant 0 : index
      %c0_12 = arith.constant 0 : index
      %13 = vector.load %arg7[%c0_11, %c0_12] : memref<16x64xf32, #tpu.memory_space<vmem>>, vector<16x64xf32>
      tpu.vector_store %arg7[%c0_11, %c0_12], %12 {strides = array<i32>} : memref<16x64xf32, #tpu.memory_space<vmem>>, vector<16x64xf32>,
    } else {
    }
    %c0 = arith.constant 0 : index
    %c0_1 = arith.constant 0 : index
    %3 = vector.load %arg7[%c0, %c0_1] : memref<16x64xf32, #tpu.memory_space<vmem>>, vector<16x64xf32>
    %c0_2 = arith.constant 0 : index
    %c0_3 = arith.constant 0 : index
    %4 = vector.load %arg3[%c0_2, %c0_3] : memref<16x32xbf16, #tpu.memory_space<vmem>>, vector<16x32xbf16>
    %c0_4 = arith.constant 0 : index
    %c0_5 = arith.constant 0 : index
    %5 = vector.load %arg4[%c0_4, %c0_5] : memref<64x32xbf16, #tpu.memory_space<vmem>>, vector<64x32xbf16>
    %cst = arith.constant dense<0.000000e+00> : vector<16x64xf32>
    %6 = tpu.matmul %4, %5, %cst {dimension_numbers = #tpu.dot_dimension_numbers<[1], [1], [0], [0], [0, 0, 1, 0], [], []>} : vector<16x32xbf16>, vector<64x32xbf16>, vector<16x64xf32> -> vector<16x64xf32>
    %7 = arith.addf %3, %6 : vector<16x64xf32>
    %c0_6 = arith.constant 0 : index
    %c0_7 = arith.constant 0 : index
    %8 = vector.load %arg7[%c0_6, %c0_7] : memref<16x64xf32, #tpu.memory_space<vmem>>, vector<16x64xf32>
    tpu.vector_store %arg7[%c0_6, %c0_7], %7 {strides = array<i32>} : memref<16x64xf32, #tpu.memory_space<vmem>>, vector<16x64xf32>,
    %c0_i32_8 = arith.constant 0 : i32
    %9 = arith.cmpi eq, %arg2, %c0_i32_8 : i32
    %10 = arith.extui %9 : i1 to i32
    %c0_i32_9 = arith.constant 0 : i32
    %11 = arith.cmpi ne, %10, %c0_i32_9 : i32
    scf.if %11 {
      %c0_10 = arith.constant 0 : index
      %c0_11 = arith.constant 0 : index
      %12 = vector.load %arg7[%c0_10, %c0_11] : memref<16x64xf32, #tpu.memory_space<vmem>>, vector<16x64xf32>
      %c0_12 = arith.constant 0 : index
      %c0_13 = arith.constant 0 : index
      %13 = vector.load %arg5[%c0_12, %c0_13] : memref<1x64xf32, #tpu.memory_space<vmem>>, vector<1x64xf32>
      %14 = vector.broadcast %13 : vector<1x64xf32> to vector<16x64xf32>
      %15 = arith.addf %12, %14 : vector<16x64xf32>
      %c0_14 = arith.constant 0 : index
      %c0_15 = arith.constant 0 : index
      %16 = vector.load %arg6[%c0_14, %c0_15] : memref<16x64xf32, #tpu.memory_space<vmem>>, vector<16x64xf32>
      tpu.vector_store %arg6[%c0_14, %c0_15], %15 {strides = array<i32>} : memref<16x64xf32, #tpu.memory_space<vmem>>, vector<16x64xf32>,
    } else {
    }
    return
  }
  func.func @transform_0(%arg0: i32, %arg1: i32, %arg2: i32) -> (i32, i32) {
    %c0_i32 = arith.constant 0 : i32
    return %arg0, %arg2 : i32, i32
  }
  func.func @transform_1(%arg0: i32, %arg1: i32, %arg2: i32) -> (i32, i32) {
    %c0_i32 = arith.constant 0 : i32
    return %arg1, %arg2 : i32, i32
  }
  func.func @transform_2(%arg0: i32, %arg1: i32, %arg2: i32) -> (i32, i32) {
    %c0_i32 = arith.constant 0 : i32
    %c0_i32_0 = arith.constant 0 : i32
    return %c0_i32, %arg1 : i32, i32
  }
  func.func @transform_3(%arg0: i32, %arg1: i32, %arg2: i32) -> (i32, i32) {
    %c0_i32 = arith.constant 0 : i32
    return %arg0, %arg1 : i32, i32
  }
}

</mosaic_0001>

<llo_original>
// kernel: _lambda_.14
$region0: #{_lambda_.14}
  #allocation0 [shape = 'u32[]', space=smem, size = 0x4, offset = 0x4, fixed_abs, tag = 'smem constant byte address 0x4 - core index']
  #allocation1 [shape = 'u32[144,128]{1,0:T(1,128)}', space=vmem, size = 0x12000, scoped, tag = 'internal scratch']
  %s0 = inlined_call_operand.vmem [shape: f32[16,32], index: 0, kind: input, shape index: {}]
  %s1 = inlined_call_operand.vmem [shape: f32[1,32], index: 1, kind: input, shape index: {}]
  %s2 = inlined_call_operand.vmem [shape: f32[1,32], index: 2, kind: input, shape index: {}]
  %s3 = inlined_call_operand.vmem [shape: bf16[16,32], index: 3, kind: output, shape index: {}]
  %s4 = sld [smem:[#allocation0]]
  $region22: #{_lambda_.14} parent=0
    _
  %s6 = ssub.s32 1, %s4
  %s7 = scalar_select 0, %s6, %s4
  // Predicated region
  $region2: #{_lambda_.14} parent=0 // pred_check
    _
  $region3: #{_lambda_.14} parent=0 // pred_check_branch
    %9 = sbr.rel (0) target = $region5
  $region4: #{_lambda_.14} parent=0 // pred_region
    _
  $region5: #{_lambda_.14} parent=0 // pred_fallthru
    _
  // Predicated region
  $region6: #{_lambda_.14} parent=0 // pred_check
    _
  $region7: #{_lambda_.14} parent=0 // pred_check_branch
    %11 = sbr.rel (0) target = $region9
  $region8: #{_lambda_.14} parent=0 // pred_region
    _
  $region9: #{_lambda_.14} parent=0 // pred_fallthru
    _
  // Predicated region
  $region10: #{_lambda_.14} parent=0 // pred_check
    _
  $region11: #{_lambda_.14} parent=0 // pred_check_branch
    %13 = sbr.rel (0) target = $region13
  $region12: #{_lambda_.14} parent=0 // pred_region
    _
  $region13: #{_lambda_.14} parent=0 // pred_fallthru
    _
  %v14 = vld [vmem:[%s0] sm:$0xff]
  %v15 = vld [vmem:[%s0 + $0x8] sm:$0xff]
  %vm16 = vcmask 261120
  %v17 = vsel %vm16, %v14, 0.0
  %18 = vadd.xlane.f32.xlu0 %v17
  %v19 = vpop.xlane.xlu0 %18
  %v20 = vsel %vm16, %v15, 0.0
  %21 = vadd.xlane.f32.xlu0 %v20
  %v22 = vpop.xlane.xlu0 %21
  %v23 = vrcp.pop 32.0
  %v24 = vmul.f32 %v19, %v23
  %v25 = vmul.f32 %v22, %v23
  %v26 = vsub.f32 %v14, %v24
  %v27 = vsub.f32 %v15, %v25
  %v28 = vmul.f32 %v26, %v26
  %v29 = vmul.f32 %v27, %v27
  %v30 = vsel %vm16, %v28, 0.0
  %31 = vadd.xlane.f32.xlu0 %v30
  %v32 = vpop.xlane.xlu0 %31
  %v33 = vsel %vm16, %v29, 0.0
  %34 = vadd.xlane.f32.xlu0 %v33
  %v35 = vpop.xlane.xlu0 %34
  %v36 = vmul.f32 %v32, %v23
  %v37 = vmul.f32 %v35, %v23
  %v38 = vadd.f32 %v36, 1e-05
  %v39 = vadd.f32 %v37, 1e-05
  %v40 = vrsqrt.pop %v38
  %v41 = vrsqrt.pop %v39
  %v42 = vmul.f32 %v26, %v40
  %v43 = vmul.f32 %v27, %v41
  %v44 = vld [vmem:[%s1] sm:$0x1]
  %v46 = vlaneseq
  %v47 = vshrl.u32 %v46, 7
  %v48 = vsub.s32 0, %v47
  %v49 = vrot.slane %v44, %v48
  %v51 = vmul.f32 %v42, %v49
  %v52 = vmul.f32 %v43, %v49
  %v53 = vld [vmem:[%s2] sm:$0x1]
  %v55 = vlaneseq
  %v56 = vshrl.u32 %v55, 7
  %v57 = vsub.s32 0, %v56
  %v58 = vrot.slane %v53, %v57
  %v60 = vadd.f32 %v51, %v58
  %v61 = vadd.f32 %v52, %v58
  %v62 = vpack.c.bf16 %v61, %v60
  %v64 = vunpack.c.l.b16 %v62
  %v65 = vunpack.c.h.b16 %v62
  %v66 = vpack.c.b16 %v64, %v64
  %v67 = vpack.c.b16 %v65, %v65
  %vm70 = vcmask 257024
  %71 = vst.msk [vmem:[%s3] sm:$0xf] %vm70, %v66
  %72 = vst.msk [vmem:[%s3 + $0x4] sm:$0xf] %vm70, %v67
  // Predicated region
  $region14: #{_lambda_.14} parent=0 // pred_check
    _
  $region15: #{_lambda_.14} parent=0 // pred_check_branch
    %74 = sbr.rel (0) target = $region17
  $region16: #{_lambda_.14} parent=0 // pred_region
    _
  $region17: #{_lambda_.14} parent=0 // pred_fallthru
    _
  // Predicated region
  $region18: #{_lambda_.14} parent=0 // pred_check
    _
  $region19: #{_lambda_.14} parent=0 // pred_check_branch
    %76 = sbr.rel (0) target = $region21
  $region20: #{_lambda_.14} parent=0 // pred_region
    _
  $region21: #{_lambda_.14} parent=0 // pred_fallthru
    _

// kernel: _lambda_.15
$region0: #{_lambda_.15}
  #allocation0 [shape = 'u32[]', space=smem, size = 0x4, offset = 0x4, fixed_abs, tag = 'smem constant byte address 0x4 - core index']
  #allocation1 [shape = 'u32[144,128]{1,0:T(1,128)}', space=vmem, size = 0x12000, scoped, tag = 'internal scratch']
  #allocation2 [shape = 'f32[16,96]{1,0:T(8,128)}', space=vmem, size = 0x2000, scoped, tag = 'scratch operand']
  %s0 = inlined_call_operand.vmem [shape: bf16[16,32], index: 0, kind: input, shape index: {}]
  %s1 = inlined_call_operand.vmem [shape: bf16[32,96], index: 1, kind: input, shape index: {}]
  %s2 = inlined_call_operand.vmem [shape: f32[1,96], index: 2, kind: input, shape index: {}]
  %s3 = inlined_call_operand.vmem [shape: bf16[16,96], index: 3, kind: output, shape index: {}]
  %s4 = sld [smem:[#allocation0]]
  $region30: #{_lambda_.15} parent=0
    _
  %s6 = ssub.s32 1, %s4
  %s7 = scalar_select 0, %s6, %s4
  // Predicated region
  $region2: #{_lambda_.15} parent=0 // pred_check
    _
  $region3: #{_lambda_.15} parent=0 // pred_check_branch
    %9 = sbr.rel (0) target = $region5
  $region4: #{_lambda_.15} parent=0 // pred_region
    _
  $region5: #{_lambda_.15} parent=0 // pred_fallthru
    _
  // Predicated region
  $region6: #{_lambda_.15} parent=0 // pred_check
    _
  $region7: #{_lambda_.15} parent=0 // pred_check_branch
    %11 = sbr.rel (0) target = $region9
  $region8: #{_lambda_.15} parent=0 // pred_region
    _
  $region9: #{_lambda_.15} parent=0 // pred_fallthru
    _
  // Predicated region
  $region10: #{_lambda_.15} parent=0 // pred_check
    _
  $region11: #{_lambda_.15} parent=0 // pred_check_branch
    %13 = sbr.rel (0) target = $region13
  $region12: #{_lambda_.15} parent=0 // pred_region
    _
  $region13: #{_lambda_.15} parent=0 // pred_fallthru
    _
  %p15 = scmp.eq.s32.totalorder 0, 0
  // Predicated region
  $region14: #{_lambda_.15} parent=0 // pred_check
    %p16 = pneg %p15
  $region15: #{_lambda_.15} parent=0 // pred_check_branch
    %18 = sbr.rel (%p16) target = $region17
  $region16: #{_lambda_.15} parent=0 // pred_region
    %vm19 = vcmask 785408
    %20 = vst.msk [vmem:[#allocation2] sm:$0xff] %vm19, 0.0
    %21 = vst.msk [vmem:[#allocation2 + $0x8] sm:$0xff] %vm19, 0.0
  $region17: #{_lambda_.15} parent=0 // pred_fallthru
    _
  %v22 = vld [vmem:[#allocation2] sm:$0xff]
  %v23 = vld [vmem:[#allocation2 + $0x8] sm:$0xff]
  %v24 = vld [vmem:[%s0] sm:$0xf]
  %v25 = vld [vmem:[%s0 + $0x4] sm:$0xf]
  %v26 = vld [vmem:[%s1] sm:$0xf]
  %v27 = vld [vmem:[%s1 + $0x4] sm:$0xf]
  %v28 = vld [vmem:[%s1 + $0x8] sm:$0xf]
  %v29 = vld [vmem:[%s1 + $0xc] sm:$0xf]
  %v32 = vunpack.c.l.b16 %v24
  %v33 = vunpack.c.l.b16 %v25
  %v34 = vpack.c.b16 %v33, %v32
  %v39 = vunpack.c.l.b16 %v26
  %v40 = vunpack.c.l.b16 %v27
  %v41 = vunpack.c.l.b16 %v28
  %v42 = vunpack.c.l.b16 %v29
  %v43 = vpack.c.b16 %v40, %v39
  %v44 = vpack.c.b16 %v42, %v41
  %vm47 = vcmask 261120
  %v49 = vsel %vm47, %v34, 0
  %51 = vmatprep.subr.bf16.mxu0 0
  %52 = vmatpush1.bf16.msra.mxu0 0
  %53 = vmatprep.subr.bf16.mxu0 0
  %54 = vmatpush1.bf16.msra.mxu0 0
  %55 = vmatprep.subr.bf16.mxu0 0
  %56 = vmatpush1.bf16.msra.mxu0 0
  %57 = vmatprep.subr.bf16.mxu0 0
  %58 = vmatpush1.bf16.msra.mxu0 0
  %59 = vmatprep.subr.bf16.mxu0 0
  %60 = vmatpush1.bf16.msra.mxu0 0
  %61 = vmatprep.subr.bf16.mxu0 0
  %62 = vmatpush1.bf16.msra.mxu0 0
  %63 = vmatprep.subr.bf16.mxu0 0
  %64 = vmatpush1.bf16.msra.mxu0 %v44
  %65 = vmatprep.subr.bf16.mxu0 0
  %66 = vmatpush1.bf16.msra.mxu0 %v43
  %67 = vmatprep.subr.bf16.mxu0 0
  %68 = vmatpush2.bf16.msra.mxu0 0
  %69 = vmatprep.subr.bf16.mxu0 0
  %70 = vmatpush2.bf16.msra.mxu0 0
  %71 = vmatprep.subr.bf16.mxu0 0
  %72 = vmatpush2.bf16.msra.mxu0 0
  %73 = vmatprep.subr.bf16.mxu0 0
  %74 = vmatpush2.bf16.msra.mxu0 0
  %75 = vmatprep.subr.bf16.mxu0 0
  %76 = vmatpush2.bf16.msra.mxu0 0
  %77 = vmatprep.subr.bf16.mxu0 0
  %78 = vmatpush2.bf16.msra.mxu0 0
  %79 = vmatprep.subr.bf16.mxu0 0
  %80 = vmatpush2.bf16.msra.mxu0 0
  %81 = vmatprep.subr.bf16.mxu0 0
  %82 = vmatpush2.bf16.msra.mxu0 0
  %83 = vmatprep.mubr.bf16.mxu0 0
  %84 = vmatmul.mubr.bf16.gmra.mxu0 %v49
  %v85 = vpop.f32.mrf.mxu0
  %v86 = vadd.f32 0.0, %v85
  %v87 = vpop.f32.mrf.mxu0
  %v88 = vpop.f32.mrf.mxu0
  %v89 = vadd.f32 0.0, %v88
  %v90 = vpop.f32.mrf.mxu0
  %91 = vdwg.mxu0
  %v92 = vadd.f32 %v22, %v86
  %v93 = vadd.f32 %v23, %v89
  %vm94 = vcmask 785408
  %95 = vst.msk [vmem:[#allocation2] sm:$0xff] %vm94, %v92
  %96 = vst.msk [vmem:[#allocation2 + $0x8] sm:$0xff] %vm94, %v93
  // Predicated region
  $region18: #{_lambda_.15} parent=0 // pred_check
    %p97 = pneg %p15
  $region19: #{_lambda_.15} parent=0 // pred_check_branch
    %99 = sbr.rel (%p97) target = $region21
  $region20: #{_lambda_.15} parent=0 // pred_region
    %v100 = vld [vmem:[#allocation2] sm:$0xff]
    %v101 = vld [vmem:[#allocation2 + $0x8] sm:$0xff]
    %v102 = vld [vmem:[%s2] sm:$0x1]
    %v104 = vlaneseq
    %v105 = vshrl.u32 %v104, 7
    %v106 = vsub.s32 0, %v105
    %v107 = vrot.slane %v102, %v106
    %v109 = vadd.f32 %v100, %v107
    %v110 = vadd.f32 %v101, %v107
    %v111 = vpack.c.bf16 %v110, %v109
    %v113 = vunpack.c.l.b16 %v111
    %v114 = vunpack.c.h.b16 %v111
    %v115 = vpack.c.b16 %v113, %v113
    %v116 = vpack.c.b16 %v114, %v114
    %vm119 = vcmask 781312
    %120 = vst.msk [vmem:[%s3] sm:$0xf] %vm119, %v115
    %121 = vst.msk [vmem:[%s3 + $0x4] sm:$0xf] %vm119, %v116
  $region21: #{_lambda_.15} parent=0 // pred_fallthru
    _
  // Predicated region
  $region22: #{_lambda_.15} parent=0 // pred_check
    _
  $region23: #{_lambda_.15} parent=0 // pred_check_branch
    %123 = sbr.rel (0) target = $region25
  $region24: #{_lambda_.15} parent=0 // pred_region
    _
  $region25: #{_lambda_.15} parent=0 // pred_fallthru
    _
  // Predicated region
  $region26: #{_lambda_.15} parent=0 // pred_check
    _
  $region27: #{_lambda_.15} parent=0 // pred_check_branch
    %125 = sbr.rel (0) target = $region29
  $region28: #{_lambda_.15} parent=0 // pred_region
    _
  $region29: #{_lambda_.15} parent=0 // pred_fallthru
    _

// kernel: _lambda_.16
$region0: #{_lambda_.16}
  #allocation0 [shape = 'u32[]', space=smem, size = 0x4, offset = 0x4, fixed_abs, tag = 'smem constant byte address 0x4 - core index']
  #allocation1 [shape = 'u32[144,128]{1,0:T(1,128)}', space=vmem, size = 0x12000, scoped, tag = 'internal scratch']
  %s0 = inlined_call_operand.vmem [shape: bf16[2,8,32], index: 0, kind: input, shape index: {}]
  %s1 = inlined_call_operand.vmem [shape: bf16[2,8,32], index: 1, kind: input, shape index: {}]
  %s2 = inlined_call_operand.vmem [shape: bf16[2,8,32], index: 2, kind: input, shape index: {}]
  %s3 = inlined_call_operand.vmem [shape: f32[2,1,8], index: 3, kind: input, shape index: {}]
  %s4 = inlined_call_operand.vmem [shape: bf16[2,8,32], index: 4, kind: output, shape index: {}]
  %s5 = sld [smem:[#allocation0]]
  $region49: #{_lambda_.16} parent=0
    _
  %s7 = ssub.s32 1, %s5
  %s8 = scalar_select 0, %s7, %s5
  loop: start=0, step=1, limit=4
  $region2: #{_lambda_.16} parent=0 // loop_pre_header
    _
  $region3: #{_lambda_.16} parent=0 // loop_header
    %s10 = sphi 0, %s14
    %p11 = scmp.ge.s32.totalorder %s10, 4
    %s17 = sphi 0, %s29
    %s18 = sphi 0, %s25
    %s19 = sphi 0, %s17
    %s20 = sphi 0, %s18
    %s21 = sphi 0, %s19
    %s22 = sphi 0, %s20
    %s34 = sphi 0, %s36
    %s37 = sphi 0, %s34
    %s38 = sphi 0, %s37
    %s54 = sphi 0, %s38
    %s62 = sphi 0, %s64
    %s65 = sphi 0, %s62
    %s66 = sphi 0, %s65
    %s82 = sphi 0, %s66
    %s90 = sphi 0, %s92
    %s93 = sphi 0, %s90
    %s94 = sphi 0, %s93
    %s110 = sphi 0, %s94
    %s116 = sphi 0, %s118
    %s119 = sphi 0, %s116
    %s120 = sphi 0, %s119
    %s136 = sphi 0, %s120
    %s144 = sphi 0, %s146
    %s147 = sphi 0, %s144
    %s148 = sphi 0, %s147
    %s164 = sphi 0, %s148
  $region4: #{_lambda_.16} parent=0 // loop_header_branch
    %13 = sbr.rel (%p11) target = $region8
  $region5: #{_lambda_.16} parent=0 // loop_body
    %s15 = ssub.s32 %s10, 1
    %s16 = ssub.s32 %s10, 2
    %s23 = sadd.s32 1, %s18
    %p24 = scmp.ge.s32.totalorder %s23, 1
    %s25 = scalar_select %p24, 0, %s23
    %s26 = sadd.s32 1, %s17
    %s27 = scalar_select %p24, %s26, %s17
    %p28 = scmp.ge.s32.totalorder %s27, 2
    %s29 = scalar_select %p28, 0, %s27
    %s30 = ssub.s32 %s17, %s29
    %s31 = ssub.s32 %s18, %s25
    %s32 = sor.u32 %s30, %s31
    %p33 = scmp.eq.s32.totalorder %s32, 0
    %s35 = sadd.s32 %s34, 1
    %s36 = scalar_select %p33, %s34, %s35
    %p39 = pneg %p33
    %p40 = scmp.eq.s32.totalorder %s10, 1
    %p41 = por %p39, %p40
    %p42 = scmp.ne.s32.totalorder %s34, %s37
    %p43 = scmp.eq.s32.totalorder %s10, 0
    %p44 = por %p42, %p43
    %p45 = scmp.ne.s32.totalorder %s34, %s37
    %p46 = scmp.eq.s32.totalorder %s15, 1
    %p47 = por %p45, %p46
    %p48 = scmp.ne.s32.totalorder %s37, %s38
    %p49 = scmp.eq.s32.totalorder %s15, 0
    %p50 = por %p48, %p49
    %p51 = scmp.ne.s32.totalorder %s37, %s38
    %p52 = scmp.eq.s32.totalorder %s16, 1
    %p53 = por %p51, %p52
    %p55 = scmp.ne.s32.totalorder %s38, %s54
    %p56 = scmp.eq.s32.totalorder %s16, 0
    %p57 = por %p55, %p56
    %s58 = ssub.s32 %s17, %s29
    %s59 = ssub.s32 %s18, %s25
    %s60 = sor.u32 %s58, %s59
    %p61 = scmp.eq.s32.totalorder %s60, 0
    %s63 = sadd.s32 %s62, 1
    %s64 = scalar_select %p61, %s62, %s63
    %p67 = pneg %p61
    %p68 = scmp.eq.s32.totalorder %s10, 1
    %p69 = por %p67, %p68
    %p70 = scmp.ne.s32.totalorder %s62, %s65
    %p71 = scmp.eq.s32.totalorder %s10, 0
    %p72 = por %p70, %p71
    %p73 = scmp.ne.s32.totalorder %s62, %s65
    %p74 = scmp.eq.s32.totalorder %s15, 1
    %p75 = por %p73, %p74
    %p76 = scmp.ne.s32.totalorder %s65, %s66
    %p77 = scmp.eq.s32.totalorder %s15, 0
    %p78 = por %p76, %p77
    %p79 = scmp.ne.s32.totalorder %s65, %s66
    %p80 = scmp.eq.s32.totalorder %s16, 1
    %p81 = por %p79, %p80
    %p83 = scmp.ne.s32.totalorder %s66, %s82
    %p84 = scmp.eq.s32.totalorder %s16, 0
    %p85 = por %p83, %p84
    %s86 = ssub.s32 %s17, %s29
    %s87 = ssub.s32 %s18, %s25
    %s88 = sor.u32 %s86, %s87
    %p89 = scmp.eq.s32.totalorder %s88, 0
    %s91 = sadd.s32 %s90, 1
    %s92 = scalar_select %p89, %s90, %s91
    %p95 = pneg %p89
    %p96 = scmp.eq.s32.totalorder %s10, 1
    %p97 = por %p95, %p96
    %p98 = scmp.ne.s32.totalorder %s90, %s93
    %p99 = scmp.eq.s32.totalorder %s10, 0
    %p100 = por %p98, %p99
    %p101 = scmp.ne.s32.totalorder %s90, %s93
    %p102 = scmp.eq.s32.totalorder %s15, 1
    %p103 = por %p101, %p102
    %p104 = scmp.ne.s32.totalorder %s93, %s94
    %p105 = scmp.eq.s32.totalorder %s15, 0
    %p106 = por %p104, %p105
    %p107 = scmp.ne.s32.totalorder %s93, %s94
    %p108 = scmp.eq.s32.totalorder %s16, 1
    %p109 = por %p107, %p108
    %p111 = scmp.ne.s32.totalorder %s94, %s110
    %p112 = scmp.eq.s32.totalorder %s16, 0
    %p113 = por %p111, %p112
    %s114 = ssub.s32 %s17, %s29
    %p115 = scmp.eq.s32.totalorder %s114, 0
    %s117 = sadd.s32 %s116, 1
    %s118 = scalar_select %p115, %s116, %s117
    %p121 = pneg %p115
    %p122 = scmp.eq.s32.totalorder %s10, 1
    %p123 = por %p121, %p122
    %p124 = scmp.ne.s32.totalorder %s116, %s119
    %p125 = scmp.eq.s32.totalorder %s10, 0
    %p126 = por %p124, %p125
    %p127 = scmp.ne.s32.totalorder %s116, %s119
    %p128 = scmp.eq.s32.totalorder %s15, 1
    %p129 = por %p127, %p128
    %p130 = scmp.ne.s32.totalorder %s119, %s120
    %p131 = scmp.eq.s32.totalorder %s15, 0
    %p132 = por %p130, %p131
    %p133 = scmp.ne.s32.totalorder %s119, %s120
    %p134 = scmp.eq.s32.totalorder %s16, 1
    %p135 = por %p133, %p134
    %p137 = scmp.ne.s32.totalorder %s120, %s136
    %p138 = scmp.eq.s32.totalorder %s16, 0
    %p139 = por %p137, %p138
    %s140 = ssub.s32 %s17, %s29
    %s141 = ssub.s32 %s18, %s25
    %s142 = sor.u32 %s140, %s141
    %p143 = scmp.eq.s32.totalorder %s142, 0
    %s145 = sadd.s32 %s144, 1
    %s146 = scalar_select %p143, %s144, %s145
    %p149 = pneg %p143
    %p150 = scmp.eq.s32.totalorder %s10, 1
    %p151 = por %p149, %p150
    %p152 = scmp.ne.s32.totalorder %s144, %s147
    %p153 = scmp.eq.s32.totalorder %s10, 0
    %p154 = por %p152, %p153
    %p155 = scmp.ne.s32.totalorder %s144, %s147
    %p156 = scmp.eq.s32.totalorder %s15, 1
    %p157 = por %p155, %p156
    %p158 = scmp.ne.s32.totalorder %s147, %s148
    %p159 = scmp.eq.s32.totalorder %s15, 0
    %p160 = por %p158, %p159
    %p161 = scmp.ne.s32.totalorder %s147, %s148
    %p162 = scmp.eq.s32.totalorder %s16, 1
    %p163 = por %p161, %p162
    %p165 = scmp.ne.s32.totalorder %s148, %s164
    %p166 = scmp.eq.s32.totalorder %s16, 0
    %p167 = por %p165, %p166
    %p168 = scmp.le.s32.totalorder 1, %s10
    %p169 = scmp.lt.s32.totalorder %s10, 3
    %p170 = pnand %p168, %p169
    %p171 = pneg %p170
    // Predicated region
    $region9: #{_lambda_.16} parent=5 // pred_check
      _
    $region10: #{_lambda_.16} parent=5 // pred_check_branch
      %173 = sbr.rel (%p170) target = $region12
    $region11: #{_lambda_.16} parent=5 // pred_region
      %s174 = ssub.s32 %s10, 1
    $region12: #{_lambda_.16} parent=5 // pred_fallthru
      _
    %p175 = scmp.lt.s32.totalorder %s10, 2
    // Predicated region
    $region13: #{_lambda_.16} parent=5 // pred_check
      %p176 = pneg %p175
    $region14: #{_lambda_.16} parent=5 // pred_check_branch
      %178 = sbr.rel (%p176) target = $region16
    $region15: #{_lambda_.16} parent=5 // pred_region
      // Predicated region
      $region17: #{_lambda_.16} parent=15 // pred_check
        %p179 = pneg %p44
      $region18: #{_lambda_.16} parent=15 // pred_check_branch
        %181 = sbr.rel (%p179) target = $region20
      $region19: #{_lambda_.16} parent=15 // pred_region
        %p182 = scmp.lt.s32.totalorder %s17, 1
        %s183 = scalar_select %p182, %s17, 1
        %p184 = scmp.lt.s32.totalorder %s18, 0
        %s185 = scalar_select %p184, %s18, 0
        %s186 = sadd.s32 %s185, %s183
        %s187 = smul.addr %s186, 4
        %s188 = scalar_lea.vmem %s0, %s187
      $region20: #{_lambda_.16} parent=15 // pred_fallthru
        _
      // Predicated region
      $region21: #{_lambda_.16} parent=15 // pred_check
        %p189 = pneg %p72
      $region22: #{_lambda_.16} parent=15 // pred_check_branch
        %191 = sbr.rel (%p189) target = $region24
      $region23: #{_lambda_.16} parent=15 // pred_region
        %p192 = scmp.lt.s32.totalorder %s17, 1
        %s193 = scalar_select %p192, %s17, 1
        %p194 = scmp.lt.s32.totalorder %s18, 0
        %s195 = scalar_select %p194, %s18, 0
        %s196 = sadd.s32 %s195, %s193
        %s197 = smul.addr %s196, 4
        %s198 = scalar_lea.vmem %s1, %s197
      $region24: #{_lambda_.16} parent=15 // pred_fallthru
        _
      // Predicated region
      $region25: #{_lambda_.16} parent=15 // pred_check
        %p199 = pneg %p100
      $region26: #{_lambda_.16} parent=15 // pred_check_branch
        %201 = sbr.rel (%p199) target = $region28
      $region27: #{_lambda_.16} parent=15 // pred_region
        %p202 = scmp.lt.s32.totalorder %s17, 1
        %s203 = scalar_select %p202, %s17, 1
        %p204 = scmp.lt.s32.totalorder %s18, 0
        %s205 = scalar_select %p204, %s18, 0
        %s206 = sadd.s32 %s205, %s203
        %s207 = smul.addr %s206, 4
        %s208 = scalar_lea.vmem %s2, %s207
      $region28: #{_lambda_.16} parent=15 // pred_fallthru
        _
      // Predicated region
      $region29: #{_lambda_.16} parent=15 // pred_check
        %p209 = pneg %p126
      $region30: #{_lambda_.16} parent=15 // pred_check_branch
        %211 = sbr.rel (%p209) target = $region32
      $region31: #{_lambda_.16} parent=15 // pred_region
        %p212 = scmp.lt.s32.totalorder %s17, 1
        %s213 = scalar_select %p212, %s17, 1
        %s214 = scalar_lea.vmem %s3, %s213
      $region32: #{_lambda_.16} parent=15 // pred_fallthru
        _
    $region16: #{_lambda_.16} parent=5 // pred_fallthru
      _
    %p215 = scmp.le.s32.totalorder 1, %s10
    %p216 = scmp.lt.s32.totalorder %s10, 3
    %p217 = pnand %p215, %p216
    %p218 = pneg %p217
    // Predicated region
    $region33: #{_lambda_.16} parent=5 // pred_check
      _
    $region34: #{_lambda_.16} parent=5 // pred_check_branch
      %220 = sbr.rel (%p217) target = $region36
    $region35: #{_lambda_.16} parent=5 // pred_region
      %s221 = ssub.s32 %s10, 1
      %p222 = scmp.lt.s32.totalorder %s19, 1
      %s223 = scalar_select %p222, %s19, 1
      %p224 = scmp.lt.s32.totalorder %s20, 0
      %s225 = scalar_select %p224, %s20, 0
      %s226 = sadd.s32 %s225, %s223
      %s227 = smul.addr %s226, 4
      %s228 = scalar_lea.vmem %s0, %s227
      %p229 = pneg %p50
      %p230 = pneg %p47
      %p231 = scmp.lt.s32.totalorder %s19, 1
      %s232 = scalar_select %p231, %s19, 1
      %p233 = scmp.lt.s32.totalorder %s20, 0
      %s234 = scalar_select %p233, %s20, 0
      %s235 = sadd.s32 %s234, %s232
      %s236 = smul.addr %s235, 4
      %s237 = scalar_lea.vmem %s1, %s236
      %p238 = pneg %p78
      %p239 = pneg %p75
      %p240 = scmp.lt.s32.totalorder %s19, 1
      %s241 = scalar_select %p240, %s19, 1
      %p242 = scmp.lt.s32.totalorder %s20, 0
      %s243 = scalar_select %p242, %s20, 0
      %s244 = sadd.s32 %s243, %s241
      %s245 = smul.addr %s244, 4
      %s246 = scalar_lea.vmem %s2, %s245
      %p247 = pneg %p106
      %p248 = pneg %p103
      %p249 = scmp.lt.s32.totalorder %s19, 1
      %s250 = scalar_select %p249, %s19, 1
      %s251 = scalar_lea.vmem %s3, %s250
      %p252 = pneg %p132
      %p253 = pneg %p129
      %p254 = pneg %p160
      %p255 = pneg %p157
      %p256 = scmp.lt.s32.totalorder %s19, 1
      %s257 = scalar_select %p256, %s19, 1
      %p258 = scmp.lt.s32.totalorder %s20, 0
      %s259 = scalar_select %p258, %s20, 0
      %s260 = sadd.s32 %s259, %s257
      %s261 = smul.addr %s260, 4
      %s262 = scalar_lea.vmem %s4, %s261
      %p263 = scmp.lt.s32.totalorder %s19, 1
      %s264 = scalar_select %p263, %s19, 1
      %p265 = scmp.lt.s32.totalorder %s20, 0
      %s266 = scalar_select %p265, %s20, 0
      %s267 = sadd.s32 %s266, %s264
      %s268 = smul.addr %s267, 4
      %s269 = scalar_lea.vmem %s0, %s268
      %p270 = scmp.lt.s32.totalorder %s19, 1
      %s271 = scalar_select %p270, %s19, 1
      %p272 = scmp.lt.s32.totalorder %s20, 0
      %s273 = scalar_select %p272, %s20, 0
      %s274 = sadd.s32 %s273, %s271
      %s275 = smul.addr %s274, 4
      %s276 = scalar_lea.vmem %s1, %s275
      %p277 = scmp.lt.s32.totalorder %s19, 1
      %s278 = scalar_select %p277, %s19, 1
      %p279 = scmp.lt.s32.totalorder %s20, 0
      %s280 = scalar_select %p279, %s20, 0
      %s281 = sadd.s32 %s280, %s278
      %s282 = smul.addr %s281, 4
      %s283 = scalar_lea.vmem %s2, %s282
      %p284 = scmp.lt.s32.totalorder %s19, 1
      %s285 = scalar_select %p284, %s19, 1
      %s286 = scalar_lea.vmem %s3, %s285
      %p287 = scmp.lt.s32.totalorder %s19, 1
      %s288 = scalar_select %p287, %s19, 1
      %p289 = scmp.lt.s32.totalorder %s20, 0
      %s290 = scalar_select %p289, %s20, 0
      %s291 = sadd.s32 %s290, %s288
      %s292 = smul.addr %s291, 4
      %s293 = scalar_lea.vmem %s4, %s292
      %v295 = vld [vmem:[%s286] sm:$0x1]
      %v296 = vld [vmem:[%s269] sm:$0xf]
      %v297 = vld [vmem:[%s276] sm:$0xf]
      %v298 = vld [vmem:[%s283] sm:$0xf]
      %vm299 = vcmask 130048
      %v301 = vsel %vm299, %v296, 0
      %v304 = vsel %vm299, %v297, 0
      %306 = vmatprep.subr.bf16.mxu0 0
      %307 = vmatpush1.bf16.xpose.msra.mxu0 0
      %308 = vmatprep.subr.bf16.mxu0 0
      %309 = vmatpush1.bf16.xpose.msra.mxu0 0
      %310 = vmatprep.subr.bf16.mxu0 0
      %311 = vmatpush1.bf16.xpose.msra.mxu0 0
      %312 = vmatprep.subr.bf16.mxu0 0
      %313 = vmatpush1.bf16.xpose.msra.mxu0 0
      %314 = vmatprep.subr.bf16.mxu0 0
      %315 = vmatpush1.bf16.xpose.msra.mxu0 0
      %316 = vmatprep.subr.bf16.mxu0 0
      %317 = vmatpush1.bf16.xpose.msra.mxu0 0
      %318 = vmatprep.subr.bf16.mxu0 0
      %319 = vmatpush1.bf16.xpose.msra.mxu0 0
      %320 = vmatprep.subr.bf16.mxu0 0
      %321 = vmatpush1.bf16.xpose.msra.mxu0 %v304
      %322 = vmatprep.subr.bf16.mxu0 0
      %323 = vmatpush2.bf16.xpose.msra.mxu0 0
      %324 = vmatprep.subr.bf16.mxu0 0
      %325 = vmatpush2.bf16.xpose.msra.mxu0 0
      %326 = vmatprep.subr.bf16.mxu0 0
      %327 = vmatpush2.bf16.xpose.msra.mxu0 0
      %328 = vmatprep.subr.bf16.mxu0 0
      %329 = vmatpush2.bf16.xpose.msra.mxu0 0
      %330 = vmatprep.subr.bf16.mxu0 0
      %331 = vmatpush2.bf16.xpose.msra.mxu0 0
      %332 = vmatprep.subr.bf16.mxu0 0
      %333 = vmatpush2.bf16.xpose.msra.mxu0 0
      %334 = vmatprep.subr.bf16.mxu0 0
      %335 = vmatpush2.bf16.xpose.msra.mxu0 0
      %336 = vmatprep.subr.bf16.mxu0 0
      %337 = vmatpush2.bf16.xpose.msra.mxu0 0
      %338 = vmatprep.mubr.bf16.mxu0 0
      %339 = vmatmul.mubr.bf16.gmra.mxu0 %v301
      %v340 = vpop.f32.mrf.mxu0
      %v341 = vadd.f32 0.0, %v340
      %v342 = vpop.f32.mrf.mxu0
      %v343 = vpop.f32.mrf.mxu0
      %v344 = vpop.f32.mrf.mxu0
      %345 = vdwg.mxu0
      %v346 = vmul.f32 %v341, 0.25
      %v348 = vlaneseq
      %v349 = vshrl.u32 %v348, 7
      %v350 = vsub.s32 0, %v349
      %v351 = vrot.slane %v295, %v350
      %v353 = vadd.f32 %v346, %v351
      %vm354 = vcmask 64512
      %v355 = vsel %vm354, %v353, -inf
      %356 = vmax.xlane.f32.xlu0 %v355
      %v357 = vpop.xlane.xlu0 %356
      %v358 = vsub.f32 %v353, %v357
      %v359 = vmul.f32 %v358, 1.442695
      %v360 = vpow.pop %v359
      %v361 = vsel %vm354, %v360, 0.0
      %362 = vadd.xlane.f32.xlu0 %v361
      %v363 = vpop.xlane.xlu0 %362
      %v364 = vrcp.pop %v363
      %v365 = vmul.f32 %v360, %v364
      %v366 = vpack.c.bf16 %v365, %v365
      %v368 = vsel %vm354, %v366, 0
      %vm370 = vcmask 1043456
      %v372 = vsel %vm370, %v298, 0
      %374 = vmatprep.subr.bf16.mxu0 0
      %375 = vmatpush1.bf16.msra.mxu0 0
      %376 = vmatprep.subr.bf16.mxu0 0
      %377 = vmatpush1.bf16.msra.mxu0 0
      %378 = vmatprep.subr.bf16.mxu0 0
      %379 = vmatpush1.bf16.msra.mxu0 0
      %380 = vmatprep.subr.bf16.mxu0 0
      %381 = vmatpush1.bf16.msra.mxu0 0
      %382 = vmatprep.subr.bf16.mxu0 0
      %383 = vmatpush1.bf16.msra.mxu0 0
      %384 = vmatprep.subr.bf16.mxu0 0
      %385 = vmatpush1.bf16.msra.mxu0 0
      %386 = vmatprep.subr.bf16.mxu0 0
      %387 = vmatpush1.bf16.msra.mxu0 0
      %388 = vmatprep.subr.bf16.mxu0 0
      %389 = vmatpush1.bf16.msra.mxu0 %v372
      %390 = vmatprep.subr.bf16.mxu0 0
      %391 = vmatpush2.bf16.msra.mxu0 0
      %392 = vmatprep.subr.bf16.mxu0 0
      %393 = vmatpush2.bf16.msra.mxu0 0
      %394 = vmatprep.subr.bf16.mxu0 0
      %395 = vmatpush2.bf16.msra.mxu0 0
      %396 = vmatprep.subr.bf16.mxu0 0
      %397 = vmatpush2.bf16.msra.mxu0 0
      %398 = vmatprep.subr.bf16.mxu0 0
      %399 = vmatpush2.bf16.msra.mxu0 0
      %400 = vmatprep.subr.bf16.mxu0 0
      %401 = vmatpush2.bf16.msra.mxu0 0
      %402 = vmatprep.subr.bf16.mxu0 0
      %403 = vmatpush2.bf16.msra.mxu0 0
      %404 = vmatprep.subr.bf16.mxu0 0
      %405 = vmatpush2.bf16.msra.mxu0 0
      %406 = vmatprep.mubr.bf16.mxu0 0
      %407 = vmatmul.mubr.bf16.gmra.mxu0 %v368
      %v408 = vpop.f32.mrf.mxu0
      %v409 = vadd.f32 0.0, %v408
      %v410 = vpop.f32.mrf.mxu0
      %v411 = vpop.f32.mrf.mxu0
      %v412 = vpop.f32.mrf.mxu0
      %413 = vdwg.mxu0
      %v414 = vpack.c.bf16 %v409, %v409
      %vm415 = vcmask 125952
      %416 = vst.msk [vmem:[%s293] sm:$0xf] %vm415, %v414
      %v418 = vunpack.c.l.b16 %v296
      %v419 = vpack.c.b16 %v418, %v418
      %420 = vrot.lane.b32.xlu0 %v419, 112
      %v421 = vpop.permute.xlu0 %420
      %v423 = vunpack.c.l.b16 %v297
      %v424 = vpack.c.b16 %v423, %v423
      %425 = vrot.lane.b32.xlu0 %v424, 112
      %v426 = vpop.permute.xlu0 %425
      %v428 = vsel %vm299, %v421, 0
      %v431 = vsel %vm299, %v426, 0
      %433 = vmatprep.subr.bf16.mxu0 0
      %434 = vmatpush1.bf16.xpose.msra.mxu0 0
      %435 = vmatprep.subr.bf16.mxu0 0
      %436 = vmatpush1.bf16.xpose.msra.mxu0 0
      %437 = vmatprep.subr.bf16.mxu0 0
      %438 = vmatpush1.bf16.xpose.msra.mxu0 0
      %439 = vmatprep.subr.bf16.mxu0 0
      %440 = vmatpush1.bf16.xpose.msra.mxu0 0
      %441 = vmatprep.subr.bf16.mxu0 0
      %442 = vmatpush1.bf16.xpose.msra.mxu0 0
      %443 = vmatprep.subr.bf16.mxu0 0
      %444 = vmatpush1.bf16.xpose.msra.mxu0 0
      %445 = vmatprep.subr.bf16.mxu0 0
      %446 = vmatpush1.bf16.xpose.msra.mxu0 0
      %447 = vmatprep.subr.bf16.mxu0 0
      %448 = vmatpush1.bf16.xpose.msra.mxu0 %v431
      %449 = vmatprep.subr.bf16.mxu0 0
      %450 = vmatpush2.bf16.xpose.msra.mxu0 0
      %451 = vmatprep.subr.bf16.mxu0 0
      %452 = vmatpush2.bf16.xpose.msra.mxu0 0
      %453 = vmatprep.subr.bf16.mxu0 0
      %454 = vmatpush2.bf16.xpose.msra.mxu0 0
      %455 = vmatprep.subr.bf16.mxu0 0
      %456 = vmatpush2.bf16.xpose.msra.mxu0 0
      %457 = vmatprep.subr.bf16.mxu0 0
      %458 = vmatpush2.bf16.xpose.msra.mxu0 0
      %459 = vmatprep.subr.bf16.mxu0 0
      %460 = vmatpush2.bf16.xpose.msra.mxu0 0
      %461 = vmatprep.subr.bf16.mxu0 0
      %462 = vmatpush2.bf16.xpose.msra.mxu0 0
      %463 = vmatprep.subr.bf16.mxu0 0
      %464 = vmatpush2.bf16.xpose.msra.mxu0 0
      %465 = vmatprep.mubr.bf16.mxu0 0
      %466 = vmatmul.mubr.bf16.gmra.mxu0 %v428
      %v467 = vpop.f32.mrf.mxu0
      %v468 = vadd.f32 0.0, %v467
      %v469 = vpop.f32.mrf.mxu0
      %v470 = vpop.f32.mrf.mxu0
      %v471 = vpop.f32.mrf.mxu0
      %472 = vdwg.mxu0
      %v473 = vmul.f32 %v468, 0.25
      %v474 = vadd.f32 %v473, %v351
      %v475 = vsel %vm354, %v474, -inf
      %476 = vmax.xlane.f32.xlu0 %v475
      %v477 = vpop.xlane.xlu0 %476
      %v478 = vsub.f32 %v474, %v477
      %v479 = vmul.f32 %v478, 1.442695
      %v480 = vpow.pop %v479
      %v481 = vsel %vm354, %v480, 0.0
      %482 = vadd.xlane.f32.xlu0 %v481
      %v483 = vpop.xlane.xlu0 %482
      %v484 = vrcp.pop %v483
      %v485 = vmul.f32 %v480, %v484
      %v486 = vpack.c.bf16 %v485, %v485
      %v488 = vunpack.c.l.b16 %v298
      %v489 = vpack.c.b16 %v488, %v488
      %490 = vrot.lane.b32.xlu0 %v489, 112
      %v491 = vpop.permute.xlu0 %490
      %v493 = vsel %vm354, %v486, 0
      %v496 = vsel %vm370, %v491, 0
      %498 = vmatprep.subr.bf16.mxu0 0
      %499 = vmatpush1.bf16.msra.mxu0 0
      %500 = vmatprep.subr.bf16.mxu0 0
      %501 = vmatpush1.bf16.msra.mxu0 0
      %502 = vmatprep.subr.bf16.mxu0 0
      %503 = vmatpush1.bf16.msra.mxu0 0
      %504 = vmatprep.subr.bf16.mxu0 0
      %505 = vmatpush1.bf16.msra.mxu0 0
      %506 = vmatprep.subr.bf16.mxu0 0
      %507 = vmatpush1.bf16.msra.mxu0 0
      %508 = vmatprep.subr.bf16.mxu0 0
      %509 = vmatpush1.bf16.msra.mxu0 0
      %510 = vmatprep.subr.bf16.mxu0 0
      %511 = vmatpush1.bf16.msra.mxu0 0
      %512 = vmatprep.subr.bf16.mxu0 0
      %513 = vmatpush1.bf16.msra.mxu0 %v496
      %514 = vmatprep.subr.bf16.mxu0 0
      %515 = vmatpush2.bf16.msra.mxu0 0
      %516 = vmatprep.subr.bf16.mxu0 0
      %517 = vmatpush2.bf16.msra.mxu0 0
      %518 = vmatprep.subr.bf16.mxu0 0
      %519 = vmatpush2.bf16.msra.mxu0 0
      %520 = vmatprep.subr.bf16.mxu0 0
      %521 = vmatpush2.bf16.msra.mxu0 0
      %522 = vmatprep.subr.bf16.mxu0 0
      %523 = vmatpush2.bf16.msra.mxu0 0
      %524 = vmatprep.subr.bf16.mxu0 0
      %525 = vmatpush2.bf16.msra.mxu0 0
      %526 = vmatprep.subr.bf16.mxu0 0
      %527 = vmatpush2.bf16.msra.mxu0 0
      %528 = vmatprep.subr.bf16.mxu0 0
      %529 = vmatpush2.bf16.msra.mxu0 0
      %530 = vmatprep.mubr.bf16.mxu0 0
      %531 = vmatmul.mubr.bf16.gmra.mxu0 %v493
      %v532 = vpop.f32.mrf.mxu0
      %v533 = vadd.f32 0.0, %v532
      %v534 = vpop.f32.mrf.mxu0
      %v535 = vpop.f32.mrf.mxu0
      %v536 = vpop.f32.mrf.mxu0
      %537 = vdwg.mxu0
      %v538 = vpack.c.bf16 %v533, %v533
      %v540 = vunpack.c.l.b16 %v538
      %v541 = vpack.c.b16 %v540, %v540
      %542 = vrot.lane.b32.xlu0 %v541, 16
      %v543 = vpop.permute.xlu0 %542
      %vm545 = vcmask 257152
      %546 = vst.msk [vmem:[%s293] sm:$0xf] %vm545, %v543
      %p547 = scmp.lt.s32.totalorder %s19, 1
      %s548 = scalar_select %p547, %s19, 1
      %p549 = scmp.lt.s32.totalorder %s20, 0
      %s550 = scalar_select %p549, %s20, 0
      %s551 = sadd.s32 %s550, %s548
      %s552 = smul.addr %s551, 4
      %s553 = scalar_lea.vmem %s4, %s552
      // Predicated region
      $region37: #{_lambda_.16} parent=35 // pred_check
        %p554 = pneg %p157
      $region38: #{_lambda_.16} parent=35 // pred_check_branch
        %556 = sbr.rel (%p554) target = $region40
      $region39: #{_lambda_.16} parent=35 // pred_region
        _
      $region40: #{_lambda_.16} parent=35 // pred_fallthru
        _
    $region36: #{_lambda_.16} parent=5 // pred_fallthru
      _
    %p557 = scmp.le.s32.totalorder 2, %s10
    // Predicated region
    $region41: #{_lambda_.16} parent=5 // pred_check
      %p558 = pneg %p557
    $region42: #{_lambda_.16} parent=5 // pred_check_branch
      %560 = sbr.rel (%p558) target = $region44
    $region43: #{_lambda_.16} parent=5 // pred_region
      %s561 = ssub.s32 %s10, 2
      // Predicated region
      $region45: #{_lambda_.16} parent=43 // pred_check
        %p562 = pneg %p163
      $region46: #{_lambda_.16} parent=43 // pred_check_branch
        %564 = sbr.rel (%p562) target = $region48
      $region47: #{_lambda_.16} parent=43 // pred_region
        %p565 = scmp.lt.s32.totalorder %s21, 1
        %s566 = scalar_select %p565, %s21, 1
        %p567 = scmp.lt.s32.totalorder %s22, 0
        %s568 = scalar_select %p567, %s22, 0
        %s569 = sadd.s32 %s568, %s566
        %s570 = smul.addr %s569, 4
        %s571 = scalar_lea.vmem %s4, %s570
      $region48: #{_lambda_.16} parent=43 // pred_fallthru
        _
    $region44: #{_lambda_.16} parent=5 // pred_fallthru
      _
  $region6: #{_lambda_.16} parent=0 // loop_footer
    %s14 = sadd.s32 1, %s10
  $region7: #{_lambda_.16} parent=0 // loop_footer_branch
    %9 = sbr.rel target = $region3
  $region8: #{_lambda_.16} parent=0 // loop_exit
    _

// kernel: _lambda_.17
$region0: #{_lambda_.17}
  #allocation0 [shape = 'u32[]', space=smem, size = 0x4, offset = 0x4, fixed_abs, tag = 'smem constant byte address 0x4 - core index']
  #allocation1 [shape = 'u32[144,128]{1,0:T(1,128)}', space=vmem, size = 0x12000, scoped, tag = 'internal scratch']
  %s0 = inlined_call_operand.vmem [shape: bf16[16,32], index: 0, kind: input, shape index: {}]
  %s1 = inlined_call_operand.vmem [shape: bf16[16,32], index: 1, kind: input, shape index: {}]
  %s2 = inlined_call_operand.vmem [shape: bf16[32,32], index: 2, kind: input, shape index: {}]
  %s3 = inlined_call_operand.vmem [shape: f32[1,32], index: 3, kind: input, shape index: {}]
  %s4 = inlined_call_operand.vmem [shape: bf16[32,2], index: 4, kind: input, shape index: {}]
  %s5 = inlined_call_operand.vmem [shape: f32[1,2], index: 5, kind: input, shape index: {}]
  %s6 = inlined_call_operand.vmem [shape: bf16[2,32], index: 6, kind: input, shape index: {}]
  %s7 = inlined_call_operand.vmem [shape: f32[1,32], index: 7, kind: input, shape index: {}]
  %s8 = inlined_call_operand.vmem [shape: f32[1,32], index: 8, kind: input, shape index: {}]
  %s9 = inlined_call_operand.vmem [shape: f32[1,32], index: 9, kind: input, shape index: {}]
  %s10 = inlined_call_operand.vmem [shape: bf16[16,32], index: 10, kind: output, shape index: {}]
  %s11 = sld [smem:[#allocation0]]
  $region50: #{_lambda_.17} parent=0
    _
  %s13 = ssub.s32 1, %s11
  %s14 = scalar_select 0, %s13, %s11
  // Predicated region
  $region2: #{_lambda_.17} parent=0 // pred_check
    _
  $region3: #{_lambda_.17} parent=0 // pred_check_branch
    %16 = sbr.rel (0) target = $region5
  $region4: #{_lambda_.17} parent=0 // pred_region
    _
  $region5: #{_lambda_.17} parent=0 // pred_fallthru
    _
  // Predicated region
  $region6: #{_lambda_.17} parent=0 // pred_check
    _
  $region7: #{_lambda_.17} parent=0 // pred_check_branch
    %18 = sbr.rel (0) target = $region9
  $region8: #{_lambda_.17} parent=0 // pred_region
    _
  $region9: #{_lambda_.17} parent=0 // pred_fallthru
    _
  // Predicated region
  $region10: #{_lambda_.17} parent=0 // pred_check
    _
  $region11: #{_lambda_.17} parent=0 // pred_check_branch
    %20 = sbr.rel (0) target = $region13
  $region12: #{_lambda_.17} parent=0 // pred_region
    _
  $region13: #{_lambda_.17} parent=0 // pred_fallthru
    _
  // Predicated region
  $region14: #{_lambda_.17} parent=0 // pred_check
    _
  $region15: #{_lambda_.17} parent=0 // pred_check_branch
    %22 = sbr.rel (0) target = $region17
  $region16: #{_lambda_.17} parent=0 // pred_region
    _
  $region17: #{_lambda_.17} parent=0 // pred_fallthru
    _
  // Predicated region
  $region18: #{_lambda_.17} parent=0 // pred_check
    _
  $region19: #{_lambda_.17} parent=0 // pred_check_branch
    %24 = sbr.rel (0) target = $region21
  $region20: #{_lambda_.17} parent=0 // pred_region
    _
  $region21: #{_lambda_.17} parent=0 // pred_fallthru
    _
  // Predicated region
  $region22: #{_lambda_.17} parent=0 // pred_check
    _
  $region23: #{_lambda_.17} parent=0 // pred_check_branch
    %26 = sbr.rel (0) target = $region25
  $region24: #{_lambda_.17} parent=0 // pred_region
    _
  $region25: #{_lambda_.17} parent=0 // pred_fallthru
    _
  // Predicated region
  $region26: #{_lambda_.17} parent=0 // pred_check
    _
  $region27: #{_lambda_.17} parent=0 // pred_check_branch
    %28 = sbr.rel (0) target = $region29
  $region28: #{_lambda_.17} parent=0 // pred_region
    _
  $region29: #{_lambda_.17} parent=0 // pred_fallthru
    _
  // Predicated region
  $region30: #{_lambda_.17} parent=0 // pred_check
    _
  $region31: #{_lambda_.17} parent=0 // pred_check_branch
    %30 = sbr.rel (0) target = $region33
  $region32: #{_lambda_.17} parent=0 // pred_region
    _
  $region33: #{_lambda_.17} parent=0 // pred_fallthru
    _
  // Predicated region
  $region34: #{_lambda_.17} parent=0 // pred_check
    _
  $region35: #{_lambda_.17} parent=0 // pred_check_branch
    %32 = sbr.rel (0) target = $region37
  $region36: #{_lambda_.17} parent=0 // pred_region
    _
  $region37: #{_lambda_.17} parent=0 // pred_fallthru
    _
  // Predicated region
  $region38: #{_lambda_.17} parent=0 // pred_check
    _
  $region39: #{_lambda_.17} parent=0 // pred_check_branch
    %34 = sbr.rel (0) target = $region41
  $region40: #{_lambda_.17} parent=0 // pred_region
    _
  $region41: #{_lambda_.17} parent=0 // pred_fallthru
    _
  %v36 = vld [vmem:[%s0] sm:$0xf]
  %v37 = vld [vmem:[%s0 + $0x4] sm:$0xf]
  %v38 = vld [vmem:[%s2] sm:$0xf]
  %v39 = vld [vmem:[%s2 + $0x4] sm:$0xf]
  %v40 = vld [vmem:[%s2 + $0x8] sm:$0xf]
  %v41 = vld [vmem:[%s2 + $0xc] sm:$0xf]
  %v42 = vld [vmem:[%s3] sm:$0x1]
  %v44 = vlaneseq
  %v45 = vshrl.u32 %v44, 7
  %v46 = vsub.s32 0, %v45
  %v47 = vrot.slane %v42, %v46
  %v51 = vunpack.c.l.b16 %v36
  %v52 = vunpack.c.l.b16 %v37
  %v53 = vpack.c.b16 %v52, %v51
  %v58 = vunpack.c.l.b16 %v38
  %v59 = vunpack.c.l.b16 %v39
  %v60 = vunpack.c.l.b16 %v40
  %v61 = vunpack.c.l.b16 %v41
  %v62 = vpack.c.b16 %v59, %v58
  %v63 = vpack.c.b16 %v61, %v60
  %vm66 = vcmask 261120
  %v68 = vsel %vm66, %v53, 0
  %70 = vmatprep.subr.bf16.mxu0 0
  %71 = vmatpush1.bf16.msra.mxu0 0
  %72 = vmatprep.subr.bf16.mxu0 0
  %73 = vmatpush1.bf16.msra.mxu0 0
  %74 = vmatprep.subr.bf16.mxu0 0
  %75 = vmatpush1.bf16.msra.mxu0 0
  %76 = vmatprep.subr.bf16.mxu0 0
  %77 = vmatpush1.bf16.msra.mxu0 0
  %78 = vmatprep.subr.bf16.mxu0 0
  %79 = vmatpush1.bf16.msra.mxu0 0
  %80 = vmatprep.subr.bf16.mxu0 0
  %81 = vmatpush1.bf16.msra.mxu0 0
  %82 = vmatprep.subr.bf16.mxu0 0
  %83 = vmatpush1.bf16.msra.mxu0 %v63
  %84 = vmatprep.subr.bf16.mxu0 0
  %85 = vmatpush1.bf16.msra.mxu0 %v62
  %86 = vmatprep.subr.bf16.mxu0 0
  %87 = vmatpush2.bf16.msra.mxu0 0
  %88 = vmatprep.subr.bf16.mxu0 0
  %89 = vmatpush2.bf16.msra.mxu0 0
  %90 = vmatprep.subr.bf16.mxu0 0
  %91 = vmatpush2.bf16.msra.mxu0 0
  %92 = vmatprep.subr.bf16.mxu0 0
  %93 = vmatpush2.bf16.msra.mxu0 0
  %94 = vmatprep.subr.bf16.mxu0 0
  %95 = vmatpush2.bf16.msra.mxu0 0
  %96 = vmatprep.subr.bf16.mxu0 0
  %97 = vmatpush2.bf16.msra.mxu0 0
  %98 = vmatprep.subr.bf16.mxu0 0
  %99 = vmatpush2.bf16.msra.mxu0 0
  %100 = vmatprep.subr.bf16.mxu0 0
  %101 = vmatpush2.bf16.msra.mxu0 0
  %102 = vmatprep.mubr.bf16.mxu0 0
  %103 = vmatmul.mubr.bf16.gmra.mxu0 %v68
  %v104 = vpop.f32.mrf.mxu0
  %v105 = vadd.f32 %v47, %v104
  %v106 = vpop.f32.mrf.mxu0
  %v107 = vpop.f32.mrf.mxu0
  %v108 = vadd.f32 %v47, %v107
  %v109 = vpop.f32.mrf.mxu0
  %110 = vdwg.mxu0
  %v111 = vpack.c.bf16 %v108, %v105
  %v112 = vld [vmem:[%s4] sm:$0xf]
  %v113 = vld [vmem:[%s4 + $0x4] sm:$0xf]
  %v114 = vld [vmem:[%s4 + $0x8] sm:$0xf]
  %v115 = vld [vmem:[%s4 + $0xc] sm:$0xf]
  %v116 = vld [vmem:[%s5] sm:$0x1]
  %v118 = vlaneseq
  %v119 = vshrl.u32 %v118, 7
  %v120 = vsub.s32 0, %v119
  %v121 = vrot.slane %v116, %v120
  %v127 = vunpack.c.l.b16 %v112
  %v128 = vunpack.c.l.b16 %v113
  %v129 = vunpack.c.l.b16 %v114
  %v130 = vunpack.c.l.b16 %v115
  %v131 = vpack.c.b16 %v128, %v127
  %v132 = vpack.c.b16 %v130, %v129
  %v136 = vsel %vm66, %v111, 0
  %138 = vmatprep.subr.bf16.mxu0 0
  %139 = vmatpush1.bf16.msra.mxu0 0
  %140 = vmatprep.subr.bf16.mxu0 0
  %141 = vmatpush1.bf16.msra.mxu0 0
  %142 = vmatprep.subr.bf16.mxu0 0
  %143 = vmatpush1.bf16.msra.mxu0 0
  %144 = vmatprep.subr.bf16.mxu0 0
  %145 = vmatpush1.bf16.msra.mxu0 0
  %146 = vmatprep.subr.bf16.mxu0 0
  %147 = vmatpush1.bf16.msra.mxu0 0
  %148 = vmatprep.subr.bf16.mxu0 0
  %149 = vmatpush1.bf16.msra.mxu0 0
  %150 = vmatprep.subr.bf16.mxu0 0
  %151 = vmatpush1.bf16.msra.mxu0 %v132
  %152 = vmatprep.subr.bf16.mxu0 0
  %153 = vmatpush1.bf16.msra.mxu0 %v131
  %154 = vmatprep.subr.bf16.mxu0 0
  %155 = vmatpush2.bf16.msra.mxu0 0
  %156 = vmatprep.subr.bf16.mxu0 0
  %157 = vmatpush2.bf16.msra.mxu0 0
  %158 = vmatprep.subr.bf16.mxu0 0
  %159 = vmatpush2.bf16.msra.mxu0 0
  %160 = vmatprep.subr.bf16.mxu0 0
  %161 = vmatpush2.bf16.msra.mxu0 0
  %162 = vmatprep.subr.bf16.mxu0 0
  %163 = vmatpush2.bf16.msra.mxu0 0
  %164 = vmatprep.subr.bf16.mxu0 0
  %165 = vmatpush2.bf16.msra.mxu0 0
  %166 = vmatprep.subr.bf16.mxu0 0
  %167 = vmatpush2.bf16.msra.mxu0 0
  %168 = vmatprep.subr.bf16.mxu0 0
  %169 = vmatpush2.bf16.msra.mxu0 0
  %170 = vmatprep.mubr.bf16.mxu0 0
  %171 = vmatmul.mubr.bf16.gmra.mxu0 %v136
  %v172 = vpop.f32.mrf.mxu0
  %v173 = vadd.f32 %v121, %v172
  %v174 = vpop.f32.mrf.mxu0
  %v175 = vpop.f32.mrf.mxu0
  %v176 = vadd.f32 %v121, %v175
  %v177 = vpop.f32.mrf.mxu0
  %178 = vdwg.mxu0
  %v179 = vmax.f32 %v173, 0.0
  %v180 = vmax.f32 %v176, 0.0
  %v181 = vpack.c.bf16 %v180, %v179
  %v182 = vld [vmem:[%s6] sm:$0x1]
  %v183 = vld [vmem:[%s7] sm:$0x1]
  %v185 = vlaneseq
  %v186 = vshrl.u32 %v185, 7
  %v187 = vsub.s32 0, %v186
  %v188 = vrot.slane %v183, %v187
  %vm190 = vcmask 15360
  %v192 = vsel %vm190, %v181, 0
  %vm194 = vcmask 1040384
  %v196 = vsel %vm194, %v182, 0
  %198 = vmatprep.subr.bf16.mxu0 0
  %199 = vmatpush1.bf16.msra.mxu0 0
  %200 = vmatprep.subr.bf16.mxu0 0
  %201 = vmatpush1.bf16.msra.mxu0 0
  %202 = vmatprep.subr.bf16.mxu0 0
  %203 = vmatpush1.bf16.msra.mxu0 0
  %204 = vmatprep.subr.bf16.mxu0 0
  %205 = vmatpush1.bf16.msra.mxu0 0
  %206 = vmatprep.subr.bf16.mxu0 0
  %207 = vmatpush1.bf16.msra.mxu0 0
  %208 = vmatprep.subr.bf16.mxu0 0
  %209 = vmatpush1.bf16.msra.mxu0 0
  %210 = vmatprep.subr.bf16.mxu0 0
  %211 = vmatpush1.bf16.msra.mxu0 0
  %212 = vmatprep.subr.bf16.mxu0 0
  %213 = vmatpush1.bf16.msra.mxu0 %v196
  %214 = vmatprep.subr.bf16.mxu0 0
  %215 = vmatpush2.bf16.msra.mxu0 0
  %216 = vmatprep.subr.bf16.mxu0 0
  %217 = vmatpush2.bf16.msra.mxu0 0
  %218 = vmatprep.subr.bf16.mxu0 0
  %219 = vmatpush2.bf16.msra.mxu0 0
  %220 = vmatprep.subr.bf16.mxu0 0
  %221 = vmatpush2.bf16.msra.mxu0 0
  %222 = vmatprep.subr.bf16.mxu0 0
  %223 = vmatpush2.bf16.msra.mxu0 0
  %224 = vmatprep.subr.bf16.mxu0 0
  %225 = vmatpush2.bf16.msra.mxu0 0
  %226 = vmatprep.subr.bf16.mxu0 0
  %227 = vmatpush2.bf16.msra.mxu0 0
  %228 = vmatprep.subr.bf16.mxu0 0
  %229 = vmatpush2.bf16.msra.mxu0 0
  %230 = vmatprep.mubr.bf16.mxu0 0
  %231 = vmatmul.mubr.bf16.gmra.mxu0 %v192
  %v232 = vpop.f32.mrf.mxu0
  %v233 = vadd.f32 %v188, %v232
  %v234 = vpop.f32.mrf.mxu0
  %v235 = vpop.f32.mrf.mxu0
  %v236 = vadd.f32 %v188, %v235
  %v237 = vpop.f32.mrf.mxu0
  %238 = vdwg.mxu0
  %v239 = vadd.f32 %v105, %v233
  %v240 = vadd.f32 %v108, %v236
  %v241 = vld [vmem:[%s1] sm:$0xf]
  %v242 = vld [vmem:[%s1 + $0x4] sm:$0xf]
  %v243 = vunpack.c.l.bf16 %v241
  %v244 = vunpack.c.l.bf16 %v242
  %v245 = vadd.f32 %v239, %v243
  %v246 = vadd.f32 %v240, %v244
  %v247 = vsel %vm66, %v245, 0.0
  %248 = vadd.xlane.f32.xlu0 %v247
  %v249 = vpop.xlane.xlu0 %248
  %v250 = vsel %vm66, %v246, 0.0
  %251 = vadd.xlane.f32.xlu0 %v250
  %v252 = vpop.xlane.xlu0 %251
  %v253 = vrcp.pop 32.0
  %v254 = vmul.f32 %v249, %v253
  %v255 = vmul.f32 %v252, %v253
  %v256 = vsub.f32 %v245, %v254
  %v257 = vsub.f32 %v246, %v255
  %v258 = vmul.f32 %v256, %v256
  %v259 = vmul.f32 %v257, %v257
  %v260 = vsel %vm66, %v258, 0.0
  %261 = vadd.xlane.f32.xlu0 %v260
  %v262 = vpop.xlane.xlu0 %261
  %v263 = vsel %vm66, %v259, 0.0
  %264 = vadd.xlane.f32.xlu0 %v263
  %v265 = vpop.xlane.xlu0 %264
  %v266 = vmul.f32 %v262, %v253
  %v267 = vmul.f32 %v265, %v253
  %v268 = vadd.f32 %v266, 1e-05
  %v269 = vadd.f32 %v267, 1e-05
  %v270 = vrsqrt.pop %v268
  %v271 = vrsqrt.pop %v269
  %v272 = vmul.f32 %v256, %v270
  %v273 = vmul.f32 %v257, %v271
  %v274 = vld [vmem:[%s8] sm:$0x1]
  %v276 = vlaneseq
  %v277 = vshrl.u32 %v276, 7
  %v278 = vsub.s32 0, %v277
  %v279 = vrot.slane %v274, %v278
  %v281 = vmul.f32 %v272, %v279
  %v282 = vmul.f32 %v273, %v279
  %v283 = vld [vmem:[%s9] sm:$0x1]
  %v285 = vlaneseq
  %v286 = vshrl.u32 %v285, 7
  %v287 = vsub.s32 0, %v286
  %v288 = vrot.slane %v283, %v287
  %v290 = vadd.f32 %v281, %v288
  %v291 = vadd.f32 %v282, %v288
  %v292 = vpack.c.bf16 %v291, %v290
  %v294 = vunpack.c.l.b16 %v292
  %v295 = vunpack.c.h.b16 %v292
  %v296 = vpack.c.b16 %v294, %v294
  %v297 = vpack.c.b16 %v295, %v295
  %vm300 = vcmask 257024
  %301 = vst.msk [vmem:[%s10] sm:$0xf] %vm300, %v296
  %302 = vst.msk [vmem:[%s10 + $0x4] sm:$0xf] %vm300, %v297
  // Predicated region
  $region42: #{_lambda_.17} parent=0 // pred_check
    _
  $region43: #{_lambda_.17} parent=0 // pred_check_branch
    %304 = sbr.rel (0) target = $region45
  $region44: #{_lambda_.17} parent=0 // pred_region
    _
  $region45: #{_lambda_.17} parent=0 // pred_fallthru
    _
  // Predicated region
  $region46: #{_lambda_.17} parent=0 // pred_check
    _
  $region47: #{_lambda_.17} parent=0 // pred_check_branch
    %306 = sbr.rel (0) target = $region49
  $region48: #{_lambda_.17} parent=0 // pred_region
    _
  $region49: #{_lambda_.17} parent=0 // pred_fallthru
    _

// kernel: _lambda_.25
$region0: #{_lambda_.25}
  #allocation0 [shape = 'u32[]', space=smem, size = 0x4, offset = 0x4, fixed_abs, tag = 'smem constant byte address 0x4 - core index']
  #allocation1 [shape = 'u32[144,128]{1,0:T(1,128)}', space=vmem, size = 0x12000, scoped, tag = 'internal scratch']
  #allocation2 [shape = 'f32[16,32]{1,0:T(8,128)}', space=vmem, size = 0x2000, scoped, tag = 'scratch operand']
  %s0 = inlined_call_operand.vmem [shape: bf16[16,32], index: 0, kind: input, shape index: {}]
  %s1 = inlined_call_operand.vmem [shape: bf16[32,32], index: 1, kind: input, shape index: {}]
  %s2 = inlined_call_operand.vmem [shape: f32[1,32], index: 2, kind: input, shape index: {}]
  %s3 = inlined_call_operand.vmem [shape: bf16[16,32], index: 3, kind: output, shape index: {}]
  %s4 = sld [smem:[#allocation0]]
  $region30: #{_lambda_.25} parent=0
    _
  %s6 = ssub.s32 1, %s4
  %s7 = scalar_select 0, %s6, %s4
  // Predicated region
  $region2: #{_lambda_.25} parent=0 // pred_check
    _
  $region3: #{_lambda_.25} parent=0 // pred_check_branch
    %9 = sbr.rel (0) target = $region5
  $region4: #{_lambda_.25} parent=0 // pred_region
    _
  $region5: #{_lambda_.25} parent=0 // pred_fallthru
    _
  // Predicated region
  $region6: #{_lambda_.25} parent=0 // pred_check
    _
  $region7: #{_lambda_.25} parent=0 // pred_check_branch
    %11 = sbr.rel (0) target = $region9
  $region8: #{_lambda_.25} parent=0 // pred_region
    _
  $region9: #{_lambda_.25} parent=0 // pred_fallthru
    _
  // Predicated region
  $region10: #{_lambda_.25} parent=0 // pred_check
    _
  $region11: #{_lambda_.25} parent=0 // pred_check_branch
    %13 = sbr.rel (0) target = $region13
  $region12: #{_lambda_.25} parent=0 // pred_region
    _
  $region13: #{_lambda_.25} parent=0 // pred_fallthru
    _
  %p15 = scmp.eq.s32.totalorder 0, 0
  // Predicated region
  $region14: #{_lambda_.25} parent=0 // pred_check
    %p16 = pneg %p15
  $region15: #{_lambda_.25} parent=0 // pred_check_branch
    %18 = sbr.rel (%p16) target = $region17
  $region16: #{_lambda_.25} parent=0 // pred_region
    %vm19 = vcmask 261120
    %20 = vst.msk [vmem:[#allocation2] sm:$0xff] %vm19, 0.0
    %21 = vst.msk [vmem:[#allocation2 + $0x8] sm:$0xff] %vm19, 0.0
  $region17: #{_lambda_.25} parent=0 // pred_fallthru
    _
  %v22 = vld [vmem:[#allocation2] sm:$0xff]
  %v23 = vld [vmem:[#allocation2 + $0x8] sm:$0xff]
  %v24 = vld [vmem:[%s0] sm:$0xf]
  %v25 = vld [vmem:[%s0 + $0x4] sm:$0xf]
  %v26 = vld [vmem:[%s1] sm:$0xf]
  %v27 = vld [vmem:[%s1 + $0x4] sm:$0xf]
  %v28 = vld [vmem:[%s1 + $0x8] sm:$0xf]
  %v29 = vld [vmem:[%s1 + $0xc] sm:$0xf]
  %v32 = vunpack.c.l.b16 %v24
  %v33 = vunpack.c.l.b16 %v25
  %v34 = vpack.c.b16 %v33, %v32
  %v39 = vunpack.c.l.b16 %v26
  %v40 = vunpack.c.l.b16 %v27
  %v41 = vunpack.c.l.b16 %v28
  %v42 = vunpack.c.l.b16 %v29
  %v43 = vpack.c.b16 %v40, %v39
  %v44 = vpack.c.b16 %v42, %v41
  %vm47 = vcmask 261120
  %v49 = vsel %vm47, %v34, 0
  %51 = vmatprep.subr.bf16.mxu0 0
  %52 = vmatpush1.bf16.msra.mxu0 0
  %53 = vmatprep.subr.bf16.mxu0 0
  %54 = vmatpush1.bf16.msra.mxu0 0
  %55 = vmatprep.subr.bf16.mxu0 0
  %56 = vmatpush1.bf16.msra.mxu0 0
  %57 = vmatprep.subr.bf16.mxu0 0
  %58 = vmatpush1.bf16.msra.mxu0 0
  %59 = vmatprep.subr.bf16.mxu0 0
  %60 = vmatpush1.bf16.msra.mxu0 0
  %61 = vmatprep.subr.bf16.mxu0 0
  %62 = vmatpush1.bf16.msra.mxu0 0
  %63 = vmatprep.subr.bf16.mxu0 0
  %64 = vmatpush1.bf16.msra.mxu0 %v44
  %65 = vmatprep.subr.bf16.mxu0 0
  %66 = vmatpush1.bf16.msra.mxu0 %v43
  %67 = vmatprep.subr.bf16.mxu0 0
  %68 = vmatpush2.bf16.msra.mxu0 0
  %69 = vmatprep.subr.bf16.mxu0 0
  %70 = vmatpush2.bf16.msra.mxu0 0
  %71 = vmatprep.subr.bf16.mxu0 0
  %72 = vmatpush2.bf16.msra.mxu0 0
  %73 = vmatprep.subr.bf16.mxu0 0
  %74 = vmatpush2.bf16.msra.mxu0 0
  %75 = vmatprep.subr.bf16.mxu0 0
  %76 = vmatpush2.bf16.msra.mxu0 0
  %77 = vmatprep.subr.bf16.mxu0 0
  %78 = vmatpush2.bf16.msra.mxu0 0
  %79 = vmatprep.subr.bf16.mxu0 0
  %80 = vmatpush2.bf16.msra.mxu0 0
  %81 = vmatprep.subr.bf16.mxu0 0
  %82 = vmatpush2.bf16.msra.mxu0 0
  %83 = vmatprep.mubr.bf16.mxu0 0
  %84 = vmatmul.mubr.bf16.gmra.mxu0 %v49
  %v85 = vpop.f32.mrf.mxu0
  %v86 = vadd.f32 0.0, %v85
  %v87 = vpop.f32.mrf.mxu0
  %v88 = vpop.f32.mrf.mxu0
  %v89 = vadd.f32 0.0, %v88
  %v90 = vpop.f32.mrf.mxu0
  %91 = vdwg.mxu0
  %v92 = vadd.f32 %v22, %v86
  %v93 = vadd.f32 %v23, %v89
  %94 = vst.msk [vmem:[#allocation2] sm:$0xff] %vm47, %v92
  %95 = vst.msk [vmem:[#allocation2 + $0x8] sm:$0xff] %vm47, %v93
  // Predicated region
  $region18: #{_lambda_.25} parent=0 // pred_check
    %p96 = pneg %p15
  $region19: #{_lambda_.25} parent=0 // pred_check_branch
    %98 = sbr.rel (%p96) target = $region21
  $region20: #{_lambda_.25} parent=0 // pred_region
    %v99 = vld [vmem:[#allocation2] sm:$0xff]
    %v100 = vld [vmem:[#allocation2 + $0x8] sm:$0xff]
    %v101 = vld [vmem:[%s2] sm:$0x1]
    %v103 = vlaneseq
    %v104 = vshrl.u32 %v103, 7
    %v105 = vsub.s32 0, %v104
    %v106 = vrot.slane %v101, %v105
    %v108 = vadd.f32 %v99, %v106
    %v109 = vadd.f32 %v100, %v106
    %v110 = vmul.f32 %v108, 0.5
    %v111 = vmul.f32 %v109, 0.5
    %v112 = vmul.f32 %v108, 0.044715
    %v113 = vmul.f32 %v109, 0.044715
    %v114 = vmul.f32 %v112, %v108
    %v115 = vmul.f32 %v113, %v109
    %v116 = vmul.f32 %v114, %v108
    %v117 = vmul.f32 %v115, %v109
    %v118 = vadd.f32 %v108, %v116
    %v119 = vadd.f32 %v109, %v117
    %v120 = vmul.f32 %v118, 0.7978846
    %v121 = vmul.f32 %v119, 0.7978846
    %v122 = vtanh.pop %v120
    %v123 = vtanh.pop %v121
    %v124 = vadd.f32 %v122, 1.0
    %v125 = vadd.f32 %v123, 1.0
    %v126 = vmul.f32 %v110, %v124
    %v127 = vmul.f32 %v111, %v125
    %v128 = vpack.c.bf16 %v127, %v126
    %v130 = vunpack.c.l.b16 %v128
    %v131 = vunpack.c.h.b16 %v128
    %v132 = vpack.c.b16 %v130, %v130
    %v133 = vpack.c.b16 %v131, %v131
    %vm136 = vcmask 257024
    %137 = vst.msk [vmem:[%s3] sm:$0xf] %vm136, %v132
    %138 = vst.msk [vmem:[%s3 + $0x4] sm:$0xf] %vm136, %v133
  $region21: #{_lambda_.25} parent=0 // pred_fallthru
    _
  // Predicated region
  $region22: #{_lambda_.25} parent=0 // pred_check
    _
  $region23: #{_lambda_.25} parent=0 // pred_check_branch
    %140 = sbr.rel (0) target = $region25
  $region24: #{_lambda_.25} parent=0 // pred_region
    _
  $region25: #{_lambda_.25} parent=0 // pred_fallthru
    _
  // Predicated region
  $region26: #{_lambda_.25} parent=0 // pred_check
    _
  $region27: #{_lambda_.25} parent=0 // pred_check_branch
    %142 = sbr.rel (0) target = $region29
  $region28: #{_lambda_.25} parent=0 // pred_region
    _
  $region29: #{_lambda_.25} parent=0 // pred_fallthru
    _

// kernel: _lambda_.19
$region0: #{_lambda_.19}
  #allocation0 [shape = 'u32[]', space=smem, size = 0x4, offset = 0x4, fixed_abs, tag = 'smem constant byte address 0x4 - core index']
  #allocation1 [shape = 'u32[144,128]{1,0:T(1,128)}', space=vmem, size = 0x12000, scoped, tag = 'internal scratch']
  %s0 = inlined_call_operand.vmem [shape: bf16[16,128], index: 0, kind: input, shape index: {}]
  %s1 = inlined_call_operand.vmem [shape: bf16[16,32], index: 1, kind: input, shape index: {}]
  %s2 = inlined_call_operand.vmem [shape: bf16[128,32], index: 2, kind: input, shape index: {}]
  %s3 = inlined_call_operand.vmem [shape: f32[1,32], index: 3, kind: input, shape index: {}]
  %s4 = inlined_call_operand.vmem [shape: bf16[32,2], index: 4, kind: input, shape index: {}]
  %s5 = inlined_call_operand.vmem [shape: f32[1,2], index: 5, kind: input, shape index: {}]
  %s6 = inlined_call_operand.vmem [shape: bf16[2,32], index: 6, kind: input, shape index: {}]
  %s7 = inlined_call_operand.vmem [shape: f32[1,32], index: 7, kind: input, shape index: {}]
  %s8 = inlined_call_operand.vmem [shape: f32[1,32], index: 8, kind: input, shape index: {}]
  %s9 = inlined_call_operand.vmem [shape: f32[1,32], index: 9, kind: input, shape index: {}]
  %s10 = inlined_call_operand.vmem [shape: bf16[16,32], index: 10, kind: output, shape index: {}]
  %s11 = sld [smem:[#allocation0]]
  $region50: #{_lambda_.19} parent=0
    _
  %s13 = ssub.s32 1, %s11
  %s14 = scalar_select 0, %s13, %s11
  // Predicated region
  $region2: #{_lambda_.19} parent=0 // pred_check
    _
  $region3: #{_lambda_.19} parent=0 // pred_check_branch
    %16 = sbr.rel (0) target = $region5
  $region4: #{_lambda_.19} parent=0 // pred_region
    _
  $region5: #{_lambda_.19} parent=0 // pred_fallthru
    _
  // Predicated region
  $region6: #{_lambda_.19} parent=0 // pred_check
    _
  $region7: #{_lambda_.19} parent=0 // pred_check_branch
    %18 = sbr.rel (0) target = $region9
  $region8: #{_lambda_.19} parent=0 // pred_region
    _
  $region9: #{_lambda_.19} parent=0 // pred_fallthru
    _
  // Predicated region
  $region10: #{_lambda_.19} parent=0 // pred_check
    _
  $region11: #{_lambda_.19} parent=0 // pred_check_branch
    %20 = sbr.rel (0) target = $region13
  $region12: #{_lambda_.19} parent=0 // pred_region
    _
  $region13: #{_lambda_.19} parent=0 // pred_fallthru
    _
  // Predicated region
  $region14: #{_lambda_.19} parent=0 // pred_check
    _
  $region15: #{_lambda_.19} parent=0 // pred_check_branch
    %22 = sbr.rel (0) target = $region17
  $region16: #{_lambda_.19} parent=0 // pred_region
    _
  $region17: #{_lambda_.19} parent=0 // pred_fallthru
    _
  // Predicated region
  $region18: #{_lambda_.19} parent=0 // pred_check
    _
  $region19: #{_lambda_.19} parent=0 // pred_check_branch
    %24 = sbr.rel (0) target = $region21
  $region20: #{_lambda_.19} parent=0 // pred_region
    _
  $region21: #{_lambda_.19} parent=0 // pred_fallthru
    _
  // Predicated region
  $region22: #{_lambda_.19} parent=0 // pred_check
    _
  $region23: #{_lambda_.19} parent=0 // pred_check_branch
    %26 = sbr.rel (0) target = $region25
  $region24: #{_lambda_.19} parent=0 // pred_region
    _
  $region25: #{_lambda_.19} parent=0 // pred_fallthru
    _
  // Predicated region
  $region26: #{_lambda_.19} parent=0 // pred_check
    _
  $region27: #{_lambda_.19} parent=0 // pred_check_branch
    %28 = sbr.rel (0) target = $region29
  $region28: #{_lambda_.19} parent=0 // pred_region
    _
  $region29: #{_lambda_.19} parent=0 // pred_fallthru
    _
  // Predicated region
  $region30: #{_lambda_.19} parent=0 // pred_check
    _
  $region31: #{_lambda_.19} parent=0 // pred_check_branch
    %30 = sbr.rel (0) target = $region33
  $region32: #{_lambda_.19} parent=0 // pred_region
    _
  $region33: #{_lambda_.19} parent=0 // pred_fallthru
    _
  // Predicated region
  $region34: #{_lambda_.19} parent=0 // pred_check
    _
  $region35: #{_lambda_.19} parent=0 // pred_check_branch
    %32 = sbr.rel (0) target = $region37
  $region36: #{_lambda_.19} parent=0 // pred_region
    _
  $region37: #{_lambda_.19} parent=0 // pred_fallthru
    _
  // Predicated region
  $region38: #{_lambda_.19} parent=0 // pred_check
    _
  $region39: #{_lambda_.19} parent=0 // pred_check_branch
    %34 = sbr.rel (0) target = $region41
  $region40: #{_lambda_.19} parent=0 // pred_region
    _
  $region41: #{_lambda_.19} parent=0 // pred_fallthru
    _
  %v36 = vld [vmem:[%s0] sm:$0xf]
  %v37 = vld [vmem:[%s0 + $0x4] sm:$0xf]
  %v38 = vld [vmem:[%s2] sm:$0xf]
  %v39 = vld [vmem:[%s2 + $0x4] sm:$0xf]
  %v40 = vld [vmem:[%s2 + $0x8] sm:$0xf]
  %v41 = vld [vmem:[%s2 + $0xc] sm:$0xf]
  %v42 = vld [vmem:[%s2 + $0x10] sm:$0xf]
  %v43 = vld [vmem:[%s2 + $0x14] sm:$0xf]
  %v44 = vld [vmem:[%s2 + $0x18] sm:$0xf]
  %v45 = vld [vmem:[%s2 + $0x1c] sm:$0xf]
  %v46 = vld [vmem:[%s2 + $0x20] sm:$0xf]
  %v47 = vld [vmem:[%s2 + $0x24] sm:$0xf]
  %v48 = vld [vmem:[%s2 + $0x28] sm:$0xf]
  %v49 = vld [vmem:[%s2 + $0x2c] sm:$0xf]
  %v50 = vld [vmem:[%s2 + $0x30] sm:$0xf]
  %v51 = vld [vmem:[%s2 + $0x34] sm:$0xf]
  %v52 = vld [vmem:[%s2 + $0x38] sm:$0xf]
  %v53 = vld [vmem:[%s2 + $0x3c] sm:$0xf]
  %v54 = vld [vmem:[%s3] sm:$0x1]
  %v56 = vlaneseq
  %v57 = vshrl.u32 %v56, 7
  %v58 = vsub.s32 0, %v57
  %v59 = vrot.slane %v54, %v58
  %v63 = vunpack.c.l.b16 %v36
  %v64 = vunpack.c.l.b16 %v37
  %v65 = vpack.c.b16 %v64, %v63
  %v83 = vunpack.c.l.b16 %v38
  %v84 = vunpack.c.l.b16 %v39
  %v85 = vunpack.c.l.b16 %v40
  %v86 = vunpack.c.l.b16 %v41
  %v87 = vunpack.c.l.b16 %v42
  %v88 = vunpack.c.l.b16 %v43
  %v89 = vunpack.c.l.b16 %v44
  %v90 = vunpack.c.l.b16 %v45
  %v91 = vunpack.c.l.b16 %v46
  %v92 = vunpack.c.l.b16 %v47
  %v93 = vunpack.c.l.b16 %v48
  %v94 = vunpack.c.l.b16 %v49
  %v95 = vunpack.c.l.b16 %v50
  %v96 = vunpack.c.l.b16 %v51
  %v97 = vunpack.c.l.b16 %v52
  %v98 = vunpack.c.l.b16 %v53
  %v99 = vpack.c.b16 %v84, %v83
  %v100 = vpack.c.b16 %v86, %v85
  %v101 = vpack.c.b16 %v88, %v87
  %v102 = vpack.c.b16 %v90, %v89
  %v103 = vpack.c.b16 %v92, %v91
  %v104 = vpack.c.b16 %v94, %v93
  %v105 = vpack.c.b16 %v96, %v95
  %v106 = vpack.c.b16 %v98, %v97
  %115 = vmatprep.subr.bf16.mxu0 0
  %116 = vmatpush1.bf16.msra.mxu0 %v106
  %117 = vmatprep.subr.bf16.mxu0 0
  %118 = vmatpush1.bf16.msra.mxu0 %v105
  %119 = vmatprep.subr.bf16.mxu0 0
  %120 = vmatpush1.bf16.msra.mxu0 %v104
  %121 = vmatprep.subr.bf16.mxu0 0
  %122 = vmatpush1.bf16.msra.mxu0 %v103
  %123 = vmatprep.subr.bf16.mxu0 0
  %124 = vmatpush1.bf16.msra.mxu0 %v102
  %125 = vmatprep.subr.bf16.mxu0 0
  %126 = vmatpush1.bf16.msra.mxu0 %v101
  %127 = vmatprep.subr.bf16.mxu0 0
  %128 = vmatpush1.bf16.msra.mxu0 %v100
  %129 = vmatprep.subr.bf16.mxu0 0
  %130 = vmatpush1.bf16.msra.mxu0 %v99
  %131 = vmatprep.subr.bf16.mxu0 0
  %132 = vmatpush2.bf16.msra.mxu0 0
  %133 = vmatprep.subr.bf16.mxu0 0
  %134 = vmatpush2.bf16.msra.mxu0 0
  %135 = vmatprep.subr.bf16.mxu0 0
  %136 = vmatpush2.bf16.msra.mxu0 0
  %137 = vmatprep.subr.bf16.mxu0 0
  %138 = vmatpush2.bf16.msra.mxu0 0
  %139 = vmatprep.subr.bf16.mxu0 0
  %140 = vmatpush2.bf16.msra.mxu0 0
  %141 = vmatprep.subr.bf16.mxu0 0
  %142 = vmatpush2.bf16.msra.mxu0 0
  %143 = vmatprep.subr.bf16.mxu0 0
  %144 = vmatpush2.bf16.msra.mxu0 0
  %145 = vmatprep.subr.bf16.mxu0 0
  %146 = vmatpush2.bf16.msra.mxu0 0
  %147 = vmatprep.mubr.bf16.mxu0 0
  %148 = vmatmul.mubr.bf16.gmra.mxu0 %v65
  %v149 = vpop.f32.mrf.mxu0
  %v150 = vadd.f32 %v59, %v149
  %v151 = vpop.f32.mrf.mxu0
  %v152 = vpop.f32.mrf.mxu0
  %v153 = vadd.f32 %v59, %v152
  %v154 = vpop.f32.mrf.mxu0
  %155 = vdwg.mxu0
  %v156 = vpack.c.bf16 %v153, %v150
  %v157 = vld [vmem:[%s4] sm:$0xf]
  %v158 = vld [vmem:[%s4 + $0x4] sm:$0xf]
  %v159 = vld [vmem:[%s4 + $0x8] sm:$0xf]
  %v160 = vld [vmem:[%s4 + $0xc] sm:$0xf]
  %v161 = vld [vmem:[%s5] sm:$0x1]
  %v163 = vlaneseq
  %v164 = vshrl.u32 %v163, 7
  %v165 = vsub.s32 0, %v164
  %v166 = vrot.slane %v161, %v165
  %v172 = vunpack.c.l.b16 %v157
  %v173 = vunpack.c.l.b16 %v158
  %v174 = vunpack.c.l.b16 %v159
  %v175 = vunpack.c.l.b16 %v160
  %v176 = vpack.c.b16 %v173, %v172
  %v177 = vpack.c.b16 %v175, %v174
  %vm180 = vcmask 261120
  %v182 = vsel %vm180, %v156, 0
  %184 = vmatprep.subr.bf16.mxu0 0
  %185 = vmatpush1.bf16.msra.mxu0 0
  %186 = vmatprep.subr.bf16.mxu0 0
  %187 = vmatpush1.bf16.msra.mxu0 0
  %188 = vmatprep.subr.bf16.mxu0 0
  %189 = vmatpush1.bf16.msra.mxu0 0
  %190 = vmatprep.subr.bf16.mxu0 0
  %191 = vmatpush1.bf16.msra.mxu0 0
  %192 = vmatprep.subr.bf16.mxu0 0
  %193 = vmatpush1.bf16.msra.mxu0 0
  %194 = vmatprep.subr.bf16.mxu0 0
  %195 = vmatpush1.bf16.msra.mxu0 0
  %196 = vmatprep.subr.bf16.mxu0 0
  %197 = vmatpush1.bf16.msra.mxu0 %v177
  %198 = vmatprep.subr.bf16.mxu0 0
  %199 = vmatpush1.bf16.msra.mxu0 %v176
  %200 = vmatprep.subr.bf16.mxu0 0
  %201 = vmatpush2.bf16.msra.mxu0 0
  %202 = vmatprep.subr.bf16.mxu0 0
  %203 = vmatpush2.bf16.msra.mxu0 0
  %204 = vmatprep.subr.bf16.mxu0 0
  %205 = vmatpush2.bf16.msra.mxu0 0
  %206 = vmatprep.subr.bf16.mxu0 0
  %207 = vmatpush2.bf16.msra.mxu0 0
  %208 = vmatprep.subr.bf16.mxu0 0
  %209 = vmatpush2.bf16.msra.mxu0 0
  %210 = vmatprep.subr.bf16.mxu0 0
  %211 = vmatpush2.bf16.msra.mxu0 0
  %212 = vmatprep.subr.bf16.mxu0 0
  %213 = vmatpush2.bf16.msra.mxu0 0
  %214 = vmatprep.subr.bf16.mxu0 0
  %215 = vmatpush2.bf16.msra.mxu0 0
  %216 = vmatprep.mubr.bf16.mxu0 0
  %217 = vmatmul.mubr.bf16.gmra.mxu0 %v182
  %v218 = vpop.f32.mrf.mxu0
  %v219 = vadd.f32 %v166, %v218
  %v220 = vpop.f32.mrf.mxu0
  %v221 = vpop.f32.mrf.mxu0
  %v222 = vadd.f32 %v166, %v221
  %v223 = vpop.f32.mrf.mxu0
  %224 = vdwg.mxu0
  %v225 = vmax.f32 %v219, 0.0
  %v226 = vmax.f32 %v222, 0.0
  %v227 = vpack.c.bf16 %v226, %v225
  %v228 = vld [vmem:[%s6] sm:$0x1]
  %v229 = vld [vmem:[%s7] sm:$0x1]
  %v231 = vlaneseq
  %v232 = vshrl.u32 %v231, 7
  %v233 = vsub.s32 0, %v232
  %v234 = vrot.slane %v229, %v233
  %vm236 = vcmask 15360
  %v238 = vsel %vm236, %v227, 0
  %vm240 = vcmask 1040384
  %v242 = vsel %vm240, %v228, 0
  %244 = vmatprep.subr.bf16.mxu0 0
  %245 = vmatpush1.bf16.msra.mxu0 0
  %246 = vmatprep.subr.bf16.mxu0 0
  %247 = vmatpush1.bf16.msra.mxu0 0
  %248 = vmatprep.subr.bf16.mxu0 0
  %249 = vmatpush1.bf16.msra.mxu0 0
  %250 = vmatprep.subr.bf16.mxu0 0
  %251 = vmatpush1.bf16.msra.mxu0 0
  %252 = vmatprep.subr.bf16.mxu0 0
  %253 = vmatpush1.bf16.msra.mxu0 0
  %254 = vmatprep.subr.bf16.mxu0 0
  %255 = vmatpush1.bf16.msra.mxu0 0
  %256 = vmatprep.subr.bf16.mxu0 0
  %257 = vmatpush1.bf16.msra.mxu0 0
  %258 = vmatprep.subr.bf16.mxu0 0
  %259 = vmatpush1.bf16.msra.mxu0 %v242
  %260 = vmatprep.subr.bf16.mxu0 0
  %261 = vmatpush2.bf16.msra.mxu0 0
  %262 = vmatprep.subr.bf16.mxu0 0
  %263 = vmatpush2.bf16.msra.mxu0 0
  %264 = vmatprep.subr.bf16.mxu0 0
  %265 = vmatpush2.bf16.msra.mxu0 0
  %266 = vmatprep.subr.bf16.mxu0 0
  %267 = vmatpush2.bf16.msra.mxu0 0
  %268 = vmatprep.subr.bf16.mxu0 0
  %269 = vmatpush2.bf16.msra.mxu0 0
  %270 = vmatprep.subr.bf16.mxu0 0
  %271 = vmatpush2.bf16.msra.mxu0 0
  %272 = vmatprep.subr.bf16.mxu0 0
  %273 = vmatpush2.bf16.msra.mxu0 0
  %274 = vmatprep.subr.bf16.mxu0 0
  %275 = vmatpush2.bf16.msra.mxu0 0
  %276 = vmatprep.mubr.bf16.mxu0 0
  %277 = vmatmul.mubr.bf16.gmra.mxu0 %v238
  %v278 = vpop.f32.mrf.mxu0
  %v279 = vadd.f32 %v234, %v278
  %v280 = vpop.f32.mrf.mxu0
  %v281 = vpop.f32.mrf.mxu0
  %v282 = vadd.f32 %v234, %v281
  %v283 = vpop.f32.mrf.mxu0
  %284 = vdwg.mxu0
  %v285 = vadd.f32 %v150, %v279
  %v286 = vadd.f32 %v153, %v282
  %v287 = vld [vmem:[%s1] sm:$0xf]
  %v288 = vld [vmem:[%s1 + $0x4] sm:$0xf]
  %v289 = vunpack.c.l.bf16 %v287
  %v290 = vunpack.c.l.bf16 %v288
  %v291 = vadd.f32 %v285, %v289
  %v292 = vadd.f32 %v286, %v290
  %v293 = vsel %vm180, %v291, 0.0
  %294 = vadd.xlane.f32.xlu0 %v293
  %v295 = vpop.xlane.xlu0 %294
  %v296 = vsel %vm180, %v292, 0.0
  %297 = vadd.xlane.f32.xlu0 %v296
  %v298 = vpop.xlane.xlu0 %297
  %v299 = vrcp.pop 32.0
  %v300 = vmul.f32 %v295, %v299
  %v301 = vmul.f32 %v298, %v299
  %v302 = vsub.f32 %v291, %v300
  %v303 = vsub.f32 %v292, %v301
  %v304 = vmul.f32 %v302, %v302
  %v305 = vmul.f32 %v303, %v303
  %v306 = vsel %vm180, %v304, 0.0
  %307 = vadd.xlane.f32.xlu0 %v306
  %v308 = vpop.xlane.xlu0 %307
  %v309 = vsel %vm180, %v305, 0.0
  %310 = vadd.xlane.f32.xlu0 %v309
  %v311 = vpop.xlane.xlu0 %310
  %v312 = vmul.f32 %v308, %v299
  %v313 = vmul.f32 %v311, %v299
  %v314 = vadd.f32 %v312, 1e-05
  %v315 = vadd.f32 %v313, 1e-05
  %v316 = vrsqrt.pop %v314
  %v317 = vrsqrt.pop %v315
  %v318 = vmul.f32 %v302, %v316
  %v319 = vmul.f32 %v303, %v317
  %v320 = vld [vmem:[%s8] sm:$0x1]
  %v322 = vlaneseq
  %v323 = vshrl.u32 %v322, 7
  %v324 = vsub.s32 0, %v323
  %v325 = vrot.slane %v320, %v324
  %v327 = vmul.f32 %v318, %v325
  %v328 = vmul.f32 %v319, %v325
  %v329 = vld [vmem:[%s9] sm:$0x1]
  %v331 = vlaneseq
  %v332 = vshrl.u32 %v331, 7
  %v333 = vsub.s32 0, %v332
  %v334 = vrot.slane %v329, %v333
  %v336 = vadd.f32 %v327, %v334
  %v337 = vadd.f32 %v328, %v334
  %v338 = vpack.c.bf16 %v337, %v336
  %v340 = vunpack.c.l.b16 %v338
  %v341 = vunpack.c.h.b16 %v338
  %v342 = vpack.c.b16 %v340, %v340
  %v343 = vpack.c.b16 %v341, %v341
  %vm346 = vcmask 257024
  %347 = vst.msk [vmem:[%s10] sm:$0xf] %vm346, %v342
  %348 = vst.msk [vmem:[%s10 + $0x4] sm:$0xf] %vm346, %v343
  // Predicated region
  $region42: #{_lambda_.19} parent=0 // pred_check
    _
  $region43: #{_lambda_.19} parent=0 // pred_check_branch
    %350 = sbr.rel (0) target = $region45
  $region44: #{_lambda_.19} parent=0 // pred_region
    _
  $region45: #{_lambda_.19} parent=0 // pred_fallthru
    _
  // Predicated region
  $region46: #{_lambda_.19} parent=0 // pred_check
    _
  $region47: #{_lambda_.19} parent=0 // pred_check_branch
    %352 = sbr.rel (0) target = $region49
  $region48: #{_lambda_.19} parent=0 // pred_region
    _
  $region49: #{_lambda_.19} parent=0 // pred_fallthru
    _

// kernel: _lambda_.18
$region0: #{_lambda_.18}
  #allocation0 [shape = 'u32[]', space=smem, size = 0x4, offset = 0x4, fixed_abs, tag = 'smem constant byte address 0x4 - core index']
  #allocation1 [shape = 'u32[144,128]{1,0:T(1,128)}', space=vmem, size = 0x12000, scoped, tag = 'internal scratch']
  #allocation2 [shape = 'f32[16,128]{1,0:T(8,128)}', space=vmem, size = 0x2000, scoped, tag = 'scratch operand']
  %s0 = inlined_call_operand.vmem [shape: bf16[16,32], index: 0, kind: input, shape index: {}]
  %s1 = inlined_call_operand.vmem [shape: bf16[32,128], index: 1, kind: input, shape index: {}]
  %s2 = inlined_call_operand.vmem [shape: f32[1,128], index: 2, kind: input, shape index: {}]
  %s3 = inlined_call_operand.vmem [shape: bf16[16,128], index: 3, kind: output, shape index: {}]
  %s4 = sld [smem:[#allocation0]]
  $region30: #{_lambda_.18} parent=0
    _
  %s6 = ssub.s32 1, %s4
  %s7 = scalar_select 0, %s6, %s4
  // Predicated region
  $region2: #{_lambda_.18} parent=0 // pred_check
    _
  $region3: #{_lambda_.18} parent=0 // pred_check_branch
    %9 = sbr.rel (0) target = $region5
  $region4: #{_lambda_.18} parent=0 // pred_region
    _
  $region5: #{_lambda_.18} parent=0 // pred_fallthru
    _
  // Predicated region
  $region6: #{_lambda_.18} parent=0 // pred_check
    _
  $region7: #{_lambda_.18} parent=0 // pred_check_branch
    %11 = sbr.rel (0) target = $region9
  $region8: #{_lambda_.18} parent=0 // pred_region
    _
  $region9: #{_lambda_.18} parent=0 // pred_fallthru
    _
  // Predicated region
  $region10: #{_lambda_.18} parent=0 // pred_check
    _
  $region11: #{_lambda_.18} parent=0 // pred_check_branch
    %13 = sbr.rel (0) target = $region13
  $region12: #{_lambda_.18} parent=0 // pred_region
    _
  $region13: #{_lambda_.18} parent=0 // pred_fallthru
    _
  %p15 = scmp.eq.s32.totalorder 0, 0
  // Predicated region
  $region14: #{_lambda_.18} parent=0 // pred_check
    %p16 = pneg %p15
  $region15: #{_lambda_.18} parent=0 // pred_check_branch
    %18 = sbr.rel (%p16) target = $region17
  $region16: #{_lambda_.18} parent=0 // pred_region
    %19 = vst [vmem:[#allocation2] sm:$0xff] 0.0
    %20 = vst [vmem:[#allocation2 + $0x8] sm:$0xff] 0.0
  $region17: #{_lambda_.18} parent=0 // pred_fallthru
    _
  %v21 = vld [vmem:[#allocation2] sm:$0xff]
  %v22 = vld [vmem:[#allocation2 + $0x8] sm:$0xff]
  %v23 = vld [vmem:[%s0] sm:$0xf]
  %v24 = vld [vmem:[%s0 + $0x4] sm:$0xf]
  %v25 = vld [vmem:[%s1] sm:$0xf]
  %v26 = vld [vmem:[%s1 + $0x4] sm:$0xf]
  %v27 = vld [vmem:[%s1 + $0x8] sm:$0xf]
  %v28 = vld [vmem:[%s1 + $0xc] sm:$0xf]
  %v31 = vunpack.c.l.b16 %v23
  %v32 = vunpack.c.l.b16 %v24
  %v33 = vpack.c.b16 %v32, %v31
  %v38 = vunpack.c.l.b16 %v25
  %v39 = vunpack.c.l.b16 %v26
  %v40 = vunpack.c.l.b16 %v27
  %v41 = vunpack.c.l.b16 %v28
  %v42 = vpack.c.b16 %v39, %v38
  %v43 = vpack.c.b16 %v41, %v40
  %vm46 = vcmask 261120
  %v48 = vsel %vm46, %v33, 0
  %50 = vmatprep.subr.bf16.mxu0 0
  %51 = vmatpush1.bf16.msra.mxu0 0
  %52 = vmatprep.subr.bf16.mxu0 0
  %53 = vmatpush1.bf16.msra.mxu0 0
  %54 = vmatprep.subr.bf16.mxu0 0
  %55 = vmatpush1.bf16.msra.mxu0 0
  %56 = vmatprep.subr.bf16.mxu0 0
  %57 = vmatpush1.bf16.msra.mxu0 0
  %58 = vmatprep.subr.bf16.mxu0 0
  %59 = vmatpush1.bf16.msra.mxu0 0
  %60 = vmatprep.subr.bf16.mxu0 0
  %61 = vmatpush1.bf16.msra.mxu0 0
  %62 = vmatprep.subr.bf16.mxu0 0
  %63 = vmatpush1.bf16.msra.mxu0 %v43
  %64 = vmatprep.subr.bf16.mxu0 0
  %65 = vmatpush1.bf16.msra.mxu0 %v42
  %66 = vmatprep.subr.bf16.mxu0 0
  %67 = vmatpush2.bf16.msra.mxu0 0
  %68 = vmatprep.subr.bf16.mxu0 0
  %69 = vmatpush2.bf16.msra.mxu0 0
  %70 = vmatprep.subr.bf16.mxu0 0
  %71 = vmatpush2.bf16.msra.mxu0 0
  %72 = vmatprep.subr.bf16.mxu0 0
  %73 = vmatpush2.bf16.msra.mxu0 0
  %74 = vmatprep.subr.bf16.mxu0 0
  %75 = vmatpush2.bf16.msra.mxu0 0
  %76 = vmatprep.subr.bf16.mxu0 0
  %77 = vmatpush2.bf16.msra.mxu0 0
  %78 = vmatprep.subr.bf16.mxu0 0
  %79 = vmatpush2.bf16.msra.mxu0 0
  %80 = vmatprep.subr.bf16.mxu0 0
  %81 = vmatpush2.bf16.msra.mxu0 0
  %82 = vmatprep.mubr.bf16.mxu0 0
  %83 = vmatmul.mubr.bf16.gmra.mxu0 %v48
  %v84 = vpop.f32.mrf.mxu0
  %v85 = vadd.f32 0.0, %v84
  %v86 = vpop.f32.mrf.mxu0
  %v87 = vpop.f32.mrf.mxu0
  %v88 = vadd.f32 0.0, %v87
  %v89 = vpop.f32.mrf.mxu0
  %90 = vdwg.mxu0
  %v91 = vadd.f32 %v21, %v85
  %v92 = vadd.f32 %v22, %v88
  %93 = vst [vmem:[#allocation2] sm:$0xff] %v91
  %94 = vst [vmem:[#allocation2 + $0x8] sm:$0xff] %v92
  // Predicated region
  $region18: #{_lambda_.18} parent=0 // pred_check
    %p95 = pneg %p15
  $region19: #{_lambda_.18} parent=0 // pred_check_branch
    %97 = sbr.rel (%p95) target = $region21
  $region20: #{_lambda_.18} parent=0 // pred_region
    %v98 = vld [vmem:[#allocation2] sm:$0xff]
    %v99 = vld [vmem:[#allocation2 + $0x8] sm:$0xff]
    %v100 = vld [vmem:[%s2] sm:$0x1]
    %v102 = vlaneseq
    %v103 = vshrl.u32 %v102, 7
    %v104 = vsub.s32 0, %v103
    %v105 = vrot.slane %v100, %v104
    %v107 = vadd.f32 %v98, %v105
    %v108 = vadd.f32 %v99, %v105
    %v109 = vmul.f32 %v107, 0.5
    %v110 = vmul.f32 %v108, 0.5
    %v111 = vmul.f32 %v107, 0.044715
    %v112 = vmul.f32 %v108, 0.044715
    %v113 = vmul.f32 %v111, %v107
    %v114 = vmul.f32 %v112, %v108
    %v115 = vmul.f32 %v113, %v107
    %v116 = vmul.f32 %v114, %v108
    %v117 = vadd.f32 %v107, %v115
    %v118 = vadd.f32 %v108, %v116
    %v119 = vmul.f32 %v117, 0.7978846
    %v120 = vmul.f32 %v118, 0.7978846
    %v121 = vtanh.pop %v119
    %v122 = vtanh.pop %v120
    %v123 = vadd.f32 %v121, 1.0
    %v124 = vadd.f32 %v122, 1.0
    %v125 = vmul.f32 %v109, %v123
    %v126 = vmul.f32 %v110, %v124
    %v127 = vpack.c.bf16 %v126, %v125
    %v129 = vunpack.c.l.b16 %v127
    %v130 = vunpack.c.h.b16 %v127
    %v131 = vpack.c.b16 %v129, %v129
    %v132 = vpack.c.b16 %v130, %v130
    %135 = vst [vmem:[%s3] sm:$0xf] %v131
    %136 = vst [vmem:[%s3 + $0x4] sm:$0xf] %v132
  $region21: #{_lambda_.18} parent=0 // pred_fallthru
    _
  // Predicated region
  $region22: #{_lambda_.18} parent=0 // pred_check
    _
  $region23: #{_lambda_.18} parent=0 // pred_check_branch
    %138 = sbr.rel (0) target = $region25
  $region24: #{_lambda_.18} parent=0 // pred_region
    _
  $region25: #{_lambda_.18} parent=0 // pred_fallthru
    _
  // Predicated region
  $region26: #{_lambda_.18} parent=0 // pred_check
    _
  $region27: #{_lambda_.18} parent=0 // pred_check_branch
    %140 = sbr.rel (0) target = $region29
  $region28: #{_lambda_.18} parent=0 // pred_region
    _
  $region29: #{_lambda_.18} parent=0 // pred_fallthru
    _

// kernel: _lambda_.26
$region0: #{_lambda_.26}
  #allocation0 [shape = 'u32[]', space=smem, size = 0x4, offset = 0x4, fixed_abs, tag = 'smem constant byte address 0x4 - core index']
  #allocation1 [shape = 'u32[144,128]{1,0:T(1,128)}', space=vmem, size = 0x12000, scoped, tag = 'internal scratch']
  %s0 = inlined_call_operand.vmem [shape: bf16[16,32], index: 0, kind: input, shape index: {}]
  %s1 = inlined_call_operand.vmem [shape: f32[1,32], index: 1, kind: input, shape index: {}]
  %s2 = inlined_call_operand.vmem [shape: f32[1,32], index: 2, kind: input, shape index: {}]
  %s3 = inlined_call_operand.vmem [shape: bf16[16,32], index: 3, kind: output, shape index: {}]
  %s4 = sld [smem:[#allocation0]]
  $region22: #{_lambda_.26} parent=0
    _
  %s6 = ssub.s32 1, %s4
  %s7 = scalar_select 0, %s6, %s4
  // Predicated region
  $region2: #{_lambda_.26} parent=0 // pred_check
    _
  $region3: #{_lambda_.26} parent=0 // pred_check_branch
    %9 = sbr.rel (0) target = $region5
  $region4: #{_lambda_.26} parent=0 // pred_region
    _
  $region5: #{_lambda_.26} parent=0 // pred_fallthru
    _
  // Predicated region
  $region6: #{_lambda_.26} parent=0 // pred_check
    _
  $region7: #{_lambda_.26} parent=0 // pred_check_branch
    %11 = sbr.rel (0) target = $region9
  $region8: #{_lambda_.26} parent=0 // pred_region
    _
  $region9: #{_lambda_.26} parent=0 // pred_fallthru
    _
  // Predicated region
  $region10: #{_lambda_.26} parent=0 // pred_check
    _
  $region11: #{_lambda_.26} parent=0 // pred_check_branch
    %13 = sbr.rel (0) target = $region13
  $region12: #{_lambda_.26} parent=0 // pred_region
    _
  $region13: #{_lambda_.26} parent=0 // pred_fallthru
    _
  %v14 = vld [vmem:[%s0] sm:$0xf]
  %v15 = vld [vmem:[%s0 + $0x4] sm:$0xf]
  %v16 = vunpack.c.l.bf16 %v14
  %v17 = vunpack.c.l.bf16 %v15
  %vm18 = vcmask 261120
  %v19 = vsel %vm18, %v16, 0.0
  %20 = vadd.xlane.f32.xlu0 %v19
  %v21 = vpop.xlane.xlu0 %20
  %v22 = vsel %vm18, %v17, 0.0
  %23 = vadd.xlane.f32.xlu0 %v22
  %v24 = vpop.xlane.xlu0 %23
  %v25 = vrcp.pop 32.0
  %v26 = vmul.f32 %v21, %v25
  %v27 = vmul.f32 %v24, %v25
  %v28 = vsub.f32 %v16, %v26
  %v29 = vsub.f32 %v17, %v27
  %v30 = vmul.f32 %v28, %v28
  %v31 = vmul.f32 %v29, %v29
  %v32 = vsel %vm18, %v30, 0.0
  %33 = vadd.xlane.f32.xlu0 %v32
  %v34 = vpop.xlane.xlu0 %33
  %v35 = vsel %vm18, %v31, 0.0
  %36 = vadd.xlane.f32.xlu0 %v35
  %v37 = vpop.xlane.xlu0 %36
  %v38 = vmul.f32 %v34, %v25
  %v39 = vmul.f32 %v37, %v25
  %v40 = vadd.f32 %v38, 1e-05
  %v41 = vadd.f32 %v39, 1e-05
  %v42 = vrsqrt.pop %v40
  %v43 = vrsqrt.pop %v41
  %v44 = vmul.f32 %v28, %v42
  %v45 = vmul.f32 %v29, %v43
  %v46 = vld [vmem:[%s1] sm:$0x1]
  %v48 = vlaneseq
  %v49 = vshrl.u32 %v48, 7
  %v50 = vsub.s32 0, %v49
  %v51 = vrot.slane %v46, %v50
  %v53 = vmul.f32 %v44, %v51
  %v54 = vmul.f32 %v45, %v51
  %v55 = vld [vmem:[%s2] sm:$0x1]
  %v57 = vlaneseq
  %v58 = vshrl.u32 %v57, 7
  %v59 = vsub.s32 0, %v58
  %v60 = vrot.slane %v55, %v59
  %v62 = vadd.f32 %v53, %v60
  %v63 = vadd.f32 %v54, %v60
  %v64 = vpack.c.bf16 %v63, %v62
  %v66 = vunpack.c.l.b16 %v64
  %v67 = vunpack.c.h.b16 %v64
  %v68 = vpack.c.b16 %v66, %v66
  %v69 = vpack.c.b16 %v67, %v67
  %vm72 = vcmask 257024
  %73 = vst.msk [vmem:[%s3] sm:$0xf] %vm72, %v68
  %74 = vst.msk [vmem:[%s3 + $0x4] sm:$0xf] %vm72, %v69
  // Predicated region
  $region14: #{_lambda_.26} parent=0 // pred_check
    _
  $region15: #{_lambda_.26} parent=0 // pred_check_branch
    %76 = sbr.rel (0) target = $region17
  $region16: #{_lambda_.26} parent=0 // pred_region
    _
  $region17: #{_lambda_.26} parent=0 // pred_fallthru
    _
  // Predicated region
  $region18: #{_lambda_.26} parent=0 // pred_check
    _
  $region19: #{_lambda_.26} parent=0 // pred_check_branch
    %78 = sbr.rel (0) target = $region21
  $region20: #{_lambda_.26} parent=0 // pred_region
    _
  $region21: #{_lambda_.26} parent=0 // pred_fallthru
    _

// kernel: _lambda_.27
$region0: #{_lambda_.27}
  #allocation0 [shape = 'u32[]', space=smem, size = 0x4, offset = 0x4, fixed_abs, tag = 'smem constant byte address 0x4 - core index']
  #allocation1 [shape = 'u32[144,128]{1,0:T(1,128)}', space=vmem, size = 0x12000, scoped, tag = 'internal scratch']
  #allocation2 [shape = 'f32[16,64]{1,0:T(8,128)}', space=vmem, size = 0x2000, scoped, tag = 'scratch operand']
  %s0 = inlined_call_operand.vmem [shape: bf16[16,32], index: 0, kind: input, shape index: {}]
  %s1 = inlined_call_operand.vmem [shape: bf16[64,32], index: 1, kind: input, shape index: {}]
  %s2 = inlined_call_operand.vmem [shape: f32[1,64], index: 2, kind: input, shape index: {}]
  %s3 = inlined_call_operand.hbm [shape: f32[16,64], index: 3, kind: output, shape index: {}]
  %s4 = sld [smem:[#allocation0]]
  $region30: #{_lambda_.27} parent=0
    _
  %s6 = ssub.s32 1, %s4
  %s7 = scalar_select 0, %s6, %s4
  $region1: #{_lambda_.27} parent=0
    #allocation3 [shape = 'u8[8192]{0}', space=vmem, size = 0x2000, scoped, tag = 'output window, operand 0, single buffered']
    #allocation4 [shape = 's32[1]{0}', space=sflag, size = 0x4, scoped, tag = 'scoped memory for _lambda_.27']
    %8 = vsyncpa [#allocation4], 0
    // Predicated region
    $region2: #{_lambda_.27} parent=1 // pred_check
      _
    $region3: #{_lambda_.27} parent=1 // pred_check_branch
      %10 = sbr.rel (0) target = $region5
    $region4: #{_lambda_.27} parent=1 // pred_region
      _
    $region5: #{_lambda_.27} parent=1 // pred_fallthru
      _
    // Predicated region
    $region6: #{_lambda_.27} parent=1 // pred_check
      _
    $region7: #{_lambda_.27} parent=1 // pred_check_branch
      %12 = sbr.rel (0) target = $region9
    $region8: #{_lambda_.27} parent=1 // pred_region
      _
    $region9: #{_lambda_.27} parent=1 // pred_fallthru
      _
    // Predicated region
    $region10: #{_lambda_.27} parent=1 // pred_check
      _
    $region11: #{_lambda_.27} parent=1 // pred_check_branch
      %14 = sbr.rel (0) target = $region13
    $region12: #{_lambda_.27} parent=1 // pred_region
      _
    $region13: #{_lambda_.27} parent=1 // pred_fallthru
      _
    %p16 = scmp.eq.s32.totalorder 0, 0
    // Predicated region
    $region14: #{_lambda_.27} parent=1 // pred_check
      %p17 = pneg %p16
    $region15: #{_lambda_.27} parent=1 // pred_check_branch
      %19 = sbr.rel (%p17) target = $region17
    $region16: #{_lambda_.27} parent=1 // pred_region
      %vm20 = vcmask 523264
      %21 = vst.msk [vmem:[#allocation2] sm:$0xff] %vm20, 0.0
      %22 = vst.msk [vmem:[#allocation2 + $0x8] sm:$0xff] %vm20, 0.0
    $region17: #{_lambda_.27} parent=1 // pred_fallthru
      _
    %v23 = vld [vmem:[#allocation2] sm:$0xff]
    %v24 = vld [vmem:[#allocation2 + $0x8] sm:$0xff]
    %v25 = vld [vmem:[%s0] sm:$0xf]
    %v26 = vld [vmem:[%s0 + $0x4] sm:$0xf]
    %v27 = vld [vmem:[%s1] sm:$0xf]
    %v28 = vld [vmem:[%s1 + $0x4] sm:$0xf]
    %v29 = vld [vmem:[%s1 + $0x8] sm:$0xf]
    %v30 = vld [vmem:[%s1 + $0xc] sm:$0xf]
    %v31 = vld [vmem:[%s1 + $0x10] sm:$0xf]
    %v32 = vld [vmem:[%s1 + $0x14] sm:$0xf]
    %v33 = vld [vmem:[%s1 + $0x18] sm:$0xf]
    %v34 = vld [vmem:[%s1 + $0x1c] sm:$0xf]
    %v37 = vunpack.c.l.b16 %v25
    %v38 = vunpack.c.l.b16 %v26
    %v39 = vpack.c.b16 %v38, %v37
    %v48 = vunpack.c.l.b16 %v27
    %v49 = vunpack.c.l.b16 %v28
    %v50 = vunpack.c.l.b16 %v29
    %v51 = vunpack.c.l.b16 %v30
    %v52 = vunpack.c.l.b16 %v31
    %v53 = vunpack.c.l.b16 %v32
    %v54 = vunpack.c.l.b16 %v33
    %v55 = vunpack.c.l.b16 %v34
    %v56 = vpack.c.b16 %v49, %v48
    %v57 = vpack.c.b16 %v51, %v50
    %v58 = vpack.c.b16 %v53, %v52
    %v59 = vpack.c.b16 %v55, %v54
    %vm60 = vcmask 261120
    %v62 = vsel %vm60, %v39, 0
    %v65 = vsel %vm60, %v56, 0
    %v68 = vsel %vm60, %v57, 0
    %v71 = vsel %vm60, %v58, 0
    %v74 = vsel %vm60, %v59, 0
    %76 = vmatprep.subr.bf16.mxu0 0
    %77 = vmatpush1.bf16.xpose.msra.mxu0 0
    %78 = vmatprep.subr.bf16.mxu0 0
    %79 = vmatpush1.bf16.xpose.msra.mxu0 0
    %80 = vmatprep.subr.bf16.mxu0 0
    %81 = vmatpush1.bf16.xpose.msra.mxu0 0
    %82 = vmatprep.subr.bf16.mxu0 0
    %83 = vmatpush1.bf16.xpose.msra.mxu0 0
    %84 = vmatprep.subr.bf16.mxu0 0
    %85 = vmatpush1.bf16.xpose.msra.mxu0 %v74
    %86 = vmatprep.subr.bf16.mxu0 0
    %87 = vmatpush1.bf16.xpose.msra.mxu0 %v71
    %88 = vmatprep.subr.bf16.mxu0 0
    %89 = vmatpush1.bf16.xpose.msra.mxu0 %v68
    %90 = vmatprep.subr.bf16.mxu0 0
    %91 = vmatpush1.bf16.xpose.msra.mxu0 %v65
    %92 = vmatprep.subr.bf16.mxu0 0
    %93 = vmatpush2.bf16.xpose.msra.mxu0 0
    %94 = vmatprep.subr.bf16.mxu0 0
    %95 = vmatpush2.bf16.xpose.msra.mxu0 0
    %96 = vmatprep.subr.bf16.mxu0 0
    %97 = vmatpush2.bf16.xpose.msra.mxu0 0
    %98 = vmatprep.subr.bf16.mxu0 0
    %99 = vmatpush2.bf16.xpose.msra.mxu0 0
    %100 = vmatprep.subr.bf16.mxu0 0
    %101 = vmatpush2.bf16.xpose.msra.mxu0 0
    %102 = vmatprep.subr.bf16.mxu0 0
    %103 = vmatpush2.bf16.xpose.msra.mxu0 0
    %104 = vmatprep.subr.bf16.mxu0 0
    %105 = vmatpush2.bf16.xpose.msra.mxu0 0
    %106 = vmatprep.subr.bf16.mxu0 0
    %107 = vmatpush2.bf16.xpose.msra.mxu0 0
    %108 = vmatprep.mubr.bf16.mxu0 0
    %109 = vmatmul.mubr.bf16.gmra.mxu0 %v62
    %v110 = vpop.f32.mrf.mxu0
    %v111 = vadd.f32 0.0, %v110
    %v112 = vpop.f32.mrf.mxu0
    %v113 = vpop.f32.mrf.mxu0
    %v114 = vadd.f32 0.0, %v113
    %v115 = vpop.f32.mrf.mxu0
    %116 = vdwg.mxu0
    %v117 = vadd.f32 %v23, %v111
    %v118 = vadd.f32 %v24, %v114
    %vm119 = vcmask 523264
    %120 = vst.msk [vmem:[#allocation2] sm:$0xff] %vm119, %v117
    %121 = vst.msk [vmem:[#allocation2 + $0x8] sm:$0xff] %vm119, %v118
    // Predicated region
    $region18: #{_lambda_.27} parent=1 // pred_check
      %p122 = pneg %p16
    $region19: #{_lambda_.27} parent=1 // pred_check_branch
      %124 = sbr.rel (%p122) target = $region21
    $region20: #{_lambda_.27} parent=1 // pred_region
      %v125 = vld [vmem:[#allocation2] sm:$0xff]
      %v126 = vld [vmem:[#allocation2 + $0x8] sm:$0xff]
      %v127 = vld [vmem:[%s2] sm:$0x1]
      %v129 = vlaneseq
      %v130 = vshrl.u32 %v129, 7
      %v131 = vsub.s32 0, %v130
      %v132 = vrot.slane %v127, %v131
      %v134 = vadd.f32 %v125, %v132
      %v135 = vadd.f32 %v126, %v132
      %136 = vst.msk [vmem:[#allocation3] sm:$0xff] %vm119, %v134
      %137 = vst.msk [vmem:[#allocation3 + $0x8] sm:$0xff] %vm119, %v135
    $region21: #{_lambda_.27} parent=1 // pred_fallthru
      _
    // Predicated region
    $region22: #{_lambda_.27} parent=1 // pred_check
      _
    $region23: #{_lambda_.27} parent=1 // pred_check_branch
      %139 = sbr.rel (0) target = $region25
    $region24: #{_lambda_.27} parent=1 // pred_region
      %s141 = ssub.s32 256, 256
      %142 = vsyncadd [#allocation4], %s141
      %s143 = sshll.u32 [#allocation3], 4
      %s144 = int_to_ptr.vmem [resolvable:$true] %s143
      %149 = dma.vmem_to_hbm [thread:$0]  %s144, 256, %s3, [#allocation4], 128, 128, 8
    $region25: #{_lambda_.27} parent=1 // pred_fallthru
      _
    // Predicated region
    $region26: #{_lambda_.27} parent=1 // pred_check
      _
    $region27: #{_lambda_.27} parent=1 // pred_check_branch
      %151 = sbr.rel (0) target = $region29
    $region28: #{_lambda_.27} parent=1 // pred_region
      %152 = dma.done [#allocation4], 256
    $region29: #{_lambda_.27} parent=1 // pred_fallthru
      _
    %153 = vsyncpa [#allocation4], 1

</llo_original>
